<compile_context>
chip_gen: v7x
topology: tpu7x:2x2x1
jax: 0.10.0
libtpu: 0.0.40
codegen_flags: <defaults>
</compile_context>

<pallas_src>
import functools

import jax
import jax.numpy as jnp
from jax.experimental import pallas as pl
from jax.experimental.pallas import tpu as pltpu

EMBED_DIM = 300
CLASS_NUM = 6
C_PAD = 128        # lane-dense padded class dimension
BATCH_TILE = 8     # batch rows per grid step (multiple of 8 sublanes)


def fasttext_kernel(ids_ref, proj_hbm, bias_ref, o_ref, gbuf, sem):
    """One grid step = one batch tile of TB rows.

    ids_ref : SMEM (B_pad, S) int32   -- scalar-prefetched token ids
    proj_hbm: HBM  (V, C_PAD) f32     -- embedding @ W^T / S, zero-padded cols
    bias_ref: VMEM (1, C_PAD) f32     -- zero-padded bias
    o_ref   : VMEM (TB, C_PAD) f32    -- output tile for this batch tile
    gbuf    : VMEM (2, S, C_PAD) f32  -- double-buffered per-row gather buffer
    sem     : DMA semaphores, shape (2,) (one per buffer slot)
    """
    bt = pl.program_id(0)
    tb = o_ref.shape[0]
    seq = gbuf.shape[1]

    def issue_row(r, slot):
        # Gather the S projected-token rows of batch row (bt*tb + r) into gbuf[slot].
        b = bt * tb + r
        for s in range(seq):                                    # static unroll (S is small)
            pltpu.make_async_copy(
                proj_hbm.at[pl.ds(ids_ref[b, s], 1), :],        # (1, C_PAD) row in HBM
                gbuf.at[slot, pl.ds(s, 1), :],                  # (1, C_PAD) slot in VMEM
                sem.at[slot],
            ).start()

    def wait_row(slot):
        # S waits of identical size against the same semaphore == all S copies done.
        for s in range(seq):
            pltpu.make_async_copy(
                proj_hbm.at[pl.ds(0, 1), :],
                gbuf.at[slot, pl.ds(s, 1), :],
                sem.at[slot],
            ).wait()

    issue_row(0, 0)                  # prime the pipeline
    bias = bias_ref[...]             # (1, C_PAD), hoisted out of the loop

    @pl.loop(0, tb)
    def _(r):
        slot = r & 1
        wait_row(slot)

        @pl.when(r + 1 < tb)
        def _():
            issue_row(r + 1, 1 - slot)   # prefetch next batch row under this row's reduce

        # Sum over seq (1/S already folded into the projection table) + bias.
        row = jnp.sum(gbuf[slot], axis=0, keepdims=True) + bias    # (1, C_PAD)
        o_ref[pl.ds(r, 1), :] = row                                # lane-dense store


@functools.partial(jax.jit, static_argnames=("batch_tile",))
def fasttext_forward(token_ids, embedding_table, fc_w, fc_b, *, batch_tile=BATCH_TILE):
    """token_ids [B,S] int32; embedding_table [V,E]; fc_w [C,E] (PyTorch layout); fc_b [C]."""
    B, S = token_ids.shape
    V, E = embedding_table.shape
    C = fc_w.shape[0]

    # One-time precompute: fold the seq-mean (1/S) and the fc weight into a
    # [V, C_PAD] projection table (zero-padded so kernel rows are lane-dense).
    proj = jnp.dot(embedding_table.astype(jnp.float32),
                   fc_w.astype(jnp.float32).T,
                   preferred_element_type=jnp.float32) * (1.0 / S)
    proj_padded = jnp.zeros((V, C_PAD), jnp.float32).at[:, :C].set(proj)
    bias2d = jnp.zeros((1, C_PAD), jnp.float32).at[0, :C].set(fc_b.astype(jnp.float32))

    # TODO(synk): dropout(p=0.3) is identity in eval mode; training-mode masking not emitted.

    # Pad batch to a multiple of the tile so output blocks are well-formed;
    # padded rows gather proj[0] and are sliced off below.
    nbt = pl.cdiv(B, batch_tile)
    b_pad = nbt * batch_tile
    ids = token_ids.astype(jnp.int32)
    if b_pad != B:
        ids = jnp.pad(ids, ((0, b_pad - B), (0, 0)))

    out = pl.pallas_call(
        fasttext_kernel,
        out_shape=jax.ShapeDtypeStruct((b_pad, C_PAD), jnp.float32),
        grid_spec=pltpu.PrefetchScalarGridSpec(
            num_scalar_prefetch=1,                       # token ids -> SMEM, drive the gather
            grid=(nbt,),
            in_specs=[
                pl.BlockSpec(memory_space=pl.ANY),       # projection table stays in HBM
                pl.BlockSpec((1, C_PAD), lambda i, ids_ref: (0, 0)),
            ],
            out_specs=pl.BlockSpec((batch_tile, C_PAD), lambda i, ids_ref: (i, 0)),
            scratch_shapes=[
                pltpu.VMEM((2, S, C_PAD), jnp.float32),  # double-buffered gather buffer
                pltpu.SemaphoreType.DMA((2,)),
            ],
        ),
        compiler_params=pltpu.CompilerParams(
            dimension_semantics=("parallel",)),          # batch tiles shard across v7x's 2 TCs
    )(ids, proj_padded, bias2d)

    return out[:B, :C]


if __name__ == "__main__":
    key = jax.random.PRNGKey(0)
    k_emb, k_w, k_b, k_tok = jax.random.split(key, 4)

    # Small synthetic shapes; batch deliberately NOT a multiple of the tile to
    # exercise the padding + slice path.
    batch, seq_len, vocab_size = 12, 16, 100

    embedding_table = jax.random.normal(k_emb, (vocab_size, EMBED_DIM), dtype=jnp.float32) * 0.1
    fc_w = jax.random.normal(k_w, (CLASS_NUM, EMBED_DIM), dtype=jnp.float32) * 0.05  # PyTorch [C, E]
    fc_b = jax.random.normal(k_b, (CLASS_NUM,), dtype=jnp.float32) * 0.01
    token_ids = jax.random.randint(k_tok, (batch, seq_len), 0, vocab_size, dtype=jnp.int32)

    logits = fasttext_forward(token_ids, embedding_table, fc_w, fc_b)
    logits = jax.block_until_ready(logits)

    # Pure-JAX reference (mean-pool then fc), matching the PyTorch eval forward.
    emb_ref = jnp.take(embedding_table, token_ids, axis=0).astype(jnp.float32)
    pooled_ref = jnp.mean(emb_ref, axis=1)
    logits_ref = pooled_ref @ fc_w.T + fc_b

    assert logits.shape == (batch, CLASS_NUM)
    assert jnp.allclose(logits, logits_ref, atol=1e-4, rtol=1e-4), \
        float(jnp.max(jnp.abs(logits - logits_ref)))

    print("KERNEL_OK")
</pallas_src>

<mosaic_0001>
module attributes {stable_mosaic.version = 11 : i64} {
  func.func @fasttext_kernel(%arg0: i32, %arg1: memref<16x16xi32, #tpu.memory_space<smem>>, %arg2: memref<100x128xf32, #tpu.memory_space<any>>, %arg3: memref<1x128xf32, #tpu.memory_space<vmem>>, %arg4: memref<8x128xf32, #tpu.memory_space<vmem>>, %arg5: memref<2x16x128xf32, #tpu.memory_space<vmem>>, %arg6: memref<2x!tpu.dma_semaphore, #tpu.memory_space<semaphore_mem>>) attributes {dimension_semantics = [#tpu.dimension_semantics<parallel>], iteration_bounds = array<i64: 2>, scalar_prefetch = 1 : i64, scratch_operands = 2 : i64, tpu.core_type = #tpu.core_type<tc>, window_params = [{}, {pipeline_mode = #tpu.pipeline_mode<synchronous>, transform_indices = @transform_1, window_bounds = array<i64: 1, 128>}, {transform_indices = @transform_2, window_bounds = array<i64: 8, 128>}]} {
    %c8_i32 = arith.constant 8 : i32
    %0 = arith.muli %arg0, %c8_i32 : i32
    %c0_i32 = arith.constant 0 : i32
    %1 = arith.addi %0, %c0_i32 : i32
    %2 = arith.index_cast %1 : i32 to index
    %c0 = arith.constant 0 : index
    %3 = memref.load %arg1[%2, %c0] : memref<16x16xi32, #tpu.memory_space<smem>>
    %c0_i32_0 = arith.constant 0 : i32
    %c0_i32_1 = arith.constant 0 : i32
    %c0_i32_2 = arith.constant 0 : i32
    %4 = tpu.memref_slice %arg2[%3, %c0_i32_2] : memref<100x128xf32, #tpu.memory_space<any>> -> memref<1x128xf32, #tpu.memory_space<any>>
    %c0_i32_3 = arith.constant 0 : i32
    %c0_i32_4 = arith.constant 0 : i32
    %5 = tpu.memref_slice %arg5[%c0_i32_0, %c0_i32_3, %c0_i32_4] : memref<2x16x128xf32, #tpu.memory_space<vmem>> -> memref<1x1x128xf32, #tpu.memory_space<vmem>>
    %6 = tpu.memref_squeeze %5 : memref<1x1x128xf32, #tpu.memory_space<vmem>> -> memref<1x128xf32, #tpu.memory_space<vmem>>
    %7 = tpu.memref_slice %arg6[%c0_i32_1] : memref<2x!tpu.dma_semaphore, #tpu.memory_space<semaphore_mem>> -> memref<1x!tpu.dma_semaphore, #tpu.memory_space<semaphore_mem>>
    %8 = tpu.memref_squeeze %7 : memref<1x!tpu.dma_semaphore, #tpu.memory_space<semaphore_mem>> -> memref<!tpu.dma_semaphore, #tpu.memory_space<semaphore_mem>>
    tpu.enqueue_dma source(%4 : memref<1x128xf32, #tpu.memory_space<any>>) target(%6 : memref<1x128xf32, #tpu.memory_space<vmem>>) target_semaphore(%8 : memref<!tpu.dma_semaphore, #tpu.memory_space<semaphore_mem>>)
    %9 = arith.index_cast %1 : i32 to index
    %c1 = arith.constant 1 : index
    %10 = memref.load %arg1[%9, %c1] : memref<16x16xi32, #tpu.memory_space<smem>>
    %c0_i32_5 = arith.constant 0 : i32
    %c0_i32_6 = arith.constant 0 : i32
    %c0_i32_7 = arith.constant 0 : i32
    %11 = tpu.memref_slice %arg2[%10, %c0_i32_7] : memref<100x128xf32, #tpu.memory_space<any>> -> memref<1x128xf32, #tpu.memory_space<any>>
    %c1_i32 = arith.constant 1 : i32
    %c0_i32_8 = arith.constant 0 : i32
    %12 = tpu.memref_slice %arg5[%c0_i32_5, %c1_i32, %c0_i32_8] : memref<2x16x128xf32, #tpu.memory_space<vmem>> -> memref<1x1x128xf32, #tpu.memory_space<vmem>>
    %13 = tpu.memref_squeeze %12 : memref<1x1x128xf32, #tpu.memory_space<vmem>> -> memref<1x128xf32, #tpu.memory_space<vmem>>
    %14 = tpu.memref_slice %arg6[%c0_i32_6] : memref<2x!tpu.dma_semaphore, #tpu.memory_space<semaphore_mem>> -> memref<1x!tpu.dma_semaphore, #tpu.memory_space<semaphore_mem>>
    %15 = tpu.memref_squeeze %14 : memref<1x!tpu.dma_semaphore, #tpu.memory_space<semaphore_mem>> -> memref<!tpu.dma_semaphore, #tpu.memory_space<semaphore_mem>>
    tpu.enqueue_dma source(%11 : memref<1x128xf32, #tpu.memory_space<any>>) target(%13 : memref<1x128xf32, #tpu.memory_space<vmem>>) target_semaphore(%15 : memref<!tpu.dma_semaphore, #tpu.memory_space<semaphore_mem>>)
    %16 = arith.index_cast %1 : i32 to index
    %c2 = arith.constant 2 : index
    %17 = memref.load %arg1[%16, %c2] : memref<16x16xi32, #tpu.memory_space<smem>>
    %c0_i32_9 = arith.constant 0 : i32
    %c0_i32_10 = arith.constant 0 : i32
    %c0_i32_11 = arith.constant 0 : i32
    %18 = tpu.memref_slice %arg2[%17, %c0_i32_11] : memref<100x128xf32, #tpu.memory_space<any>> -> memref<1x128xf32, #tpu.memory_space<any>>
    %c2_i32 = arith.constant 2 : i32
    %c0_i32_12 = arith.constant 0 : i32
    %19 = tpu.memref_slice %arg5[%c0_i32_9, %c2_i32, %c0_i32_12] : memref<2x16x128xf32, #tpu.memory_space<vmem>> -> memref<1x1x128xf32, #tpu.memory_space<vmem>>
    %20 = tpu.memref_squeeze %19 : memref<1x1x128xf32, #tpu.memory_space<vmem>> -> memref<1x128xf32, #tpu.memory_space<vmem>>
    %21 = tpu.memref_slice %arg6[%c0_i32_10] : memref<2x!tpu.dma_semaphore, #tpu.memory_space<semaphore_mem>> -> memref<1x!tpu.dma_semaphore, #tpu.memory_space<semaphore_mem>>
    %22 = tpu.memref_squeeze %21 : memref<1x!tpu.dma_semaphore, #tpu.memory_space<semaphore_mem>> -> memref<!tpu.dma_semaphore, #tpu.memory_space<semaphore_mem>>
    tpu.enqueue_dma source(%18 : memref<1x128xf32, #tpu.memory_space<any>>) target(%20 : memref<1x128xf32, #tpu.memory_space<vmem>>) target_semaphore(%22 : memref<!tpu.dma_semaphore, #tpu.memory_space<semaphore_mem>>)
    %23 = arith.index_cast %1 : i32 to index
    %c3 = arith.constant 3 : index
    %24 = memref.load %arg1[%23, %c3] : memref<16x16xi32, #tpu.memory_space<smem>>
    %c0_i32_13 = arith.constant 0 : i32
    %c0_i32_14 = arith.constant 0 : i32
    %c0_i32_15 = arith.constant 0 : i32
    %25 = tpu.memref_slice %arg2[%24, %c0_i32_15] : memref<100x128xf32, #tpu.memory_space<any>> -> memref<1x128xf32, #tpu.memory_space<any>>
    %c3_i32 = arith.constant 3 : i32
    %c0_i32_16 = arith.constant 0 : i32
    %26 = tpu.memref_slice %arg5[%c0_i32_13, %c3_i32, %c0_i32_16] : memref<2x16x128xf32, #tpu.memory_space<vmem>> -> memref<1x1x128xf32, #tpu.memory_space<vmem>>
    %27 = tpu.memref_squeeze %26 : memref<1x1x128xf32, #tpu.memory_space<vmem>> -> memref<1x128xf32, #tpu.memory_space<vmem>>
    %28 = tpu.memref_slice %arg6[%c0_i32_14] : memref<2x!tpu.dma_semaphore, #tpu.memory_space<semaphore_mem>> -> memref<1x!tpu.dma_semaphore, #tpu.memory_space<semaphore_mem>>
    %29 = tpu.memref_squeeze %28 : memref<1x!tpu.dma_semaphore, #tpu.memory_space<semaphore_mem>> -> memref<!tpu.dma_semaphore, #tpu.memory_space<semaphore_mem>>
    tpu.enqueue_dma source(%25 : memref<1x128xf32, #tpu.memory_space<any>>) target(%27 : memref<1x128xf32, #tpu.memory_space<vmem>>) target_semaphore(%29 : memref<!tpu.dma_semaphore, #tpu.memory_space<semaphore_mem>>)
    %30 = arith.index_cast %1 : i32 to index
    %c4 = arith.constant 4 : index
    %31 = memref.load %arg1[%30, %c4] : memref<16x16xi32, #tpu.memory_space<smem>>
    %c0_i32_17 = arith.constant 0 : i32
    %c0_i32_18 = arith.constant 0 : i32
    %c0_i32_19 = arith.constant 0 : i32
    %32 = tpu.memref_slice %arg2[%31, %c0_i32_19] : memref<100x128xf32, #tpu.memory_space<any>> -> memref<1x128xf32, #tpu.memory_space<any>>
    %c4_i32 = arith.constant 4 : i32
    %c0_i32_20 = arith.constant 0 : i32
    %33 = tpu.memref_slice %arg5[%c0_i32_17, %c4_i32, %c0_i32_20] : memref<2x16x128xf32, #tpu.memory_space<vmem>> -> memref<1x1x128xf32, #tpu.memory_space<vmem>>
    %34 = tpu.memref_squeeze %33 : memref<1x1x128xf32, #tpu.memory_space<vmem>> -> memref<1x128xf32, #tpu.memory_space<vmem>>
    %35 = tpu.memref_slice %arg6[%c0_i32_18] : memref<2x!tpu.dma_semaphore, #tpu.memory_space<semaphore_mem>> -> memref<1x!tpu.dma_semaphore, #tpu.memory_space<semaphore_mem>>
    %36 = tpu.memref_squeeze %35 : memref<1x!tpu.dma_semaphore, #tpu.memory_space<semaphore_mem>> -> memref<!tpu.dma_semaphore, #tpu.memory_space<semaphore_mem>>
    tpu.enqueue_dma source(%32 : memref<1x128xf32, #tpu.memory_space<any>>) target(%34 : memref<1x128xf32, #tpu.memory_space<vmem>>) target_semaphore(%36 : memref<!tpu.dma_semaphore, #tpu.memory_space<semaphore_mem>>)
    %37 = arith.index_cast %1 : i32 to index
    %c5 = arith.constant 5 : index
    %38 = memref.load %arg1[%37, %c5] : memref<16x16xi32, #tpu.memory_space<smem>>
    %c0_i32_21 = arith.constant 0 : i32
    %c0_i32_22 = arith.constant 0 : i32
    %c0_i32_23 = arith.constant 0 : i32
    %39 = tpu.memref_slice %arg2[%38, %c0_i32_23] : memref<100x128xf32, #tpu.memory_space<any>> -> memref<1x128xf32, #tpu.memory_space<any>>
    %c5_i32 = arith.constant 5 : i32
    %c0_i32_24 = arith.constant 0 : i32
    %40 = tpu.memref_slice %arg5[%c0_i32_21, %c5_i32, %c0_i32_24] : memref<2x16x128xf32, #tpu.memory_space<vmem>> -> memref<1x1x128xf32, #tpu.memory_space<vmem>>
    %41 = tpu.memref_squeeze %40 : memref<1x1x128xf32, #tpu.memory_space<vmem>> -> memref<1x128xf32, #tpu.memory_space<vmem>>
    %42 = tpu.memref_slice %arg6[%c0_i32_22] : memref<2x!tpu.dma_semaphore, #tpu.memory_space<semaphore_mem>> -> memref<1x!tpu.dma_semaphore, #tpu.memory_space<semaphore_mem>>
    %43 = tpu.memref_squeeze %42 : memref<1x!tpu.dma_semaphore, #tpu.memory_space<semaphore_mem>> -> memref<!tpu.dma_semaphore, #tpu.memory_space<semaphore_mem>>
    tpu.enqueue_dma source(%39 : memref<1x128xf32, #tpu.memory_space<any>>) target(%41 : memref<1x128xf32, #tpu.memory_space<vmem>>) target_semaphore(%43 : memref<!tpu.dma_semaphore, #tpu.memory_space<semaphore_mem>>)
    %44 = arith.index_cast %1 : i32 to index
    %c6 = arith.constant 6 : index
    %45 = memref.load %arg1[%44, %c6] : memref<16x16xi32, #tpu.memory_space<smem>>
    %c0_i32_25 = arith.constant 0 : i32
    %c0_i32_26 = arith.constant 0 : i32
    %c0_i32_27 = arith.constant 0 : i32
    %46 = tpu.memref_slice %arg2[%45, %c0_i32_27] : memref<100x128xf32, #tpu.memory_space<any>> -> memref<1x128xf32, #tpu.memory_space<any>>
    %c6_i32 = arith.constant 6 : i32
    %c0_i32_28 = arith.constant 0 : i32
    %47 = tpu.memref_slice %arg5[%c0_i32_25, %c6_i32, %c0_i32_28] : memref<2x16x128xf32, #tpu.memory_space<vmem>> -> memref<1x1x128xf32, #tpu.memory_space<vmem>>
    %48 = tpu.memref_squeeze %47 : memref<1x1x128xf32, #tpu.memory_space<vmem>> -> memref<1x128xf32, #tpu.memory_space<vmem>>
    %49 = tpu.memref_slice %arg6[%c0_i32_26] : memref<2x!tpu.dma_semaphore, #tpu.memory_space<semaphore_mem>> -> memref<1x!tpu.dma_semaphore, #tpu.memory_space<semaphore_mem>>
    %50 = tpu.memref_squeeze %49 : memref<1x!tpu.dma_semaphore, #tpu.memory_space<semaphore_mem>> -> memref<!tpu.dma_semaphore, #tpu.memory_space<semaphore_mem>>
    tpu.enqueue_dma source(%46 : memref<1x128xf32, #tpu.memory_space<any>>) target(%48 : memref<1x128xf32, #tpu.memory_space<vmem>>) target_semaphore(%50 : memref<!tpu.dma_semaphore, #tpu.memory_space<semaphore_mem>>)
    %51 = arith.index_cast %1 : i32 to index
    %c7 = arith.constant 7 : index
    %52 = memref.load %arg1[%51, %c7] : memref<16x16xi32, #tpu.memory_space<smem>>
    %c0_i32_29 = arith.constant 0 : i32
    %c0_i32_30 = arith.constant 0 : i32
    %c0_i32_31 = arith.constant 0 : i32
    %53 = tpu.memref_slice %arg2[%52, %c0_i32_31] : memref<100x128xf32, #tpu.memory_space<any>> -> memref<1x128xf32, #tpu.memory_space<any>>
    %c7_i32 = arith.constant 7 : i32
    %c0_i32_32 = arith.constant 0 : i32
    %54 = tpu.memref_slice %arg5[%c0_i32_29, %c7_i32, %c0_i32_32] : memref<2x16x128xf32, #tpu.memory_space<vmem>> -> memref<1x1x128xf32, #tpu.memory_space<vmem>>
    %55 = tpu.memref_squeeze %54 : memref<1x1x128xf32, #tpu.memory_space<vmem>> -> memref<1x128xf32, #tpu.memory_space<vmem>>
    %56 = tpu.memref_slice %arg6[%c0_i32_30] : memref<2x!tpu.dma_semaphore, #tpu.memory_space<semaphore_mem>> -> memref<1x!tpu.dma_semaphore, #tpu.memory_space<semaphore_mem>>
    %57 = tpu.memref_squeeze %56 : memref<1x!tpu.dma_semaphore, #tpu.memory_space<semaphore_mem>> -> memref<!tpu.dma_semaphore, #tpu.memory_space<semaphore_mem>>
    tpu.enqueue_dma source(%53 : memref<1x128xf32, #tpu.memory_space<any>>) target(%55 : memref<1x128xf32, #tpu.memory_space<vmem>>) target_semaphore(%57 : memref<!tpu.dma_semaphore, #tpu.memory_space<semaphore_mem>>)
    %58 = arith.index_cast %1 : i32 to index
    %c8 = arith.constant 8 : index
    %59 = memref.load %arg1[%58, %c8] : memref<16x16xi32, #tpu.memory_space<smem>>
    %c0_i32_33 = arith.constant 0 : i32
    %c0_i32_34 = arith.constant 0 : i32
    %c0_i32_35 = arith.constant 0 : i32
    %60 = tpu.memref_slice %arg2[%59, %c0_i32_35] : memref<100x128xf32, #tpu.memory_space<any>> -> memref<1x128xf32, #tpu.memory_space<any>>
    %c8_i32_36 = arith.constant 8 : i32
    %c0_i32_37 = arith.constant 0 : i32
    %61 = tpu.memref_slice %arg5[%c0_i32_33, %c8_i32_36, %c0_i32_37] : memref<2x16x128xf32, #tpu.memory_space<vmem>> -> memref<1x1x128xf32, #tpu.memory_space<vmem>>
    %62 = tpu.memref_squeeze %61 : memref<1x1x128xf32, #tpu.memory_space<vmem>> -> memref<1x128xf32, #tpu.memory_space<vmem>>
    %63 = tpu.memref_slice %arg6[%c0_i32_34] : memref<2x!tpu.dma_semaphore, #tpu.memory_space<semaphore_mem>> -> memref<1x!tpu.dma_semaphore, #tpu.memory_space<semaphore_mem>>
    %64 = tpu.memref_squeeze %63 : memref<1x!tpu.dma_semaphore, #tpu.memory_space<semaphore_mem>> -> memref<!tpu.dma_semaphore, #tpu.memory_space<semaphore_mem>>
    tpu.enqueue_dma source(%60 : memref<1x128xf32, #tpu.memory_space<any>>) target(%62 : memref<1x128xf32, #tpu.memory_space<vmem>>) target_semaphore(%64 : memref<!tpu.dma_semaphore, #tpu.memory_space<semaphore_mem>>)
    %65 = arith.index_cast %1 : i32 to index
    %c9 = arith.constant 9 : index
    %66 = memref.load %arg1[%65, %c9] : memref<16x16xi32, #tpu.memory_space<smem>>
    %c0_i32_38 = arith.constant 0 : i32
    %c0_i32_39 = arith.constant 0 : i32
    %c0_i32_40 = arith.constant 0 : i32
    %67 = tpu.memref_slice %arg2[%66, %c0_i32_40] : memref<100x128xf32, #tpu.memory_space<any>> -> memref<1x128xf32, #tpu.memory_space<any>>
    %c9_i32 = arith.constant 9 : i32
    %c0_i32_41 = arith.constant 0 : i32
    %68 = tpu.memref_slice %arg5[%c0_i32_38, %c9_i32, %c0_i32_41] : memref<2x16x128xf32, #tpu.memory_space<vmem>> -> memref<1x1x128xf32, #tpu.memory_space<vmem>>
    %69 = tpu.memref_squeeze %68 : memref<1x1x128xf32, #tpu.memory_space<vmem>> -> memref<1x128xf32, #tpu.memory_space<vmem>>
    %70 = tpu.memref_slice %arg6[%c0_i32_39] : memref<2x!tpu.dma_semaphore, #tpu.memory_space<semaphore_mem>> -> memref<1x!tpu.dma_semaphore, #tpu.memory_space<semaphore_mem>>
    %71 = tpu.memref_squeeze %70 : memref<1x!tpu.dma_semaphore, #tpu.memory_space<semaphore_mem>> -> memref<!tpu.dma_semaphore, #tpu.memory_space<semaphore_mem>>
    tpu.enqueue_dma source(%67 : memref<1x128xf32, #tpu.memory_space<any>>) target(%69 : memref<1x128xf32, #tpu.memory_space<vmem>>) target_semaphore(%71 : memref<!tpu.dma_semaphore, #tpu.memory_space<semaphore_mem>>)
    %72 = arith.index_cast %1 : i32 to index
    %c10 = arith.constant 10 : index
    %73 = memref.load %arg1[%72, %c10] : memref<16x16xi32, #tpu.memory_space<smem>>
    %c0_i32_42 = arith.constant 0 : i32
    %c0_i32_43 = arith.constant 0 : i32
    %c0_i32_44 = arith.constant 0 : i32
    %74 = tpu.memref_slice %arg2[%73, %c0_i32_44] : memref<100x128xf32, #tpu.memory_space<any>> -> memref<1x128xf32, #tpu.memory_space<any>>
    %c10_i32 = arith.constant 10 : i32
    %c0_i32_45 = arith.constant 0 : i32
    %75 = tpu.memref_slice %arg5[%c0_i32_42, %c10_i32, %c0_i32_45] : memref<2x16x128xf32, #tpu.memory_space<vmem>> -> memref<1x1x128xf32, #tpu.memory_space<vmem>>
    %76 = tpu.memref_squeeze %75 : memref<1x1x128xf32, #tpu.memory_space<vmem>> -> memref<1x128xf32, #tpu.memory_space<vmem>>
    %77 = tpu.memref_slice %arg6[%c0_i32_43] : memref<2x!tpu.dma_semaphore, #tpu.memory_space<semaphore_mem>> -> memref<1x!tpu.dma_semaphore, #tpu.memory_space<semaphore_mem>>
    %78 = tpu.memref_squeeze %77 : memref<1x!tpu.dma_semaphore, #tpu.memory_space<semaphore_mem>> -> memref<!tpu.dma_semaphore, #tpu.memory_space<semaphore_mem>>
    tpu.enqueue_dma source(%74 : memref<1x128xf32, #tpu.memory_space<any>>) target(%76 : memref<1x128xf32, #tpu.memory_space<vmem>>) target_semaphore(%78 : memref<!tpu.dma_semaphore, #tpu.memory_space<semaphore_mem>>)
    %79 = arith.index_cast %1 : i32 to index
    %c11 = arith.constant 11 : index
    %80 = memref.load %arg1[%79, %c11] : memref<16x16xi32, #tpu.memory_space<smem>>
    %c0_i32_46 = arith.constant 0 : i32
    %c0_i32_47 = arith.constant 0 : i32
    %c0_i32_48 = arith.constant 0 : i32
    %81 = tpu.memref_slice %arg2[%80, %c0_i32_48] : memref<100x128xf32, #tpu.memory_space<any>> -> memref<1x128xf32, #tpu.memory_space<any>>
    %c11_i32 = arith.constant 11 : i32
    %c0_i32_49 = arith.constant 0 : i32
    %82 = tpu.memref_slice %arg5[%c0_i32_46, %c11_i32, %c0_i32_49] : memref<2x16x128xf32, #tpu.memory_space<vmem>> -> memref<1x1x128xf32, #tpu.memory_space<vmem>>
    %83 = tpu.memref_squeeze %82 : memref<1x1x128xf32, #tpu.memory_space<vmem>> -> memref<1x128xf32, #tpu.memory_space<vmem>>
    %84 = tpu.memref_slice %arg6[%c0_i32_47] : memref<2x!tpu.dma_semaphore, #tpu.memory_space<semaphore_mem>> -> memref<1x!tpu.dma_semaphore, #tpu.memory_space<semaphore_mem>>
    %85 = tpu.memref_squeeze %84 : memref<1x!tpu.dma_semaphore, #tpu.memory_space<semaphore_mem>> -> memref<!tpu.dma_semaphore, #tpu.memory_space<semaphore_mem>>
    tpu.enqueue_dma source(%81 : memref<1x128xf32, #tpu.memory_space<any>>) target(%83 : memref<1x128xf32, #tpu.memory_space<vmem>>) target_semaphore(%85 : memref<!tpu.dma_semaphore, #tpu.memory_space<semaphore_mem>>)
    %86 = arith.index_cast %1 : i32 to index
    %c12 = arith.constant 12 : index
    %87 = memref.load %arg1[%86, %c12] : memref<16x16xi32, #tpu.memory_space<smem>>
    %c0_i32_50 = arith.constant 0 : i32
    %c0_i32_51 = arith.constant 0 : i32
    %c0_i32_52 = arith.constant 0 : i32
    %88 = tpu.memref_slice %arg2[%87, %c0_i32_52] : memref<100x128xf32, #tpu.memory_space<any>> -> memref<1x128xf32, #tpu.memory_space<any>>
    %c12_i32 = arith.constant 12 : i32
    %c0_i32_53 = arith.constant 0 : i32
    %89 = tpu.memref_slice %arg5[%c0_i32_50, %c12_i32, %c0_i32_53] : memref<2x16x128xf32, #tpu.memory_space<vmem>> -> memref<1x1x128xf32, #tpu.memory_space<vmem>>
    %90 = tpu.memref_squeeze %89 : memref<1x1x128xf32, #tpu.memory_space<vmem>> -> memref<1x128xf32, #tpu.memory_space<vmem>>
    %91 = tpu.memref_slice %arg6[%c0_i32_51] : memref<2x!tpu.dma_semaphore, #tpu.memory_space<semaphore_mem>> -> memref<1x!tpu.dma_semaphore, #tpu.memory_space<semaphore_mem>>
    %92 = tpu.memref_squeeze %91 : memref<1x!tpu.dma_semaphore, #tpu.memory_space<semaphore_mem>> -> memref<!tpu.dma_semaphore, #tpu.memory_space<semaphore_mem>>
    tpu.enqueue_dma source(%88 : memref<1x128xf32, #tpu.memory_space<any>>) target(%90 : memref<1x128xf32, #tpu.memory_space<vmem>>) target_semaphore(%92 : memref<!tpu.dma_semaphore, #tpu.memory_space<semaphore_mem>>)
    %93 = arith.index_cast %1 : i32 to index
    %c13 = arith.constant 13 : index
    %94 = memref.load %arg1[%93, %c13] : memref<16x16xi32, #tpu.memory_space<smem>>
    %c0_i32_54 = arith.constant 0 : i32
    %c0_i32_55 = arith.constant 0 : i32
    %c0_i32_56 = arith.constant 0 : i32
    %95 = tpu.memref_slice %arg2[%94, %c0_i32_56] : memref<100x128xf32, #tpu.memory_space<any>> -> memref<1x128xf32, #tpu.memory_space<any>>
    %c13_i32 = arith.constant 13 : i32
    %c0_i32_57 = arith.constant 0 : i32
    %96 = tpu.memref_slice %arg5[%c0_i32_54, %c13_i32, %c0_i32_57] : memref<2x16x128xf32, #tpu.memory_space<vmem>> -> memref<1x1x128xf32, #tpu.memory_space<vmem>>
    %97 = tpu.memref_squeeze %96 : memref<1x1x128xf32, #tpu.memory_space<vmem>> -> memref<1x128xf32, #tpu.memory_space<vmem>>
    %98 = tpu.memref_slice %arg6[%c0_i32_55] : memref<2x!tpu.dma_semaphore, #tpu.memory_space<semaphore_mem>> -> memref<1x!tpu.dma_semaphore, #tpu.memory_space<semaphore_mem>>
    %99 = tpu.memref_squeeze %98 : memref<1x!tpu.dma_semaphore, #tpu.memory_space<semaphore_mem>> -> memref<!tpu.dma_semaphore, #tpu.memory_space<semaphore_mem>>
    tpu.enqueue_dma source(%95 : memref<1x128xf32, #tpu.memory_space<any>>) target(%97 : memref<1x128xf32, #tpu.memory_space<vmem>>) target_semaphore(%99 : memref<!tpu.dma_semaphore, #tpu.memory_space<semaphore_mem>>)
    %100 = arith.index_cast %1 : i32 to index
    %c14 = arith.constant 14 : index
    %101 = memref.load %arg1[%100, %c14] : memref<16x16xi32, #tpu.memory_space<smem>>
    %c0_i32_58 = arith.constant 0 : i32
    %c0_i32_59 = arith.constant 0 : i32
    %c0_i32_60 = arith.constant 0 : i32
    %102 = tpu.memref_slice %arg2[%101, %c0_i32_60] : memref<100x128xf32, #tpu.memory_space<any>> -> memref<1x128xf32, #tpu.memory_space<any>>
    %c14_i32 = arith.constant 14 : i32
    %c0_i32_61 = arith.constant 0 : i32
    %103 = tpu.memref_slice %arg5[%c0_i32_58, %c14_i32, %c0_i32_61] : memref<2x16x128xf32, #tpu.memory_space<vmem>> -> memref<1x1x128xf32, #tpu.memory_space<vmem>>
    %104 = tpu.memref_squeeze %103 : memref<1x1x128xf32, #tpu.memory_space<vmem>> -> memref<1x128xf32, #tpu.memory_space<vmem>>
    %105 = tpu.memref_slice %arg6[%c0_i32_59] : memref<2x!tpu.dma_semaphore, #tpu.memory_space<semaphore_mem>> -> memref<1x!tpu.dma_semaphore, #tpu.memory_space<semaphore_mem>>
    %106 = tpu.memref_squeeze %105 : memref<1x!tpu.dma_semaphore, #tpu.memory_space<semaphore_mem>> -> memref<!tpu.dma_semaphore, #tpu.memory_space<semaphore_mem>>
    tpu.enqueue_dma source(%102 : memref<1x128xf32, #tpu.memory_space<any>>) target(%104 : memref<1x128xf32, #tpu.memory_space<vmem>>) target_semaphore(%106 : memref<!tpu.dma_semaphore, #tpu.memory_space<semaphore_mem>>)
    %107 = arith.index_cast %1 : i32 to index
    %c15 = arith.constant 15 : index
    %108 = memref.load %arg1[%107, %c15] : memref<16x16xi32, #tpu.memory_space<smem>>
    %c0_i32_62 = arith.constant 0 : i32
    %c0_i32_63 = arith.constant 0 : i32
    %c0_i32_64 = arith.constant 0 : i32
    %109 = tpu.memref_slice %arg2[%108, %c0_i32_64] : memref<100x128xf32, #tpu.memory_space<any>> -> memref<1x128xf32, #tpu.memory_space<any>>
    %c15_i32 = arith.constant 15 : i32
    %c0_i32_65 = arith.constant 0 : i32
    %110 = tpu.memref_slice %arg5[%c0_i32_62, %c15_i32, %c0_i32_65] : memref<2x16x128xf32, #tpu.memory_space<vmem>> -> memref<1x1x128xf32, #tpu.memory_space<vmem>>
    %111 = tpu.memref_squeeze %110 : memref<1x1x128xf32, #tpu.memory_space<vmem>> -> memref<1x128xf32, #tpu.memory_space<vmem>>
    %112 = tpu.memref_slice %arg6[%c0_i32_63] : memref<2x!tpu.dma_semaphore, #tpu.memory_space<semaphore_mem>> -> memref<1x!tpu.dma_semaphore, #tpu.memory_space<semaphore_mem>>
    %113 = tpu.memref_squeeze %112 : memref<1x!tpu.dma_semaphore, #tpu.memory_space<semaphore_mem>> -> memref<!tpu.dma_semaphore, #tpu.memory_space<semaphore_mem>>
    tpu.enqueue_dma source(%109 : memref<1x128xf32, #tpu.memory_space<any>>) target(%111 : memref<1x128xf32, #tpu.memory_space<vmem>>) target_semaphore(%113 : memref<!tpu.dma_semaphore, #tpu.memory_space<semaphore_mem>>)
    %c0_66 = arith.constant 0 : index
    %c0_67 = arith.constant 0 : index
    %114 = vector.load %arg3[%c0_66, %c0_67] : memref<1x128xf32, #tpu.memory_space<vmem>>, vector<1x128xf32>
    %c0_i32_68 = arith.constant 0 : i32
    %c8_i32_69 = arith.constant 8 : i32
    %115 = arith.addi %c0_i32_68, %c8_i32_69 : i32
    %c1_i32_70 = arith.constant 1 : i32
    scf.for %arg7 = %c0_i32_68 to %115 step %c1_i32_70  : i32 {
      %c1_i32_72 = arith.constant 1 : i32
      %116 = arith.muli %arg7, %c1_i32_72 : i32
      %c0_i32_73 = arith.constant 0 : i32
      %117 = arith.addi %c0_i32_73, %116 : i32
      %c1_i32_74 = arith.constant 1 : i32
      %118 = arith.andi %117, %c1_i32_74 : i32
      %c0_i32_75 = arith.constant 0 : i32
      %c0_i32_76 = arith.constant 0 : i32
      %119 = tpu.memref_slice %arg2[%c0_i32_75, %c0_i32_76] : memref<100x128xf32, #tpu.memory_space<any>> -> memref<1x128xf32, #tpu.memory_space<any>>
      %c0_i32_77 = arith.constant 0 : i32
      %c0_i32_78 = arith.constant 0 : i32
      %120 = tpu.memref_slice %arg5[%118, %c0_i32_77, %c0_i32_78] : memref<2x16x128xf32, #tpu.memory_space<vmem>> -> memref<1x1x128xf32, #tpu.memory_space<vmem>>
      %121 = tpu.memref_squeeze %120 : memref<1x1x128xf32, #tpu.memory_space<vmem>> -> memref<1x128xf32, #tpu.memory_space<vmem>>
      %122 = tpu.memref_slice %arg6[%118] : memref<2x!tpu.dma_semaphore, #tpu.memory_space<semaphore_mem>> -> memref<1x!tpu.dma_semaphore, #tpu.memory_space<semaphore_mem>>
      %123 = tpu.memref_squeeze %122 : memref<1x!tpu.dma_semaphore, #tpu.memory_space<semaphore_mem>> -> memref<!tpu.dma_semaphore, #tpu.memory_space<semaphore_mem>>
      tpu.wait_dma2 semaphore(%123 : memref<!tpu.dma_semaphore, #tpu.memory_space<semaphore_mem>>) src(%119 : memref<1x128xf32, #tpu.memory_space<any>>) dst(%121 : memref<1x128xf32, #tpu.memory_space<vmem>>)
      %c0_i32_79 = arith.constant 0 : i32
      %c0_i32_80 = arith.constant 0 : i32
      %124 = tpu.memref_slice %arg2[%c0_i32_79, %c0_i32_80] : memref<100x128xf32, #tpu.memory_space<any>> -> memref<1x128xf32, #tpu.memory_space<any>>
      %c1_i32_81 = arith.constant 1 : i32
      %c0_i32_82 = arith.constant 0 : i32
      %125 = tpu.memref_slice %arg5[%118, %c1_i32_81, %c0_i32_82] : memref<2x16x128xf32, #tpu.memory_space<vmem>> -> memref<1x1x128xf32, #tpu.memory_space<vmem>>
      %126 = tpu.memref_squeeze %125 : memref<1x1x128xf32, #tpu.memory_space<vmem>> -> memref<1x128xf32, #tpu.memory_space<vmem>>
      %127 = tpu.memref_slice %arg6[%118] : memref<2x!tpu.dma_semaphore, #tpu.memory_space<semaphore_mem>> -> memref<1x!tpu.dma_semaphore, #tpu.memory_space<semaphore_mem>>
      %128 = tpu.memref_squeeze %127 : memref<1x!tpu.dma_semaphore, #tpu.memory_space<semaphore_mem>> -> memref<!tpu.dma_semaphore, #tpu.memory_space<semaphore_mem>>
      tpu.wait_dma2 semaphore(%128 : memref<!tpu.dma_semaphore, #tpu.memory_space<semaphore_mem>>) src(%124 : memref<1x128xf32, #tpu.memory_space<any>>) dst(%126 : memref<1x128xf32, #tpu.memory_space<vmem>>)
      %c0_i32_83 = arith.constant 0 : i32
      %c0_i32_84 = arith.constant 0 : i32
      %129 = tpu.memref_slice %arg2[%c0_i32_83, %c0_i32_84] : memref<100x128xf32, #tpu.memory_space<any>> -> memref<1x128xf32, #tpu.memory_space<any>>
      %c2_i32_85 = arith.constant 2 : i32
      %c0_i32_86 = arith.constant 0 : i32
      %130 = tpu.memref_slice %arg5[%118, %c2_i32_85, %c0_i32_86] : memref<2x16x128xf32, #tpu.memory_space<vmem>> -> memref<1x1x128xf32, #tpu.memory_space<vmem>>
      %131 = tpu.memref_squeeze %130 : memref<1x1x128xf32, #tpu.memory_space<vmem>> -> memref<1x128xf32, #tpu.memory_space<vmem>>
      %132 = tpu.memref_slice %arg6[%118] : memref<2x!tpu.dma_semaphore, #tpu.memory_space<semaphore_mem>> -> memref<1x!tpu.dma_semaphore, #tpu.memory_space<semaphore_mem>>
      %133 = tpu.memref_squeeze %132 : memref<1x!tpu.dma_semaphore, #tpu.memory_space<semaphore_mem>> -> memref<!tpu.dma_semaphore, #tpu.memory_space<semaphore_mem>>
      tpu.wait_dma2 semaphore(%133 : memref<!tpu.dma_semaphore, #tpu.memory_space<semaphore_mem>>) src(%129 : memref<1x128xf32, #tpu.memory_space<any>>) dst(%131 : memref<1x128xf32, #tpu.memory_space<vmem>>)
      %c0_i32_87 = arith.constant 0 : i32
      %c0_i32_88 = arith.constant 0 : i32
      %134 = tpu.memref_slice %arg2[%c0_i32_87, %c0_i32_88] : memref<100x128xf32, #tpu.memory_space<any>> -> memref<1x128xf32, #tpu.memory_space<any>>
      %c3_i32_89 = arith.constant 3 : i32
      %c0_i32_90 = arith.constant 0 : i32
      %135 = tpu.memref_slice %arg5[%118, %c3_i32_89, %c0_i32_90] : memref<2x16x128xf32, #tpu.memory_space<vmem>> -> memref<1x1x128xf32, #tpu.memory_space<vmem>>
      %136 = tpu.memref_squeeze %135 : memref<1x1x128xf32, #tpu.memory_space<vmem>> -> memref<1x128xf32, #tpu.memory_space<vmem>>
      %137 = tpu.memref_slice %arg6[%118] : memref<2x!tpu.dma_semaphore, #tpu.memory_space<semaphore_mem>> -> memref<1x!tpu.dma_semaphore, #tpu.memory_space<semaphore_mem>>
      %138 = tpu.memref_squeeze %137 : memref<1x!tpu.dma_semaphore, #tpu.memory_space<semaphore_mem>> -> memref<!tpu.dma_semaphore, #tpu.memory_space<semaphore_mem>>
      tpu.wait_dma2 semaphore(%138 : memref<!tpu.dma_semaphore, #tpu.memory_space<semaphore_mem>>) src(%134 : memref<1x128xf32, #tpu.memory_space<any>>) dst(%136 : memref<1x128xf32, #tpu.memory_space<vmem>>)
      %c0_i32_91 = arith.constant 0 : i32
      %c0_i32_92 = arith.constant 0 : i32
      %139 = tpu.memref_slice %arg2[%c0_i32_91, %c0_i32_92] : memref<100x128xf32, #tpu.memory_space<any>> -> memref<1x128xf32, #tpu.memory_space<any>>
      %c4_i32_93 = arith.constant 4 : i32
      %c0_i32_94 = arith.constant 0 : i32
      %140 = tpu.memref_slice %arg5[%118, %c4_i32_93, %c0_i32_94] : memref<2x16x128xf32, #tpu.memory_space<vmem>> -> memref<1x1x128xf32, #tpu.memory_space<vmem>>
      %141 = tpu.memref_squeeze %140 : memref<1x1x128xf32, #tpu.memory_space<vmem>> -> memref<1x128xf32, #tpu.memory_space<vmem>>
      %142 = tpu.memref_slice %arg6[%118] : memref<2x!tpu.dma_semaphore, #tpu.memory_space<semaphore_mem>> -> memref<1x!tpu.dma_semaphore, #tpu.memory_space<semaphore_mem>>
      %143 = tpu.memref_squeeze %142 : memref<1x!tpu.dma_semaphore, #tpu.memory_space<semaphore_mem>> -> memref<!tpu.dma_semaphore, #tpu.memory_space<semaphore_mem>>
      tpu.wait_dma2 semaphore(%143 : memref<!tpu.dma_semaphore, #tpu.memory_space<semaphore_mem>>) src(%139 : memref<1x128xf32, #tpu.memory_space<any>>) dst(%141 : memref<1x128xf32, #tpu.memory_space<vmem>>)
      %c0_i32_95 = arith.constant 0 : i32
      %c0_i32_96 = arith.constant 0 : i32
      %144 = tpu.memref_slice %arg2[%c0_i32_95, %c0_i32_96] : memref<100x128xf32, #tpu.memory_space<any>> -> memref<1x128xf32, #tpu.memory_space<any>>
      %c5_i32_97 = arith.constant 5 : i32
      %c0_i32_98 = arith.constant 0 : i32
      %145 = tpu.memref_slice %arg5[%118, %c5_i32_97, %c0_i32_98] : memref<2x16x128xf32, #tpu.memory_space<vmem>> -> memref<1x1x128xf32, #tpu.memory_space<vmem>>
      %146 = tpu.memref_squeeze %145 : memref<1x1x128xf32, #tpu.memory_space<vmem>> -> memref<1x128xf32, #tpu.memory_space<vmem>>
      %147 = tpu.memref_slice %arg6[%118] : memref<2x!tpu.dma_semaphore, #tpu.memory_space<semaphore_mem>> -> memref<1x!tpu.dma_semaphore, #tpu.memory_space<semaphore_mem>>
      %148 = tpu.memref_squeeze %147 : memref<1x!tpu.dma_semaphore, #tpu.memory_space<semaphore_mem>> -> memref<!tpu.dma_semaphore, #tpu.memory_space<semaphore_mem>>
      tpu.wait_dma2 semaphore(%148 : memref<!tpu.dma_semaphore, #tpu.memory_space<semaphore_mem>>) src(%144 : memref<1x128xf32, #tpu.memory_space<any>>) dst(%146 : memref<1x128xf32, #tpu.memory_space<vmem>>)
      %c0_i32_99 = arith.constant 0 : i32
      %c0_i32_100 = arith.constant 0 : i32
      %149 = tpu.memref_slice %arg2[%c0_i32_99, %c0_i32_100] : memref<100x128xf32, #tpu.memory_space<any>> -> memref<1x128xf32, #tpu.memory_space<any>>
      %c6_i32_101 = arith.constant 6 : i32
      %c0_i32_102 = arith.constant 0 : i32
      %150 = tpu.memref_slice %arg5[%118, %c6_i32_101, %c0_i32_102] : memref<2x16x128xf32, #tpu.memory_space<vmem>> -> memref<1x1x128xf32, #tpu.memory_space<vmem>>
      %151 = tpu.memref_squeeze %150 : memref<1x1x128xf32, #tpu.memory_space<vmem>> -> memref<1x128xf32, #tpu.memory_space<vmem>>
      %152 = tpu.memref_slice %arg6[%118] : memref<2x!tpu.dma_semaphore, #tpu.memory_space<semaphore_mem>> -> memref<1x!tpu.dma_semaphore, #tpu.memory_space<semaphore_mem>>
      %153 = tpu.memref_squeeze %152 : memref<1x!tpu.dma_semaphore, #tpu.memory_space<semaphore_mem>> -> memref<!tpu.dma_semaphore, #tpu.memory_space<semaphore_mem>>
      tpu.wait_dma2 semaphore(%153 : memref<!tpu.dma_semaphore, #tpu.memory_space<semaphore_mem>>) src(%149 : memref<1x128xf32, #tpu.memory_space<any>>) dst(%151 : memref<1x128xf32, #tpu.memory_space<vmem>>)
      %c0_i32_103 = arith.constant 0 : i32
      %c0_i32_104 = arith.constant 0 : i32
      %154 = tpu.memref_slice %arg2[%c0_i32_103, %c0_i32_104] : memref<100x128xf32, #tpu.memory_space<any>> -> memref<1x128xf32, #tpu.memory_space<any>>
      %c7_i32_105 = arith.constant 7 : i32
      %c0_i32_106 = arith.constant 0 : i32
      %155 = tpu.memref_slice %arg5[%118, %c7_i32_105, %c0_i32_106] : memref<2x16x128xf32, #tpu.memory_space<vmem>> -> memref<1x1x128xf32, #tpu.memory_space<vmem>>
      %156 = tpu.memref_squeeze %155 : memref<1x1x128xf32, #tpu.memory_space<vmem>> -> memref<1x128xf32, #tpu.memory_space<vmem>>
      %157 = tpu.memref_slice %arg6[%118] : memref<2x!tpu.dma_semaphore, #tpu.memory_space<semaphore_mem>> -> memref<1x!tpu.dma_semaphore, #tpu.memory_space<semaphore_mem>>
      %158 = tpu.memref_squeeze %157 : memref<1x!tpu.dma_semaphore, #tpu.memory_space<semaphore_mem>> -> memref<!tpu.dma_semaphore, #tpu.memory_space<semaphore_mem>>
      tpu.wait_dma2 semaphore(%158 : memref<!tpu.dma_semaphore, #tpu.memory_space<semaphore_mem>>) src(%154 : memref<1x128xf32, #tpu.memory_space<any>>) dst(%156 : memref<1x128xf32, #tpu.memory_space<vmem>>)
      %c0_i32_107 = arith.constant 0 : i32
      %c0_i32_108 = arith.constant 0 : i32
      %159 = tpu.memref_slice %arg2[%c0_i32_107, %c0_i32_108] : memref<100x128xf32, #tpu.memory_space<any>> -> memref<1x128xf32, #tpu.memory_space<any>>
      %c8_i32_109 = arith.constant 8 : i32
      %c0_i32_110 = arith.constant 0 : i32
      %160 = tpu.memref_slice %arg5[%118, %c8_i32_109, %c0_i32_110] : memref<2x16x128xf32, #tpu.memory_space<vmem>> -> memref<1x1x128xf32, #tpu.memory_space<vmem>>
      %161 = tpu.memref_squeeze %160 : memref<1x1x128xf32, #tpu.memory_space<vmem>> -> memref<1x128xf32, #tpu.memory_space<vmem>>
      %162 = tpu.memref_slice %arg6[%118] : memref<2x!tpu.dma_semaphore, #tpu.memory_space<semaphore_mem>> -> memref<1x!tpu.dma_semaphore, #tpu.memory_space<semaphore_mem>>
      %163 = tpu.memref_squeeze %162 : memref<1x!tpu.dma_semaphore, #tpu.memory_space<semaphore_mem>> -> memref<!tpu.dma_semaphore, #tpu.memory_space<semaphore_mem>>
      tpu.wait_dma2 semaphore(%163 : memref<!tpu.dma_semaphore, #tpu.memory_space<semaphore_mem>>) src(%159 : memref<1x128xf32, #tpu.memory_space<any>>) dst(%161 : memref<1x128xf32, #tpu.memory_space<vmem>>)
      %c0_i32_111 = arith.constant 0 : i32
      %c0_i32_112 = arith.constant 0 : i32
      %164 = tpu.memref_slice %arg2[%c0_i32_111, %c0_i32_112] : memref<100x128xf32, #tpu.memory_space<any>> -> memref<1x128xf32, #tpu.memory_space<any>>
      %c9_i32_113 = arith.constant 9 : i32
      %c0_i32_114 = arith.constant 0 : i32
      %165 = tpu.memref_slice %arg5[%118, %c9_i32_113, %c0_i32_114] : memref<2x16x128xf32, #tpu.memory_space<vmem>> -> memref<1x1x128xf32, #tpu.memory_space<vmem>>
      %166 = tpu.memref_squeeze %165 : memref<1x1x128xf32, #tpu.memory_space<vmem>> -> memref<1x128xf32, #tpu.memory_space<vmem>>
      %167 = tpu.memref_slice %arg6[%118] : memref<2x!tpu.dma_semaphore, #tpu.memory_space<semaphore_mem>> -> memref<1x!tpu.dma_semaphore, #tpu.memory_space<semaphore_mem>>
      %168 = tpu.memref_squeeze %167 : memref<1x!tpu.dma_semaphore, #tpu.memory_space<semaphore_mem>> -> memref<!tpu.dma_semaphore, #tpu.memory_space<semaphore_mem>>
      tpu.wait_dma2 semaphore(%168 : memref<!tpu.dma_semaphore, #tpu.memory_space<semaphore_mem>>) src(%164 : memref<1x128xf32, #tpu.memory_space<any>>) dst(%166 : memref<1x128xf32, #tpu.memory_space<vmem>>)
      %c0_i32_115 = arith.constant 0 : i32
      %c0_i32_116 = arith.constant 0 : i32
      %169 = tpu.memref_slice %arg2[%c0_i32_115, %c0_i32_116] : memref<100x128xf32, #tpu.memory_space<any>> -> memref<1x128xf32, #tpu.memory_space<any>>
      %c10_i32_117 = arith.constant 10 : i32
      %c0_i32_118 = arith.constant 0 : i32
      %170 = tpu.memref_slice %arg5[%118, %c10_i32_117, %c0_i32_118] : memref<2x16x128xf32, #tpu.memory_space<vmem>> -> memref<1x1x128xf32, #tpu.memory_space<vmem>>
      %171 = tpu.memref_squeeze %170 : memref<1x1x128xf32, #tpu.memory_space<vmem>> -> memref<1x128xf32, #tpu.memory_space<vmem>>
      %172 = tpu.memref_slice %arg6[%118] : memref<2x!tpu.dma_semaphore, #tpu.memory_space<semaphore_mem>> -> memref<1x!tpu.dma_semaphore, #tpu.memory_space<semaphore_mem>>
      %173 = tpu.memref_squeeze %172 : memref<1x!tpu.dma_semaphore, #tpu.memory_space<semaphore_mem>> -> memref<!tpu.dma_semaphore, #tpu.memory_space<semaphore_mem>>
      tpu.wait_dma2 semaphore(%173 : memref<!tpu.dma_semaphore, #tpu.memory_space<semaphore_mem>>) src(%169 : memref<1x128xf32, #tpu.memory_space<any>>) dst(%171 : memref<1x128xf32, #tpu.memory_space<vmem>>)
      %c0_i32_119 = arith.constant 0 : i32
      %c0_i32_120 = arith.constant 0 : i32
      %174 = tpu.memref_slice %arg2[%c0_i32_119, %c0_i32_120] : memref<100x128xf32, #tpu.memory_space<any>> -> memref<1x128xf32, #tpu.memory_space<any>>
      %c11_i32_121 = arith.constant 11 : i32
      %c0_i32_122 = arith.constant 0 : i32
      %175 = tpu.memref_slice %arg5[%118, %c11_i32_121, %c0_i32_122] : memref<2x16x128xf32, #tpu.memory_space<vmem>> -> memref<1x1x128xf32, #tpu.memory_space<vmem>>
      %176 = tpu.memref_squeeze %175 : memref<1x1x128xf32, #tpu.memory_space<vmem>> -> memref<1x128xf32, #tpu.memory_space<vmem>>
      %177 = tpu.memref_slice %arg6[%118] : memref<2x!tpu.dma_semaphore, #tpu.memory_space<semaphore_mem>> -> memref<1x!tpu.dma_semaphore, #tpu.memory_space<semaphore_mem>>
      %178 = tpu.memref_squeeze %177 : memref<1x!tpu.dma_semaphore, #tpu.memory_space<semaphore_mem>> -> memref<!tpu.dma_semaphore, #tpu.memory_space<semaphore_mem>>
      tpu.wait_dma2 semaphore(%178 : memref<!tpu.dma_semaphore, #tpu.memory_space<semaphore_mem>>) src(%174 : memref<1x128xf32, #tpu.memory_space<any>>) dst(%176 : memref<1x128xf32, #tpu.memory_space<vmem>>)
      %c0_i32_123 = arith.constant 0 : i32
      %c0_i32_124 = arith.constant 0 : i32
      %179 = tpu.memref_slice %arg2[%c0_i32_123, %c0_i32_124] : memref<100x128xf32, #tpu.memory_space<any>> -> memref<1x128xf32, #tpu.memory_space<any>>
      %c12_i32_125 = arith.constant 12 : i32
      %c0_i32_126 = arith.constant 0 : i32
      %180 = tpu.memref_slice %arg5[%118, %c12_i32_125, %c0_i32_126] : memref<2x16x128xf32, #tpu.memory_space<vmem>> -> memref<1x1x128xf32, #tpu.memory_space<vmem>>
      %181 = tpu.memref_squeeze %180 : memref<1x1x128xf32, #tpu.memory_space<vmem>> -> memref<1x128xf32, #tpu.memory_space<vmem>>
      %182 = tpu.memref_slice %arg6[%118] : memref<2x!tpu.dma_semaphore, #tpu.memory_space<semaphore_mem>> -> memref<1x!tpu.dma_semaphore, #tpu.memory_space<semaphore_mem>>
      %183 = tpu.memref_squeeze %182 : memref<1x!tpu.dma_semaphore, #tpu.memory_space<semaphore_mem>> -> memref<!tpu.dma_semaphore, #tpu.memory_space<semaphore_mem>>
      tpu.wait_dma2 semaphore(%183 : memref<!tpu.dma_semaphore, #tpu.memory_space<semaphore_mem>>) src(%179 : memref<1x128xf32, #tpu.memory_space<any>>) dst(%181 : memref<1x128xf32, #tpu.memory_space<vmem>>)
      %c0_i32_127 = arith.constant 0 : i32
      %c0_i32_128 = arith.constant 0 : i32
      %184 = tpu.memref_slice %arg2[%c0_i32_127, %c0_i32_128] : memref<100x128xf32, #tpu.memory_space<any>> -> memref<1x128xf32, #tpu.memory_space<any>>
      %c13_i32_129 = arith.constant 13 : i32
      %c0_i32_130 = arith.constant 0 : i32
      %185 = tpu.memref_slice %arg5[%118, %c13_i32_129, %c0_i32_130] : memref<2x16x128xf32, #tpu.memory_space<vmem>> -> memref<1x1x128xf32, #tpu.memory_space<vmem>>
      %186 = tpu.memref_squeeze %185 : memref<1x1x128xf32, #tpu.memory_space<vmem>> -> memref<1x128xf32, #tpu.memory_space<vmem>>
      %187 = tpu.memref_slice %arg6[%118] : memref<2x!tpu.dma_semaphore, #tpu.memory_space<semaphore_mem>> -> memref<1x!tpu.dma_semaphore, #tpu.memory_space<semaphore_mem>>
      %188 = tpu.memref_squeeze %187 : memref<1x!tpu.dma_semaphore, #tpu.memory_space<semaphore_mem>> -> memref<!tpu.dma_semaphore, #tpu.memory_space<semaphore_mem>>
      tpu.wait_dma2 semaphore(%188 : memref<!tpu.dma_semaphore, #tpu.memory_space<semaphore_mem>>) src(%184 : memref<1x128xf32, #tpu.memory_space<any>>) dst(%186 : memref<1x128xf32, #tpu.memory_space<vmem>>)
      %c0_i32_131 = arith.constant 0 : i32
      %c0_i32_132 = arith.constant 0 : i32
      %189 = tpu.memref_slice %arg2[%c0_i32_131, %c0_i32_132] : memref<100x128xf32, #tpu.memory_space<any>> -> memref<1x128xf32, #tpu.memory_space<any>>
      %c14_i32_133 = arith.constant 14 : i32
      %c0_i32_134 = arith.constant 0 : i32
      %190 = tpu.memref_slice %arg5[%118, %c14_i32_133, %c0_i32_134] : memref<2x16x128xf32, #tpu.memory_space<vmem>> -> memref<1x1x128xf32, #tpu.memory_space<vmem>>
      %191 = tpu.memref_squeeze %190 : memref<1x1x128xf32, #tpu.memory_space<vmem>> -> memref<1x128xf32, #tpu.memory_space<vmem>>
      %192 = tpu.memref_slice %arg6[%118] : memref<2x!tpu.dma_semaphore, #tpu.memory_space<semaphore_mem>> -> memref<1x!tpu.dma_semaphore, #tpu.memory_space<semaphore_mem>>
      %193 = tpu.memref_squeeze %192 : memref<1x!tpu.dma_semaphore, #tpu.memory_space<semaphore_mem>> -> memref<!tpu.dma_semaphore, #tpu.memory_space<semaphore_mem>>
      tpu.wait_dma2 semaphore(%193 : memref<!tpu.dma_semaphore, #tpu.memory_space<semaphore_mem>>) src(%189 : memref<1x128xf32, #tpu.memory_space<any>>) dst(%191 : memref<1x128xf32, #tpu.memory_space<vmem>>)
      %c0_i32_135 = arith.constant 0 : i32
      %c0_i32_136 = arith.constant 0 : i32
      %194 = tpu.memref_slice %arg2[%c0_i32_135, %c0_i32_136] : memref<100x128xf32, #tpu.memory_space<any>> -> memref<1x128xf32, #tpu.memory_space<any>>
      %c15_i32_137 = arith.constant 15 : i32
      %c0_i32_138 = arith.constant 0 : i32
      %195 = tpu.memref_slice %arg5[%118, %c15_i32_137, %c0_i32_138] : memref<2x16x128xf32, #tpu.memory_space<vmem>> -> memref<1x1x128xf32, #tpu.memory_space<vmem>>
      %196 = tpu.memref_squeeze %195 : memref<1x1x128xf32, #tpu.memory_space<vmem>> -> memref<1x128xf32, #tpu.memory_space<vmem>>
      %197 = tpu.memref_slice %arg6[%118] : memref<2x!tpu.dma_semaphore, #tpu.memory_space<semaphore_mem>> -> memref<1x!tpu.dma_semaphore, #tpu.memory_space<semaphore_mem>>
      %198 = tpu.memref_squeeze %197 : memref<1x!tpu.dma_semaphore, #tpu.memory_space<semaphore_mem>> -> memref<!tpu.dma_semaphore, #tpu.memory_space<semaphore_mem>>
      tpu.wait_dma2 semaphore(%198 : memref<!tpu.dma_semaphore, #tpu.memory_space<semaphore_mem>>) src(%194 : memref<1x128xf32, #tpu.memory_space<any>>) dst(%196 : memref<1x128xf32, #tpu.memory_space<vmem>>)
      %c1_i32_139 = arith.constant 1 : i32
      %199 = arith.addi %117, %c1_i32_139 : i32
      %c8_i32_140 = arith.constant 8 : i32
      %200 = arith.cmpi slt, %199, %c8_i32_140 : i32
      %201 = arith.extui %200 : i1 to i32
      %c0_i32_141 = arith.constant 0 : i32
      %202 = arith.cmpi ne, %201, %c0_i32_141 : i32
      scf.if %202 {
        %c1_i32_145 = arith.constant 1 : i32
        %211 = arith.addi %117, %c1_i32_145 : i32
        %c1_i32_146 = arith.constant 1 : i32
        %212 = arith.subi %c1_i32_146, %118 : i32
        %c8_i32_147 = arith.constant 8 : i32
        %213 = arith.muli %arg0, %c8_i32_147 : i32
        %214 = arith.addi %213, %211 : i32
        %215 = arith.index_cast %214 : i32 to index
        %c0_148 = arith.constant 0 : index
        %216 = memref.load %arg1[%215, %c0_148] : memref<16x16xi32, #tpu.memory_space<smem>>
        %c0_i32_149 = arith.constant 0 : i32
        %217 = tpu.memref_slice %arg2[%216, %c0_i32_149] : memref<100x128xf32, #tpu.memory_space<any>> -> memref<1x128xf32, #tpu.memory_space<any>>
        %c0_i32_150 = arith.constant 0 : i32
        %c0_i32_151 = arith.constant 0 : i32
        %218 = tpu.memref_slice %arg5[%212, %c0_i32_150, %c0_i32_151] : memref<2x16x128xf32, #tpu.memory_space<vmem>> -> memref<1x1x128xf32, #tpu.memory_space<vmem>>
        %219 = tpu.memref_squeeze %218 : memref<1x1x128xf32, #tpu.memory_space<vmem>> -> memref<1x128xf32, #tpu.memory_space<vmem>>
        %220 = tpu.memref_slice %arg6[%212] : memref<2x!tpu.dma_semaphore, #tpu.memory_space<semaphore_mem>> -> memref<1x!tpu.dma_semaphore, #tpu.memory_space<semaphore_mem>>
        %221 = tpu.memref_squeeze %220 : memref<1x!tpu.dma_semaphore, #tpu.memory_space<semaphore_mem>> -> memref<!tpu.dma_semaphore, #tpu.memory_space<semaphore_mem>>
        tpu.enqueue_dma source(%217 : memref<1x128xf32, #tpu.memory_space<any>>) target(%219 : memref<1x128xf32, #tpu.memory_space<vmem>>) target_semaphore(%221 : memref<!tpu.dma_semaphore, #tpu.memory_space<semaphore_mem>>)
        %222 = arith.index_cast %214 : i32 to index
        %c1_152 = arith.constant 1 : index
        %223 = memref.load %arg1[%222, %c1_152] : memref<16x16xi32, #tpu.memory_space<smem>>
        %c0_i32_153 = arith.constant 0 : i32
        %224 = tpu.memref_slice %arg2[%223, %c0_i32_153] : memref<100x128xf32, #tpu.memory_space<any>> -> memref<1x128xf32, #tpu.memory_space<any>>
        %c1_i32_154 = arith.constant 1 : i32
        %c0_i32_155 = arith.constant 0 : i32
        %225 = tpu.memref_slice %arg5[%212, %c1_i32_154, %c0_i32_155] : memref<2x16x128xf32, #tpu.memory_space<vmem>> -> memref<1x1x128xf32, #tpu.memory_space<vmem>>
        %226 = tpu.memref_squeeze %225 : memref<1x1x128xf32, #tpu.memory_space<vmem>> -> memref<1x128xf32, #tpu.memory_space<vmem>>
        %227 = tpu.memref_slice %arg6[%212] : memref<2x!tpu.dma_semaphore, #tpu.memory_space<semaphore_mem>> -> memref<1x!tpu.dma_semaphore, #tpu.memory_space<semaphore_mem>>
        %228 = tpu.memref_squeeze %227 : memref<1x!tpu.dma_semaphore, #tpu.memory_space<semaphore_mem>> -> memref<!tpu.dma_semaphore, #tpu.memory_space<semaphore_mem>>
        tpu.enqueue_dma source(%224 : memref<1x128xf32, #tpu.memory_space<any>>) target(%226 : memref<1x128xf32, #tpu.memory_space<vmem>>) target_semaphore(%228 : memref<!tpu.dma_semaphore, #tpu.memory_space<semaphore_mem>>)
        %229 = arith.index_cast %214 : i32 to index
        %c2_156 = arith.constant 2 : index
        %230 = memref.load %arg1[%229, %c2_156] : memref<16x16xi32, #tpu.memory_space<smem>>
        %c0_i32_157 = arith.constant 0 : i32
        %231 = tpu.memref_slice %arg2[%230, %c0_i32_157] : memref<100x128xf32, #tpu.memory_space<any>> -> memref<1x128xf32, #tpu.memory_space<any>>
        %c2_i32_158 = arith.constant 2 : i32
        %c0_i32_159 = arith.constant 0 : i32
        %232 = tpu.memref_slice %arg5[%212, %c2_i32_158, %c0_i32_159] : memref<2x16x128xf32, #tpu.memory_space<vmem>> -> memref<1x1x128xf32, #tpu.memory_space<vmem>>
        %233 = tpu.memref_squeeze %232 : memref<1x1x128xf32, #tpu.memory_space<vmem>> -> memref<1x128xf32, #tpu.memory_space<vmem>>
        %234 = tpu.memref_slice %arg6[%212] : memref<2x!tpu.dma_semaphore, #tpu.memory_space<semaphore_mem>> -> memref<1x!tpu.dma_semaphore, #tpu.memory_space<semaphore_mem>>
        %235 = tpu.memref_squeeze %234 : memref<1x!tpu.dma_semaphore, #tpu.memory_space<semaphore_mem>> -> memref<!tpu.dma_semaphore, #tpu.memory_space<semaphore_mem>>
        tpu.enqueue_dma source(%231 : memref<1x128xf32, #tpu.memory_space<any>>) target(%233 : memref<1x128xf32, #tpu.memory_space<vmem>>) target_semaphore(%235 : memref<!tpu.dma_semaphore, #tpu.memory_space<semaphore_mem>>)
        %236 = arith.index_cast %214 : i32 to index
        %c3_160 = arith.constant 3 : index
        %237 = memref.load %arg1[%236, %c3_160] : memref<16x16xi32, #tpu.memory_space<smem>>
        %c0_i32_161 = arith.constant 0 : i32
        %238 = tpu.memref_slice %arg2[%237, %c0_i32_161] : memref<100x128xf32, #tpu.memory_space<any>> -> memref<1x128xf32, #tpu.memory_space<any>>
        %c3_i32_162 = arith.constant 3 : i32
        %c0_i32_163 = arith.constant 0 : i32
        %239 = tpu.memref_slice %arg5[%212, %c3_i32_162, %c0_i32_163] : memref<2x16x128xf32, #tpu.memory_space<vmem>> -> memref<1x1x128xf32, #tpu.memory_space<vmem>>
        %240 = tpu.memref_squeeze %239 : memref<1x1x128xf32, #tpu.memory_space<vmem>> -> memref<1x128xf32, #tpu.memory_space<vmem>>
        %241 = tpu.memref_slice %arg6[%212] : memref<2x!tpu.dma_semaphore, #tpu.memory_space<semaphore_mem>> -> memref<1x!tpu.dma_semaphore, #tpu.memory_space<semaphore_mem>>
        %242 = tpu.memref_squeeze %241 : memref<1x!tpu.dma_semaphore, #tpu.memory_space<semaphore_mem>> -> memref<!tpu.dma_semaphore, #tpu.memory_space<semaphore_mem>>
        tpu.enqueue_dma source(%238 : memref<1x128xf32, #tpu.memory_space<any>>) target(%240 : memref<1x128xf32, #tpu.memory_space<vmem>>) target_semaphore(%242 : memref<!tpu.dma_semaphore, #tpu.memory_space<semaphore_mem>>)
        %243 = arith.index_cast %214 : i32 to index
        %c4_164 = arith.constant 4 : index
        %244 = memref.load %arg1[%243, %c4_164] : memref<16x16xi32, #tpu.memory_space<smem>>
        %c0_i32_165 = arith.constant 0 : i32
        %245 = tpu.memref_slice %arg2[%244, %c0_i32_165] : memref<100x128xf32, #tpu.memory_space<any>> -> memref<1x128xf32, #tpu.memory_space<any>>
        %c4_i32_166 = arith.constant 4 : i32
        %c0_i32_167 = arith.constant 0 : i32
        %246 = tpu.memref_slice %arg5[%212, %c4_i32_166, %c0_i32_167] : memref<2x16x128xf32, #tpu.memory_space<vmem>> -> memref<1x1x128xf32, #tpu.memory_space<vmem>>
        %247 = tpu.memref_squeeze %246 : memref<1x1x128xf32, #tpu.memory_space<vmem>> -> memref<1x128xf32, #tpu.memory_space<vmem>>
        %248 = tpu.memref_slice %arg6[%212] : memref<2x!tpu.dma_semaphore, #tpu.memory_space<semaphore_mem>> -> memref<1x!tpu.dma_semaphore, #tpu.memory_space<semaphore_mem>>
        %249 = tpu.memref_squeeze %248 : memref<1x!tpu.dma_semaphore, #tpu.memory_space<semaphore_mem>> -> memref<!tpu.dma_semaphore, #tpu.memory_space<semaphore_mem>>
        tpu.enqueue_dma source(%245 : memref<1x128xf32, #tpu.memory_space<any>>) target(%247 : memref<1x128xf32, #tpu.memory_space<vmem>>) target_semaphore(%249 : memref<!tpu.dma_semaphore, #tpu.memory_space<semaphore_mem>>)
        %250 = arith.index_cast %214 : i32 to index
        %c5_168 = arith.constant 5 : index
        %251 = memref.load %arg1[%250, %c5_168] : memref<16x16xi32, #tpu.memory_space<smem>>
        %c0_i32_169 = arith.constant 0 : i32
        %252 = tpu.memref_slice %arg2[%251, %c0_i32_169] : memref<100x128xf32, #tpu.memory_space<any>> -> memref<1x128xf32, #tpu.memory_space<any>>
        %c5_i32_170 = arith.constant 5 : i32
        %c0_i32_171 = arith.constant 0 : i32
        %253 = tpu.memref_slice %arg5[%212, %c5_i32_170, %c0_i32_171] : memref<2x16x128xf32, #tpu.memory_space<vmem>> -> memref<1x1x128xf32, #tpu.memory_space<vmem>>
        %254 = tpu.memref_squeeze %253 : memref<1x1x128xf32, #tpu.memory_space<vmem>> -> memref<1x128xf32, #tpu.memory_space<vmem>>
        %255 = tpu.memref_slice %arg6[%212] : memref<2x!tpu.dma_semaphore, #tpu.memory_space<semaphore_mem>> -> memref<1x!tpu.dma_semaphore, #tpu.memory_space<semaphore_mem>>
        %256 = tpu.memref_squeeze %255 : memref<1x!tpu.dma_semaphore, #tpu.memory_space<semaphore_mem>> -> memref<!tpu.dma_semaphore, #tpu.memory_space<semaphore_mem>>
        tpu.enqueue_dma source(%252 : memref<1x128xf32, #tpu.memory_space<any>>) target(%254 : memref<1x128xf32, #tpu.memory_space<vmem>>) target_semaphore(%256 : memref<!tpu.dma_semaphore, #tpu.memory_space<semaphore_mem>>)
        %257 = arith.index_cast %214 : i32 to index
        %c6_172 = arith.constant 6 : index
        %258 = memref.load %arg1[%257, %c6_172] : memref<16x16xi32, #tpu.memory_space<smem>>
        %c0_i32_173 = arith.constant 0 : i32
        %259 = tpu.memref_slice %arg2[%258, %c0_i32_173] : memref<100x128xf32, #tpu.memory_space<any>> -> memref<1x128xf32, #tpu.memory_space<any>>
        %c6_i32_174 = arith.constant 6 : i32
        %c0_i32_175 = arith.constant 0 : i32
        %260 = tpu.memref_slice %arg5[%212, %c6_i32_174, %c0_i32_175] : memref<2x16x128xf32, #tpu.memory_space<vmem>> -> memref<1x1x128xf32, #tpu.memory_space<vmem>>
        %261 = tpu.memref_squeeze %260 : memref<1x1x128xf32, #tpu.memory_space<vmem>> -> memref<1x128xf32, #tpu.memory_space<vmem>>
        %262 = tpu.memref_slice %arg6[%212] : memref<2x!tpu.dma_semaphore, #tpu.memory_space<semaphore_mem>> -> memref<1x!tpu.dma_semaphore, #tpu.memory_space<semaphore_mem>>
        %263 = tpu.memref_squeeze %262 : memref<1x!tpu.dma_semaphore, #tpu.memory_space<semaphore_mem>> -> memref<!tpu.dma_semaphore, #tpu.memory_space<semaphore_mem>>
        tpu.enqueue_dma source(%259 : memref<1x128xf32, #tpu.memory_space<any>>) target(%261 : memref<1x128xf32, #tpu.memory_space<vmem>>) target_semaphore(%263 : memref<!tpu.dma_semaphore, #tpu.memory_space<semaphore_mem>>)
        %264 = arith.index_cast %214 : i32 to index
        %c7_176 = arith.constant 7 : index
        %265 = memref.load %arg1[%264, %c7_176] : memref<16x16xi32, #tpu.memory_space<smem>>
        %c0_i32_177 = arith.constant 0 : i32
        %266 = tpu.memref_slice %arg2[%265, %c0_i32_177] : memref<100x128xf32, #tpu.memory_space<any>> -> memref<1x128xf32, #tpu.memory_space<any>>
        %c7_i32_178 = arith.constant 7 : i32
        %c0_i32_179 = arith.constant 0 : i32
        %267 = tpu.memref_slice %arg5[%212, %c7_i32_178, %c0_i32_179] : memref<2x16x128xf32, #tpu.memory_space<vmem>> -> memref<1x1x128xf32, #tpu.memory_space<vmem>>
        %268 = tpu.memref_squeeze %267 : memref<1x1x128xf32, #tpu.memory_space<vmem>> -> memref<1x128xf32, #tpu.memory_space<vmem>>
        %269 = tpu.memref_slice %arg6[%212] : memref<2x!tpu.dma_semaphore, #tpu.memory_space<semaphore_mem>> -> memref<1x!tpu.dma_semaphore, #tpu.memory_space<semaphore_mem>>
        %270 = tpu.memref_squeeze %269 : memref<1x!tpu.dma_semaphore, #tpu.memory_space<semaphore_mem>> -> memref<!tpu.dma_semaphore, #tpu.memory_space<semaphore_mem>>
        tpu.enqueue_dma source(%266 : memref<1x128xf32, #tpu.memory_space<any>>) target(%268 : memref<1x128xf32, #tpu.memory_space<vmem>>) target_semaphore(%270 : memref<!tpu.dma_semaphore, #tpu.memory_space<semaphore_mem>>)
        %271 = arith.index_cast %214 : i32 to index
        %c8_180 = arith.constant 8 : index
        %272 = memref.load %arg1[%271, %c8_180] : memref<16x16xi32, #tpu.memory_space<smem>>
        %c0_i32_181 = arith.constant 0 : i32
        %273 = tpu.memref_slice %arg2[%272, %c0_i32_181] : memref<100x128xf32, #tpu.memory_space<any>> -> memref<1x128xf32, #tpu.memory_space<any>>
        %c8_i32_182 = arith.constant 8 : i32
        %c0_i32_183 = arith.constant 0 : i32
        %274 = tpu.memref_slice %arg5[%212, %c8_i32_182, %c0_i32_183] : memref<2x16x128xf32, #tpu.memory_space<vmem>> -> memref<1x1x128xf32, #tpu.memory_space<vmem>>
        %275 = tpu.memref_squeeze %274 : memref<1x1x128xf32, #tpu.memory_space<vmem>> -> memref<1x128xf32, #tpu.memory_space<vmem>>
        %276 = tpu.memref_slice %arg6[%212] : memref<2x!tpu.dma_semaphore, #tpu.memory_space<semaphore_mem>> -> memref<1x!tpu.dma_semaphore, #tpu.memory_space<semaphore_mem>>
        %277 = tpu.memref_squeeze %276 : memref<1x!tpu.dma_semaphore, #tpu.memory_space<semaphore_mem>> -> memref<!tpu.dma_semaphore, #tpu.memory_space<semaphore_mem>>
        tpu.enqueue_dma source(%273 : memref<1x128xf32, #tpu.memory_space<any>>) target(%275 : memref<1x128xf32, #tpu.memory_space<vmem>>) target_semaphore(%277 : memref<!tpu.dma_semaphore, #tpu.memory_space<semaphore_mem>>)
        %278 = arith.index_cast %214 : i32 to index
        %c9_184 = arith.constant 9 : index
        %279 = memref.load %arg1[%278, %c9_184] : memref<16x16xi32, #tpu.memory_space<smem>>
        %c0_i32_185 = arith.constant 0 : i32
        %280 = tpu.memref_slice %arg2[%279, %c0_i32_185] : memref<100x128xf32, #tpu.memory_space<any>> -> memref<1x128xf32, #tpu.memory_space<any>>
        %c9_i32_186 = arith.constant 9 : i32
        %c0_i32_187 = arith.constant 0 : i32
        %281 = tpu.memref_slice %arg5[%212, %c9_i32_186, %c0_i32_187] : memref<2x16x128xf32, #tpu.memory_space<vmem>> -> memref<1x1x128xf32, #tpu.memory_space<vmem>>
        %282 = tpu.memref_squeeze %281 : memref<1x1x128xf32, #tpu.memory_space<vmem>> -> memref<1x128xf32, #tpu.memory_space<vmem>>
        %283 = tpu.memref_slice %arg6[%212] : memref<2x!tpu.dma_semaphore, #tpu.memory_space<semaphore_mem>> -> memref<1x!tpu.dma_semaphore, #tpu.memory_space<semaphore_mem>>
        %284 = tpu.memref_squeeze %283 : memref<1x!tpu.dma_semaphore, #tpu.memory_space<semaphore_mem>> -> memref<!tpu.dma_semaphore, #tpu.memory_space<semaphore_mem>>
        tpu.enqueue_dma source(%280 : memref<1x128xf32, #tpu.memory_space<any>>) target(%282 : memref<1x128xf32, #tpu.memory_space<vmem>>) target_semaphore(%284 : memref<!tpu.dma_semaphore, #tpu.memory_space<semaphore_mem>>)
        %285 = arith.index_cast %214 : i32 to index
        %c10_188 = arith.constant 10 : index
        %286 = memref.load %arg1[%285, %c10_188] : memref<16x16xi32, #tpu.memory_space<smem>>
        %c0_i32_189 = arith.constant 0 : i32
        %287 = tpu.memref_slice %arg2[%286, %c0_i32_189] : memref<100x128xf32, #tpu.memory_space<any>> -> memref<1x128xf32, #tpu.memory_space<any>>
        %c10_i32_190 = arith.constant 10 : i32
        %c0_i32_191 = arith.constant 0 : i32
        %288 = tpu.memref_slice %arg5[%212, %c10_i32_190, %c0_i32_191] : memref<2x16x128xf32, #tpu.memory_space<vmem>> -> memref<1x1x128xf32, #tpu.memory_space<vmem>>
        %289 = tpu.memref_squeeze %288 : memref<1x1x128xf32, #tpu.memory_space<vmem>> -> memref<1x128xf32, #tpu.memory_space<vmem>>
        %290 = tpu.memref_slice %arg6[%212] : memref<2x!tpu.dma_semaphore, #tpu.memory_space<semaphore_mem>> -> memref<1x!tpu.dma_semaphore, #tpu.memory_space<semaphore_mem>>
        %291 = tpu.memref_squeeze %290 : memref<1x!tpu.dma_semaphore, #tpu.memory_space<semaphore_mem>> -> memref<!tpu.dma_semaphore, #tpu.memory_space<semaphore_mem>>
        tpu.enqueue_dma source(%287 : memref<1x128xf32, #tpu.memory_space<any>>) target(%289 : memref<1x128xf32, #tpu.memory_space<vmem>>) target_semaphore(%291 : memref<!tpu.dma_semaphore, #tpu.memory_space<semaphore_mem>>)
        %292 = arith.index_cast %214 : i32 to index
        %c11_192 = arith.constant 11 : index
        %293 = memref.load %arg1[%292, %c11_192] : memref<16x16xi32, #tpu.memory_space<smem>>
        %c0_i32_193 = arith.constant 0 : i32
        %294 = tpu.memref_slice %arg2[%293, %c0_i32_193] : memref<100x128xf32, #tpu.memory_space<any>> -> memref<1x128xf32, #tpu.memory_space<any>>
        %c11_i32_194 = arith.constant 11 : i32
        %c0_i32_195 = arith.constant 0 : i32
        %295 = tpu.memref_slice %arg5[%212, %c11_i32_194, %c0_i32_195] : memref<2x16x128xf32, #tpu.memory_space<vmem>> -> memref<1x1x128xf32, #tpu.memory_space<vmem>>
        %296 = tpu.memref_squeeze %295 : memref<1x1x128xf32, #tpu.memory_space<vmem>> -> memref<1x128xf32, #tpu.memory_space<vmem>>
        %297 = tpu.memref_slice %arg6[%212] : memref<2x!tpu.dma_semaphore, #tpu.memory_space<semaphore_mem>> -> memref<1x!tpu.dma_semaphore, #tpu.memory_space<semaphore_mem>>
        %298 = tpu.memref_squeeze %297 : memref<1x!tpu.dma_semaphore, #tpu.memory_space<semaphore_mem>> -> memref<!tpu.dma_semaphore, #tpu.memory_space<semaphore_mem>>
        tpu.enqueue_dma source(%294 : memref<1x128xf32, #tpu.memory_space<any>>) target(%296 : memref<1x128xf32, #tpu.memory_space<vmem>>) target_semaphore(%298 : memref<!tpu.dma_semaphore, #tpu.memory_space<semaphore_mem>>)
        %299 = arith.index_cast %214 : i32 to index
        %c12_196 = arith.constant 12 : index
        %300 = memref.load %arg1[%299, %c12_196] : memref<16x16xi32, #tpu.memory_space<smem>>
        %c0_i32_197 = arith.constant 0 : i32
        %301 = tpu.memref_slice %arg2[%300, %c0_i32_197] : memref<100x128xf32, #tpu.memory_space<any>> -> memref<1x128xf32, #tpu.memory_space<any>>
        %c12_i32_198 = arith.constant 12 : i32
        %c0_i32_199 = arith.constant 0 : i32
        %302 = tpu.memref_slice %arg5[%212, %c12_i32_198, %c0_i32_199] : memref<2x16x128xf32, #tpu.memory_space<vmem>> -> memref<1x1x128xf32, #tpu.memory_space<vmem>>
        %303 = tpu.memref_squeeze %302 : memref<1x1x128xf32, #tpu.memory_space<vmem>> -> memref<1x128xf32, #tpu.memory_space<vmem>>
        %304 = tpu.memref_slice %arg6[%212] : memref<2x!tpu.dma_semaphore, #tpu.memory_space<semaphore_mem>> -> memref<1x!tpu.dma_semaphore, #tpu.memory_space<semaphore_mem>>
        %305 = tpu.memref_squeeze %304 : memref<1x!tpu.dma_semaphore, #tpu.memory_space<semaphore_mem>> -> memref<!tpu.dma_semaphore, #tpu.memory_space<semaphore_mem>>
        tpu.enqueue_dma source(%301 : memref<1x128xf32, #tpu.memory_space<any>>) target(%303 : memref<1x128xf32, #tpu.memory_space<vmem>>) target_semaphore(%305 : memref<!tpu.dma_semaphore, #tpu.memory_space<semaphore_mem>>)
        %306 = arith.index_cast %214 : i32 to index
        %c13_200 = arith.constant 13 : index
        %307 = memref.load %arg1[%306, %c13_200] : memref<16x16xi32, #tpu.memory_space<smem>>
        %c0_i32_201 = arith.constant 0 : i32
        %308 = tpu.memref_slice %arg2[%307, %c0_i32_201] : memref<100x128xf32, #tpu.memory_space<any>> -> memref<1x128xf32, #tpu.memory_space<any>>
        %c13_i32_202 = arith.constant 13 : i32
        %c0_i32_203 = arith.constant 0 : i32
        %309 = tpu.memref_slice %arg5[%212, %c13_i32_202, %c0_i32_203] : memref<2x16x128xf32, #tpu.memory_space<vmem>> -> memref<1x1x128xf32, #tpu.memory_space<vmem>>
        %310 = tpu.memref_squeeze %309 : memref<1x1x128xf32, #tpu.memory_space<vmem>> -> memref<1x128xf32, #tpu.memory_space<vmem>>
        %311 = tpu.memref_slice %arg6[%212] : memref<2x!tpu.dma_semaphore, #tpu.memory_space<semaphore_mem>> -> memref<1x!tpu.dma_semaphore, #tpu.memory_space<semaphore_mem>>
        %312 = tpu.memref_squeeze %311 : memref<1x!tpu.dma_semaphore, #tpu.memory_space<semaphore_mem>> -> memref<!tpu.dma_semaphore, #tpu.memory_space<semaphore_mem>>
        tpu.enqueue_dma source(%308 : memref<1x128xf32, #tpu.memory_space<any>>) target(%310 : memref<1x128xf32, #tpu.memory_space<vmem>>) target_semaphore(%312 : memref<!tpu.dma_semaphore, #tpu.memory_space<semaphore_mem>>)
        %313 = arith.index_cast %214 : i32 to index
        %c14_204 = arith.constant 14 : index
        %314 = memref.load %arg1[%313, %c14_204] : memref<16x16xi32, #tpu.memory_space<smem>>
        %c0_i32_205 = arith.constant 0 : i32
        %315 = tpu.memref_slice %arg2[%314, %c0_i32_205] : memref<100x128xf32, #tpu.memory_space<any>> -> memref<1x128xf32, #tpu.memory_space<any>>
        %c14_i32_206 = arith.constant 14 : i32
        %c0_i32_207 = arith.constant 0 : i32
        %316 = tpu.memref_slice %arg5[%212, %c14_i32_206, %c0_i32_207] : memref<2x16x128xf32, #tpu.memory_space<vmem>> -> memref<1x1x128xf32, #tpu.memory_space<vmem>>
        %317 = tpu.memref_squeeze %316 : memref<1x1x128xf32, #tpu.memory_space<vmem>> -> memref<1x128xf32, #tpu.memory_space<vmem>>
        %318 = tpu.memref_slice %arg6[%212] : memref<2x!tpu.dma_semaphore, #tpu.memory_space<semaphore_mem>> -> memref<1x!tpu.dma_semaphore, #tpu.memory_space<semaphore_mem>>
        %319 = tpu.memref_squeeze %318 : memref<1x!tpu.dma_semaphore, #tpu.memory_space<semaphore_mem>> -> memref<!tpu.dma_semaphore, #tpu.memory_space<semaphore_mem>>
        tpu.enqueue_dma source(%315 : memref<1x128xf32, #tpu.memory_space<any>>) target(%317 : memref<1x128xf32, #tpu.memory_space<vmem>>) target_semaphore(%319 : memref<!tpu.dma_semaphore, #tpu.memory_space<semaphore_mem>>)
        %320 = arith.index_cast %214 : i32 to index
        %c15_208 = arith.constant 15 : index
        %321 = memref.load %arg1[%320, %c15_208] : memref<16x16xi32, #tpu.memory_space<smem>>
        %c0_i32_209 = arith.constant 0 : i32
        %322 = tpu.memref_slice %arg2[%321, %c0_i32_209] : memref<100x128xf32, #tpu.memory_space<any>> -> memref<1x128xf32, #tpu.memory_space<any>>
        %c15_i32_210 = arith.constant 15 : i32
        %c0_i32_211 = arith.constant 0 : i32
        %323 = tpu.memref_slice %arg5[%212, %c15_i32_210, %c0_i32_211] : memref<2x16x128xf32, #tpu.memory_space<vmem>> -> memref<1x1x128xf32, #tpu.memory_space<vmem>>
        %324 = tpu.memref_squeeze %323 : memref<1x1x128xf32, #tpu.memory_space<vmem>> -> memref<1x128xf32, #tpu.memory_space<vmem>>
        %325 = tpu.memref_slice %arg6[%212] : memref<2x!tpu.dma_semaphore, #tpu.memory_space<semaphore_mem>> -> memref<1x!tpu.dma_semaphore, #tpu.memory_space<semaphore_mem>>
        %326 = tpu.memref_squeeze %325 : memref<1x!tpu.dma_semaphore, #tpu.memory_space<semaphore_mem>> -> memref<!tpu.dma_semaphore, #tpu.memory_space<semaphore_mem>>
        tpu.enqueue_dma source(%322 : memref<1x128xf32, #tpu.memory_space<any>>) target(%324 : memref<1x128xf32, #tpu.memory_space<vmem>>) target_semaphore(%326 : memref<!tpu.dma_semaphore, #tpu.memory_space<semaphore_mem>>)
      } else {
      }
      %203 = arith.index_cast %118 : i32 to index
      %c0_142 = arith.constant 0 : index
      %c0_143 = arith.constant 0 : index
      %204 = vector.load %arg5[%203, %c0_142, %c0_143] : memref<2x16x128xf32, #tpu.memory_space<vmem>>, vector<1x16x128xf32>
      %205 = vector.shape_cast %204 : vector<1x16x128xf32> to vector<16x128xf32>
      %cst = arith.constant dense<0.000000e+00> : vector<128xf32>
      %206 = vector.multi_reduction <add>, %205, %cst [0] : vector<16x128xf32> to vector<128xf32>
      %207 = vector.shape_cast %206 : vector<128xf32> to vector<1x128xf32>
      %208 = arith.addf %207, %114 : vector<1x128xf32>
      %209 = arith.index_cast %117 : i32 to index
      %c0_144 = arith.constant 0 : index
      %210 = vector.load %arg4[%209, %c0_144] : memref<8x128xf32, #tpu.memory_space<vmem>>, vector<1x128xf32>
      tpu.vector_store %arg4[%209, %c0_144], %208 {strides = array<i32>} : memref<8x128xf32, #tpu.memory_space<vmem>>, vector<1x128xf32>,
    }
    %c8_i32_71 = arith.constant 8 : i32
    return
  }
  func.func @transform_1(%arg0: i32, %arg1: memref<16x16xi32, #tpu.memory_space<smem>>) -> (i32, i32) {
    %c0_i32 = arith.constant 0 : i32
    %c0_i32_0 = arith.constant 0 : i32
    %c0_i32_1 = arith.constant 0 : i32
    return %c0_i32, %c0_i32_0 : i32, i32
  }
  func.func @transform_2(%arg0: i32, %arg1: memref<16x16xi32, #tpu.memory_space<smem>>) -> (i32, i32) {
    %c0_i32 = arith.constant 0 : i32
    %c0_i32_0 = arith.constant 0 : i32
    return %arg0, %c0_i32 : i32, i32
  }
}

</mosaic_0001>

<llo_original>
// kernel: fasttext_forward.1
$region0: #{fasttext_forward.1}
  #allocation0 [shape = 'u32[]', space=smem, size = 0x4, offset = 0x4, fixed_abs, tag = 'smem constant byte address 0x4 - core index']
  #allocation1 [shape = 'u32[144,128]{1,0:T(1,128)}', space=vmem, size = 0x12000, scoped, tag = 'internal scratch']
  #allocation2 [shape = 'f32[2,16,128]{2,1,0:T(8,128)}', space=vmem, size = 0x4000, scoped, tag = 'scratch operand']
  #allocation3 [shape = 's32[2]{0}', space=sflag, size = 0x8, scoped, tag = 'scratch operand']
  #allocation4 [shape = 's32[1]{0}', space=sflag, size = 0x4, scoped, tag = 'scoped memory for fasttext_forward.1']
  #allocation5 [shape = 'u8[8192]{0}', space=smem, size = 0x2000, scoped, tag = 'prefetched SMEM operand 0']
  #allocation6 [shape = 's32[]', space=sflag, size = 0x4, offset = 0, fixed_abs, tag = 'sflag constant byte address 0x0 - dummy sync flag']
  #allocation7 [shape = 's32[]', space=sflag, size = 0x4, offset = 0, fixed_abs, tag = 'sflag constant byte address 0x0 - dummy sync flag']
  #allocation8 [shape = 's32[]', space=sflag, size = 0x4, offset = 0, fixed_abs, tag = 'sflag constant byte address 0x0 - dummy sync flag']
  #allocation9 [shape = 's32[]', space=sflag, size = 0x4, offset = 0, fixed_abs, tag = 'sflag constant byte address 0x0 - dummy sync flag']
  #allocation10 [shape = 's32[]', space=sflag, size = 0x4, offset = 0, fixed_abs, tag = 'sflag constant byte address 0x0 - dummy sync flag']
  #allocation11 [shape = 's32[]', space=sflag, size = 0x4, offset = 0, fixed_abs, tag = 'sflag constant byte address 0x0 - dummy sync flag']
  #allocation12 [shape = 's32[]', space=sflag, size = 0x4, offset = 0, fixed_abs, tag = 'sflag constant byte address 0x0 - dummy sync flag']
  #allocation13 [shape = 's32[]', space=sflag, size = 0x4, offset = 0, fixed_abs, tag = 'sflag constant byte address 0x0 - dummy sync flag']
  #allocation14 [shape = 's32[]', space=sflag, size = 0x4, offset = 0, fixed_abs, tag = 'sflag constant byte address 0x0 - dummy sync flag']
  #allocation15 [shape = 's32[]', space=sflag, size = 0x4, offset = 0, fixed_abs, tag = 'sflag constant byte address 0x0 - dummy sync flag']
  #allocation16 [shape = 's32[]', space=sflag, size = 0x4, offset = 0, fixed_abs, tag = 'sflag constant byte address 0x0 - dummy sync flag']
  #allocation17 [shape = 's32[]', space=sflag, size = 0x4, offset = 0, fixed_abs, tag = 'sflag constant byte address 0x0 - dummy sync flag']
  #allocation18 [shape = 's32[]', space=sflag, size = 0x4, offset = 0, fixed_abs, tag = 'sflag constant byte address 0x0 - dummy sync flag']
  #allocation19 [shape = 's32[]', space=sflag, size = 0x4, offset = 0, fixed_abs, tag = 'sflag constant byte address 0x0 - dummy sync flag']
  #allocation20 [shape = 's32[]', space=sflag, size = 0x4, offset = 0, fixed_abs, tag = 'sflag constant byte address 0x0 - dummy sync flag']
  #allocation21 [shape = 's32[]', space=sflag, size = 0x4, offset = 0, fixed_abs, tag = 'sflag constant byte address 0x0 - dummy sync flag']
  #allocation22 [shape = 's32[]', space=sflag, size = 0x4, offset = 0, fixed_abs, tag = 'sflag constant byte address 0x0 - dummy sync flag']
  #allocation23 [shape = 's32[]', space=sflag, size = 0x4, offset = 0, fixed_abs, tag = 'sflag constant byte address 0x0 - dummy sync flag']
  #allocation24 [shape = 's32[]', space=sflag, size = 0x4, offset = 0, fixed_abs, tag = 'sflag constant byte address 0x0 - dummy sync flag']
  #allocation25 [shape = 's32[]', space=sflag, size = 0x4, offset = 0, fixed_abs, tag = 'sflag constant byte address 0x0 - dummy sync flag']
  #allocation26 [shape = 's32[]', space=sflag, size = 0x4, offset = 0, fixed_abs, tag = 'sflag constant byte address 0x0 - dummy sync flag']
  #allocation27 [shape = 's32[]', space=sflag, size = 0x4, offset = 0, fixed_abs, tag = 'sflag constant byte address 0x0 - dummy sync flag']
  #allocation28 [shape = 's32[]', space=sflag, size = 0x4, offset = 0, fixed_abs, tag = 'sflag constant byte address 0x0 - dummy sync flag']
  #allocation29 [shape = 's32[]', space=sflag, size = 0x4, offset = 0, fixed_abs, tag = 'sflag constant byte address 0x0 - dummy sync flag']
  #allocation30 [shape = 's32[]', space=sflag, size = 0x4, offset = 0, fixed_abs, tag = 'sflag constant byte address 0x0 - dummy sync flag']
  #allocation31 [shape = 's32[]', space=sflag, size = 0x4, offset = 0, fixed_abs, tag = 'sflag constant byte address 0x0 - dummy sync flag']
  #allocation32 [shape = 's32[]', space=sflag, size = 0x4, offset = 0, fixed_abs, tag = 'sflag constant byte address 0x0 - dummy sync flag']
  #allocation33 [shape = 's32[]', space=sflag, size = 0x4, offset = 0, fixed_abs, tag = 'sflag constant byte address 0x0 - dummy sync flag']
  #allocation34 [shape = 's32[]', space=sflag, size = 0x4, offset = 0, fixed_abs, tag = 'sflag constant byte address 0x0 - dummy sync flag']
  #allocation35 [shape = 's32[]', space=sflag, size = 0x4, offset = 0, fixed_abs, tag = 'sflag constant byte address 0x0 - dummy sync flag']
  #allocation36 [shape = 's32[]', space=sflag, size = 0x4, offset = 0, fixed_abs, tag = 'sflag constant byte address 0x0 - dummy sync flag']
  #allocation37 [shape = 's32[]', space=sflag, size = 0x4, offset = 0, fixed_abs, tag = 'sflag constant byte address 0x0 - dummy sync flag']
  %s0 = inlined_call_operand.vmem [shape: s32[16,16], index: 0, kind: input, shape index: {}]
  %s1 = inlined_call_operand.vmem [shape: f32[100,128], index: 1, kind: input, shape index: {}]
  %s2 = inlined_call_operand.vmem [shape: f32[1,128], index: 2, kind: input, shape index: {}]
  %s3 = inlined_call_operand.vmem [shape: f32[16,128], index: 3, kind: output, shape index: {}]
  %s4 = sld [smem:[#allocation0]]
  $region1008: #{fasttext_forward.1} parent=0
    _
  %s6 = ssub.s32 1, %s4
  %s7 = scalar_select 0, %s6, %s4
  %s8 = sshll.u32 %s0, 4
  %s9 = int_to_ptr.vmem [resolvable:$true] %s8
  %11 = dma.vmem_to_smem %s9, 256, [#allocation5], [#allocation4]
  %12 = dma.done [#allocation4], 256
  %13 = sfence
  loop: start=0, step=1, limit=4
  $region2: #{fasttext_forward.1} parent=0 // loop_pre_header
    _
  $region3: #{fasttext_forward.1} parent=0 // loop_header
    %s15 = sphi 0, %s19
    %p16 = scmp.ge.s32.totalorder %s15, 4
    %s23 = sphi 0, %s23
    %s25 = sphi 0, %s23
    %s26 = sphi 0, %s25
    %s40 = sphi 0, %s26
    %s46 = sphi 0, %s48
    %s49 = sphi 0, %s46
    %s50 = sphi 0, %s49
    %s66 = sphi 0, %s50
  $region4: #{fasttext_forward.1} parent=0 // loop_header_branch
    %18 = sbr.rel (%p16) target = $region8
  $region5: #{fasttext_forward.1} parent=0 // loop_body
    %s20 = ssub.s32 %s15, 1
    %s21 = ssub.s32 %s15, 2
    %s22 = sadd.s32 %s15, 1
    %s24 = sadd.s32 %s23, 1
    %p27 = scmp.eq.s32.totalorder %s15, 1
    %p28 = scmp.ne.s32.totalorder %s23, %s25
    %p29 = scmp.eq.s32.totalorder %s15, 0
    %p30 = por %p28, %p29
    %p31 = scmp.ne.s32.totalorder %s23, %s25
    %p32 = scmp.eq.s32.totalorder %s20, 1
    %p33 = por %p31, %p32
    %p34 = scmp.ne.s32.totalorder %s25, %s26
    %p35 = scmp.eq.s32.totalorder %s20, 0
    %p36 = por %p34, %p35
    %p37 = scmp.ne.s32.totalorder %s25, %s26
    %p38 = scmp.eq.s32.totalorder %s21, 1
    %p39 = por %p37, %p38
    %p41 = scmp.ne.s32.totalorder %s26, %s40
    %p42 = scmp.eq.s32.totalorder %s21, 0
    %p43 = por %p41, %p42
    %s44 = ssub.s32 %s15, %s22
    %p45 = scmp.eq.s32.totalorder %s44, 0
    %s47 = sadd.s32 %s46, 1
    %s48 = scalar_select %p45, %s46, %s47
    %p51 = pneg %p45
    %p52 = scmp.eq.s32.totalorder %s15, 1
    %p53 = por %p51, %p52
    %p54 = scmp.ne.s32.totalorder %s46, %s49
    %p55 = scmp.eq.s32.totalorder %s15, 0
    %p56 = por %p54, %p55
    %p57 = scmp.ne.s32.totalorder %s46, %s49
    %p58 = scmp.eq.s32.totalorder %s20, 1
    %p59 = por %p57, %p58
    %p60 = scmp.ne.s32.totalorder %s49, %s50
    %p61 = scmp.eq.s32.totalorder %s20, 0
    %p62 = por %p60, %p61
    %p63 = scmp.ne.s32.totalorder %s49, %s50
    %p64 = scmp.eq.s32.totalorder %s21, 1
    %p65 = por %p63, %p64
    %p67 = scmp.ne.s32.totalorder %s50, %s66
    %p68 = scmp.eq.s32.totalorder %s21, 0
    %p69 = por %p67, %p68
    %p70 = scmp.le.s32.totalorder 1, %s15
    %p71 = scmp.lt.s32.totalorder %s15, 3
    %p72 = pnand %p70, %p71
    %p73 = pneg %p72
    // Predicated region
    $region9: #{fasttext_forward.1} parent=5 // pred_check
      _
    $region10: #{fasttext_forward.1} parent=5 // pred_check_branch
      %75 = sbr.rel (%p72) target = $region12
    $region11: #{fasttext_forward.1} parent=5 // pred_region
      %s76 = ssub.s32 %s15, 1
      // Predicated region
      $region13: #{fasttext_forward.1} parent=11 // pred_check
        %p77 = pneg %p36
      $region14: #{fasttext_forward.1} parent=11 // pred_check_branch
        %79 = sbr.rel (%p77) target = $region16
      $region15: #{fasttext_forward.1} parent=11 // pred_region
        _
      $region16: #{fasttext_forward.1} parent=11 // pred_fallthru
        _
    $region12: #{fasttext_forward.1} parent=5 // pred_fallthru
      _
    %p80 = scmp.lt.s32.totalorder %s15, 2
    // Predicated region
    $region17: #{fasttext_forward.1} parent=5 // pred_check
      %p81 = pneg %p80
    $region18: #{fasttext_forward.1} parent=5 // pred_check_branch
      %83 = sbr.rel (%p81) target = $region20
    $region19: #{fasttext_forward.1} parent=5 // pred_region
      _
    $region20: #{fasttext_forward.1} parent=5 // pred_fallthru
      _
    %p84 = scmp.le.s32.totalorder 1, %s15
    %p85 = scmp.lt.s32.totalorder %s15, 3
    %p86 = pnand %p84, %p85
    %p87 = pneg %p86
    // Predicated region
    $region21: #{fasttext_forward.1} parent=5 // pred_check
      _
    $region22: #{fasttext_forward.1} parent=5 // pred_check_branch
      %89 = sbr.rel (%p86) target = $region24
    $region23: #{fasttext_forward.1} parent=5 // pred_region
      %s90 = ssub.s32 %s15, 1
      %p91 = pneg %p36
      %p92 = pneg %p33
      %p93 = pneg %p62
      %p94 = pneg %p59
      %p95 = scmp.lt.s32.totalorder %s20, 1
      %s96 = scalar_select %p95, %s20, 1
      %s97 = smul.addr %s96, 8
      %s98 = scalar_lea.vmem %s3, %s97
      %p99 = scmp.lt.s32.totalorder %s20, 1
      %s100 = scalar_select %p99, %s20, 1
      %s101 = smul.addr %s100, 8
      %s102 = scalar_lea.vmem %s3, %s101
      %s103 = smul.u32 %s20, 8
      %s104 = smul.u32 %s103, 128
      %s105 = sld [smem:[#allocation5 + %s104]]
      %s106 = scalar_lea.vmem %s1, %s105
      %p108 = scmp.lt.u32.totalorder 1, 8
      %p109 = pneg %p108
      // Predicated region
      $region25: #{fasttext_forward.1} parent=23 // pred_check
        _
      $region26: #{fasttext_forward.1} parent=23 // pred_check_branch
        %111 = sbr.rel (%p108) target = $region28
      $region27: #{fasttext_forward.1} parent=23 // pred_region
        %s126 = sand.u32 1, 7
        %p127 = scmp.eq.s32.totalorder %s126, 0
        %p128 = pneg %p127
        // Predicated region
        $region40: #{fasttext_forward.1} parent=27 // pred_check
          _
        $region41: #{fasttext_forward.1} parent=27 // pred_check_branch
          %130 = sbr.rel (%p127) target = $region43
        $region42: #{fasttext_forward.1} parent=27 // pred_region
          %s131 = sand.u32 1, 7
          %s132 = ssub.s32 1, %s131
          %s133 = scalar_lea.vmem %s106, %s132
          %s134 = ssub.s32 1, %s131
          %s135 = scalar_lea.vmem [#allocation2], %s134
          %s136 = sshllo.u32 0, %s131
          loop: start=0, step=1, limit=1
          $region44: #{fasttext_forward.1} parent=42 // loop_pre_header
            _
          $region45: #{fasttext_forward.1} parent=42 // loop_header
            %s138 = sphi 0, %s142
            %p139 = scmp.ge.s32.totalorder %s138, 1
            %s143 = sphi %s133, %s133
            %s144 = sphi %s135, %s135
          $region46: #{fasttext_forward.1} parent=42 // loop_header_branch
            %141 = sbr.rel (%p139) target = $region50
          $region47: #{fasttext_forward.1} parent=42 // loop_body
            %v145 = vld [vmem:[%s143] sm:%s136]
            %146 = vst [vmem:[%s144] sm:%s136] %v145
          $region48: #{fasttext_forward.1} parent=42 // loop_footer
            %s142 = sadd.s32 1, %s138
          $region49: #{fasttext_forward.1} parent=42 // loop_footer_branch
            %137 = sbr.rel target = $region45
          $region50: #{fasttext_forward.1} parent=42 // loop_exit
            _
        $region43: #{fasttext_forward.1} parent=27 // pred_fallthru
          _
      $region28: #{fasttext_forward.1} parent=23 // pred_fallthru
        _
      // Predicated region
      $region29: #{fasttext_forward.1} parent=23 // pred_check
        %p112 = pneg %p108
      $region30: #{fasttext_forward.1} parent=23 // pred_check_branch
        %114 = sbr.rel (%p112) target = $region32
      $region31: #{fasttext_forward.1} parent=23 // pred_region
        %s115 = sshllo.u32 0, 1
        loop: start=0, step=1, limit=1
        $region33: #{fasttext_forward.1} parent=31 // loop_pre_header
          _
        $region34: #{fasttext_forward.1} parent=31 // loop_header
          %s117 = sphi 0, %s121
          %p118 = scmp.ge.s32.totalorder %s117, 1
          %s122 = sphi %s106, %s106
          %s123 = sphi [#allocation2], [#allocation2]
        $region35: #{fasttext_forward.1} parent=31 // loop_header_branch
          %120 = sbr.rel (%p118) target = $region39
        $region36: #{fasttext_forward.1} parent=31 // loop_body
          %v124 = vld [vmem:[%s122] sm:%s115]
          %125 = vst [vmem:[%s123] sm:%s115] %v124
        $region37: #{fasttext_forward.1} parent=31 // loop_footer
          %s121 = sadd.s32 1, %s117
        $region38: #{fasttext_forward.1} parent=31 // loop_footer_branch
          %116 = sbr.rel target = $region34
        $region39: #{fasttext_forward.1} parent=31 // loop_exit
          _
      $region32: #{fasttext_forward.1} parent=23 // pred_fallthru
        _
      // Predicated region
      $region51: #{fasttext_forward.1} parent=23 // pred_check
        _
      $region52: #{fasttext_forward.1} parent=23 // pred_check_branch
        %149 = sbr.rel (0) target = $region54
      $region53: #{fasttext_forward.1} parent=23 // pred_region
        %150 = vsyncadd [#allocation3], 16
      $region54: #{fasttext_forward.1} parent=23 // pred_fallthru
        _
      %s151 = sadd.s32 %s104, 1
      %s152 = sld [smem:[#allocation5 + %s151]]
      %s153 = scalar_lea.vmem %s1, %s152
      %s154 = scalar_lea.vmem [#allocation2], 1
      %p156 = scmp.lt.u32.totalorder 1, 8
      %p157 = pneg %p156
      // Predicated region
      $region55: #{fasttext_forward.1} parent=23 // pred_check
        _
      $region56: #{fasttext_forward.1} parent=23 // pred_check_branch
        %159 = sbr.rel (%p156) target = $region58
      $region57: #{fasttext_forward.1} parent=23 // pred_region
        %s174 = sand.u32 1, 7
        %p175 = scmp.eq.s32.totalorder %s174, 0
        %p176 = pneg %p175
        // Predicated region
        $region70: #{fasttext_forward.1} parent=57 // pred_check
          _
        $region71: #{fasttext_forward.1} parent=57 // pred_check_branch
          %178 = sbr.rel (%p175) target = $region73
        $region72: #{fasttext_forward.1} parent=57 // pred_region
          %s179 = sand.u32 1, 7
          %s180 = ssub.s32 1, %s179
          %s181 = scalar_lea.vmem %s153, %s180
          %s182 = ssub.s32 1, %s179
          %s183 = scalar_lea.vmem %s154, %s182 [#allocation2]
          %s184 = sshllo.u32 0, %s179
          loop: start=0, step=1, limit=1
          $region74: #{fasttext_forward.1} parent=72 // loop_pre_header
            _
          $region75: #{fasttext_forward.1} parent=72 // loop_header
            %s186 = sphi 0, %s190
            %p187 = scmp.ge.s32.totalorder %s186, 1
            %s191 = sphi %s181, %s181
            %s192 = sphi %s183, %s183
          $region76: #{fasttext_forward.1} parent=72 // loop_header_branch
            %189 = sbr.rel (%p187) target = $region80
          $region77: #{fasttext_forward.1} parent=72 // loop_body
            %v193 = vld [vmem:[%s191] sm:%s184]
            %194 = vst [vmem:[%s192] sm:%s184] %v193
          $region78: #{fasttext_forward.1} parent=72 // loop_footer
            %s190 = sadd.s32 1, %s186
          $region79: #{fasttext_forward.1} parent=72 // loop_footer_branch
            %185 = sbr.rel target = $region75
          $region80: #{fasttext_forward.1} parent=72 // loop_exit
            _
        $region73: #{fasttext_forward.1} parent=57 // pred_fallthru
          _
      $region58: #{fasttext_forward.1} parent=23 // pred_fallthru
        _
      // Predicated region
      $region59: #{fasttext_forward.1} parent=23 // pred_check
        %p160 = pneg %p156
      $region60: #{fasttext_forward.1} parent=23 // pred_check_branch
        %162 = sbr.rel (%p160) target = $region62
      $region61: #{fasttext_forward.1} parent=23 // pred_region
        %s163 = sshllo.u32 0, 1
        loop: start=0, step=1, limit=1
        $region63: #{fasttext_forward.1} parent=61 // loop_pre_header
          _
        $region64: #{fasttext_forward.1} parent=61 // loop_header
          %s165 = sphi 0, %s169
          %p166 = scmp.ge.s32.totalorder %s165, 1
          %s170 = sphi %s153, %s153
          %s171 = sphi %s154, %s154
        $region65: #{fasttext_forward.1} parent=61 // loop_header_branch
          %168 = sbr.rel (%p166) target = $region69
        $region66: #{fasttext_forward.1} parent=61 // loop_body
          %v172 = vld [vmem:[%s170] sm:%s163]
          %173 = vst [vmem:[%s171] sm:%s163] %v172
        $region67: #{fasttext_forward.1} parent=61 // loop_footer
          %s169 = sadd.s32 1, %s165
        $region68: #{fasttext_forward.1} parent=61 // loop_footer_branch
          %164 = sbr.rel target = $region64
        $region69: #{fasttext_forward.1} parent=61 // loop_exit
          _
      $region62: #{fasttext_forward.1} parent=23 // pred_fallthru
        _
      // Predicated region
      $region81: #{fasttext_forward.1} parent=23 // pred_check
        _
      $region82: #{fasttext_forward.1} parent=23 // pred_check_branch
        %197 = sbr.rel (0) target = $region84
      $region83: #{fasttext_forward.1} parent=23 // pred_region
        %198 = vsyncadd [#allocation3], 16
      $region84: #{fasttext_forward.1} parent=23 // pred_fallthru
        _
      %s199 = sadd.s32 %s104, 2
      %s200 = sld [smem:[#allocation5 + %s199]]
      %s201 = scalar_lea.vmem %s1, %s200
      %s202 = scalar_lea.vmem [#allocation2], 2
      %p204 = scmp.lt.u32.totalorder 1, 8
      %p205 = pneg %p204
      // Predicated region
      $region85: #{fasttext_forward.1} parent=23 // pred_check
        _
      $region86: #{fasttext_forward.1} parent=23 // pred_check_branch
        %207 = sbr.rel (%p204) target = $region88
      $region87: #{fasttext_forward.1} parent=23 // pred_region
        %s222 = sand.u32 1, 7
        %p223 = scmp.eq.s32.totalorder %s222, 0
        %p224 = pneg %p223
        // Predicated region
        $region100: #{fasttext_forward.1} parent=87 // pred_check
          _
        $region101: #{fasttext_forward.1} parent=87 // pred_check_branch
          %226 = sbr.rel (%p223) target = $region103
        $region102: #{fasttext_forward.1} parent=87 // pred_region
          %s227 = sand.u32 1, 7
          %s228 = ssub.s32 1, %s227
          %s229 = scalar_lea.vmem %s201, %s228
          %s230 = ssub.s32 1, %s227
          %s231 = scalar_lea.vmem %s202, %s230 [#allocation2]
          %s232 = sshllo.u32 0, %s227
          loop: start=0, step=1, limit=1
          $region104: #{fasttext_forward.1} parent=102 // loop_pre_header
            _
          $region105: #{fasttext_forward.1} parent=102 // loop_header
            %s234 = sphi 0, %s238
            %p235 = scmp.ge.s32.totalorder %s234, 1
            %s239 = sphi %s229, %s229
            %s240 = sphi %s231, %s231
          $region106: #{fasttext_forward.1} parent=102 // loop_header_branch
            %237 = sbr.rel (%p235) target = $region110
          $region107: #{fasttext_forward.1} parent=102 // loop_body
            %v241 = vld [vmem:[%s239] sm:%s232]
            %242 = vst [vmem:[%s240] sm:%s232] %v241
          $region108: #{fasttext_forward.1} parent=102 // loop_footer
            %s238 = sadd.s32 1, %s234
          $region109: #{fasttext_forward.1} parent=102 // loop_footer_branch
            %233 = sbr.rel target = $region105
          $region110: #{fasttext_forward.1} parent=102 // loop_exit
            _
        $region103: #{fasttext_forward.1} parent=87 // pred_fallthru
          _
      $region88: #{fasttext_forward.1} parent=23 // pred_fallthru
        _
      // Predicated region
      $region89: #{fasttext_forward.1} parent=23 // pred_check
        %p208 = pneg %p204
      $region90: #{fasttext_forward.1} parent=23 // pred_check_branch
        %210 = sbr.rel (%p208) target = $region92
      $region91: #{fasttext_forward.1} parent=23 // pred_region
        %s211 = sshllo.u32 0, 1
        loop: start=0, step=1, limit=1
        $region93: #{fasttext_forward.1} parent=91 // loop_pre_header
          _
        $region94: #{fasttext_forward.1} parent=91 // loop_header
          %s213 = sphi 0, %s217
          %p214 = scmp.ge.s32.totalorder %s213, 1
          %s218 = sphi %s201, %s201
          %s219 = sphi %s202, %s202
        $region95: #{fasttext_forward.1} parent=91 // loop_header_branch
          %216 = sbr.rel (%p214) target = $region99
        $region96: #{fasttext_forward.1} parent=91 // loop_body
          %v220 = vld [vmem:[%s218] sm:%s211]
          %221 = vst [vmem:[%s219] sm:%s211] %v220
        $region97: #{fasttext_forward.1} parent=91 // loop_footer
          %s217 = sadd.s32 1, %s213
        $region98: #{fasttext_forward.1} parent=91 // loop_footer_branch
          %212 = sbr.rel target = $region94
        $region99: #{fasttext_forward.1} parent=91 // loop_exit
          _
      $region92: #{fasttext_forward.1} parent=23 // pred_fallthru
        _
      // Predicated region
      $region111: #{fasttext_forward.1} parent=23 // pred_check
        _
      $region112: #{fasttext_forward.1} parent=23 // pred_check_branch
        %245 = sbr.rel (0) target = $region114
      $region113: #{fasttext_forward.1} parent=23 // pred_region
        %246 = vsyncadd [#allocation3], 16
      $region114: #{fasttext_forward.1} parent=23 // pred_fallthru
        _
      %s247 = sadd.s32 %s104, 3
      %s248 = sld [smem:[#allocation5 + %s247]]
      %s249 = scalar_lea.vmem %s1, %s248
      %s250 = scalar_lea.vmem [#allocation2], 3
      %p252 = scmp.lt.u32.totalorder 1, 8
      %p253 = pneg %p252
      // Predicated region
      $region115: #{fasttext_forward.1} parent=23 // pred_check
        _
      $region116: #{fasttext_forward.1} parent=23 // pred_check_branch
        %255 = sbr.rel (%p252) target = $region118
      $region117: #{fasttext_forward.1} parent=23 // pred_region
        %s270 = sand.u32 1, 7
        %p271 = scmp.eq.s32.totalorder %s270, 0
        %p272 = pneg %p271
        // Predicated region
        $region130: #{fasttext_forward.1} parent=117 // pred_check
          _
        $region131: #{fasttext_forward.1} parent=117 // pred_check_branch
          %274 = sbr.rel (%p271) target = $region133
        $region132: #{fasttext_forward.1} parent=117 // pred_region
          %s275 = sand.u32 1, 7
          %s276 = ssub.s32 1, %s275
          %s277 = scalar_lea.vmem %s249, %s276
          %s278 = ssub.s32 1, %s275
          %s279 = scalar_lea.vmem %s250, %s278 [#allocation2]
          %s280 = sshllo.u32 0, %s275
          loop: start=0, step=1, limit=1
          $region134: #{fasttext_forward.1} parent=132 // loop_pre_header
            _
          $region135: #{fasttext_forward.1} parent=132 // loop_header
            %s282 = sphi 0, %s286
            %p283 = scmp.ge.s32.totalorder %s282, 1
            %s287 = sphi %s277, %s277
            %s288 = sphi %s279, %s279
          $region136: #{fasttext_forward.1} parent=132 // loop_header_branch
            %285 = sbr.rel (%p283) target = $region140
          $region137: #{fasttext_forward.1} parent=132 // loop_body
            %v289 = vld [vmem:[%s287] sm:%s280]
            %290 = vst [vmem:[%s288] sm:%s280] %v289
          $region138: #{fasttext_forward.1} parent=132 // loop_footer
            %s286 = sadd.s32 1, %s282
          $region139: #{fasttext_forward.1} parent=132 // loop_footer_branch
            %281 = sbr.rel target = $region135
          $region140: #{fasttext_forward.1} parent=132 // loop_exit
            _
        $region133: #{fasttext_forward.1} parent=117 // pred_fallthru
          _
      $region118: #{fasttext_forward.1} parent=23 // pred_fallthru
        _
      // Predicated region
      $region119: #{fasttext_forward.1} parent=23 // pred_check
        %p256 = pneg %p252
      $region120: #{fasttext_forward.1} parent=23 // pred_check_branch
        %258 = sbr.rel (%p256) target = $region122
      $region121: #{fasttext_forward.1} parent=23 // pred_region
        %s259 = sshllo.u32 0, 1
        loop: start=0, step=1, limit=1
        $region123: #{fasttext_forward.1} parent=121 // loop_pre_header
          _
        $region124: #{fasttext_forward.1} parent=121 // loop_header
          %s261 = sphi 0, %s265
          %p262 = scmp.ge.s32.totalorder %s261, 1
          %s266 = sphi %s249, %s249
          %s267 = sphi %s250, %s250
        $region125: #{fasttext_forward.1} parent=121 // loop_header_branch
          %264 = sbr.rel (%p262) target = $region129
        $region126: #{fasttext_forward.1} parent=121 // loop_body
          %v268 = vld [vmem:[%s266] sm:%s259]
          %269 = vst [vmem:[%s267] sm:%s259] %v268
        $region127: #{fasttext_forward.1} parent=121 // loop_footer
          %s265 = sadd.s32 1, %s261
        $region128: #{fasttext_forward.1} parent=121 // loop_footer_branch
          %260 = sbr.rel target = $region124
        $region129: #{fasttext_forward.1} parent=121 // loop_exit
          _
      $region122: #{fasttext_forward.1} parent=23 // pred_fallthru
        _
      // Predicated region
      $region141: #{fasttext_forward.1} parent=23 // pred_check
        _
      $region142: #{fasttext_forward.1} parent=23 // pred_check_branch
        %293 = sbr.rel (0) target = $region144
      $region143: #{fasttext_forward.1} parent=23 // pred_region
        %294 = vsyncadd [#allocation3], 16
      $region144: #{fasttext_forward.1} parent=23 // pred_fallthru
        _
      %s295 = sadd.s32 %s104, 4
      %s296 = sld [smem:[#allocation5 + %s295]]
      %s297 = scalar_lea.vmem %s1, %s296
      %s298 = scalar_lea.vmem [#allocation2], 4
      %p300 = scmp.lt.u32.totalorder 1, 8
      %p301 = pneg %p300
      // Predicated region
      $region145: #{fasttext_forward.1} parent=23 // pred_check
        _
      $region146: #{fasttext_forward.1} parent=23 // pred_check_branch
        %303 = sbr.rel (%p300) target = $region148
      $region147: #{fasttext_forward.1} parent=23 // pred_region
        %s318 = sand.u32 1, 7
        %p319 = scmp.eq.s32.totalorder %s318, 0
        %p320 = pneg %p319
        // Predicated region
        $region160: #{fasttext_forward.1} parent=147 // pred_check
          _
        $region161: #{fasttext_forward.1} parent=147 // pred_check_branch
          %322 = sbr.rel (%p319) target = $region163
        $region162: #{fasttext_forward.1} parent=147 // pred_region
          %s323 = sand.u32 1, 7
          %s324 = ssub.s32 1, %s323
          %s325 = scalar_lea.vmem %s297, %s324
          %s326 = ssub.s32 1, %s323
          %s327 = scalar_lea.vmem %s298, %s326 [#allocation2]
          %s328 = sshllo.u32 0, %s323
          loop: start=0, step=1, limit=1
          $region164: #{fasttext_forward.1} parent=162 // loop_pre_header
            _
          $region165: #{fasttext_forward.1} parent=162 // loop_header
            %s330 = sphi 0, %s334
            %p331 = scmp.ge.s32.totalorder %s330, 1
            %s335 = sphi %s325, %s325
            %s336 = sphi %s327, %s327
          $region166: #{fasttext_forward.1} parent=162 // loop_header_branch
            %333 = sbr.rel (%p331) target = $region170
          $region167: #{fasttext_forward.1} parent=162 // loop_body
            %v337 = vld [vmem:[%s335] sm:%s328]
            %338 = vst [vmem:[%s336] sm:%s328] %v337
          $region168: #{fasttext_forward.1} parent=162 // loop_footer
            %s334 = sadd.s32 1, %s330
          $region169: #{fasttext_forward.1} parent=162 // loop_footer_branch
            %329 = sbr.rel target = $region165
          $region170: #{fasttext_forward.1} parent=162 // loop_exit
            _
        $region163: #{fasttext_forward.1} parent=147 // pred_fallthru
          _
      $region148: #{fasttext_forward.1} parent=23 // pred_fallthru
        _
      // Predicated region
      $region149: #{fasttext_forward.1} parent=23 // pred_check
        %p304 = pneg %p300
      $region150: #{fasttext_forward.1} parent=23 // pred_check_branch
        %306 = sbr.rel (%p304) target = $region152
      $region151: #{fasttext_forward.1} parent=23 // pred_region
        %s307 = sshllo.u32 0, 1
        loop: start=0, step=1, limit=1
        $region153: #{fasttext_forward.1} parent=151 // loop_pre_header
          _
        $region154: #{fasttext_forward.1} parent=151 // loop_header
          %s309 = sphi 0, %s313
          %p310 = scmp.ge.s32.totalorder %s309, 1
          %s314 = sphi %s297, %s297
          %s315 = sphi %s298, %s298
        $region155: #{fasttext_forward.1} parent=151 // loop_header_branch
          %312 = sbr.rel (%p310) target = $region159
        $region156: #{fasttext_forward.1} parent=151 // loop_body
          %v316 = vld [vmem:[%s314] sm:%s307]
          %317 = vst [vmem:[%s315] sm:%s307] %v316
        $region157: #{fasttext_forward.1} parent=151 // loop_footer
          %s313 = sadd.s32 1, %s309
        $region158: #{fasttext_forward.1} parent=151 // loop_footer_branch
          %308 = sbr.rel target = $region154
        $region159: #{fasttext_forward.1} parent=151 // loop_exit
          _
      $region152: #{fasttext_forward.1} parent=23 // pred_fallthru
        _
      // Predicated region
      $region171: #{fasttext_forward.1} parent=23 // pred_check
        _
      $region172: #{fasttext_forward.1} parent=23 // pred_check_branch
        %341 = sbr.rel (0) target = $region174
      $region173: #{fasttext_forward.1} parent=23 // pred_region
        %342 = vsyncadd [#allocation3], 16
      $region174: #{fasttext_forward.1} parent=23 // pred_fallthru
        _
      %s343 = sadd.s32 %s104, 5
      %s344 = sld [smem:[#allocation5 + %s343]]
      %s345 = scalar_lea.vmem %s1, %s344
      %s346 = scalar_lea.vmem [#allocation2], 5
      %p348 = scmp.lt.u32.totalorder 1, 8
      %p349 = pneg %p348
      // Predicated region
      $region175: #{fasttext_forward.1} parent=23 // pred_check
        _
      $region176: #{fasttext_forward.1} parent=23 // pred_check_branch
        %351 = sbr.rel (%p348) target = $region178
      $region177: #{fasttext_forward.1} parent=23 // pred_region
        %s366 = sand.u32 1, 7
        %p367 = scmp.eq.s32.totalorder %s366, 0
        %p368 = pneg %p367
        // Predicated region
        $region190: #{fasttext_forward.1} parent=177 // pred_check
          _
        $region191: #{fasttext_forward.1} parent=177 // pred_check_branch
          %370 = sbr.rel (%p367) target = $region193
        $region192: #{fasttext_forward.1} parent=177 // pred_region
          %s371 = sand.u32 1, 7
          %s372 = ssub.s32 1, %s371
          %s373 = scalar_lea.vmem %s345, %s372
          %s374 = ssub.s32 1, %s371
          %s375 = scalar_lea.vmem %s346, %s374 [#allocation2]
          %s376 = sshllo.u32 0, %s371
          loop: start=0, step=1, limit=1
          $region194: #{fasttext_forward.1} parent=192 // loop_pre_header
            _
          $region195: #{fasttext_forward.1} parent=192 // loop_header
            %s378 = sphi 0, %s382
            %p379 = scmp.ge.s32.totalorder %s378, 1
            %s383 = sphi %s373, %s373
            %s384 = sphi %s375, %s375
          $region196: #{fasttext_forward.1} parent=192 // loop_header_branch
            %381 = sbr.rel (%p379) target = $region200
          $region197: #{fasttext_forward.1} parent=192 // loop_body
            %v385 = vld [vmem:[%s383] sm:%s376]
            %386 = vst [vmem:[%s384] sm:%s376] %v385
          $region198: #{fasttext_forward.1} parent=192 // loop_footer
            %s382 = sadd.s32 1, %s378
          $region199: #{fasttext_forward.1} parent=192 // loop_footer_branch
            %377 = sbr.rel target = $region195
          $region200: #{fasttext_forward.1} parent=192 // loop_exit
            _
        $region193: #{fasttext_forward.1} parent=177 // pred_fallthru
          _
      $region178: #{fasttext_forward.1} parent=23 // pred_fallthru
        _
      // Predicated region
      $region179: #{fasttext_forward.1} parent=23 // pred_check
        %p352 = pneg %p348
      $region180: #{fasttext_forward.1} parent=23 // pred_check_branch
        %354 = sbr.rel (%p352) target = $region182
      $region181: #{fasttext_forward.1} parent=23 // pred_region
        %s355 = sshllo.u32 0, 1
        loop: start=0, step=1, limit=1
        $region183: #{fasttext_forward.1} parent=181 // loop_pre_header
          _
        $region184: #{fasttext_forward.1} parent=181 // loop_header
          %s357 = sphi 0, %s361
          %p358 = scmp.ge.s32.totalorder %s357, 1
          %s362 = sphi %s345, %s345
          %s363 = sphi %s346, %s346
        $region185: #{fasttext_forward.1} parent=181 // loop_header_branch
          %360 = sbr.rel (%p358) target = $region189
        $region186: #{fasttext_forward.1} parent=181 // loop_body
          %v364 = vld [vmem:[%s362] sm:%s355]
          %365 = vst [vmem:[%s363] sm:%s355] %v364
        $region187: #{fasttext_forward.1} parent=181 // loop_footer
          %s361 = sadd.s32 1, %s357
        $region188: #{fasttext_forward.1} parent=181 // loop_footer_branch
          %356 = sbr.rel target = $region184
        $region189: #{fasttext_forward.1} parent=181 // loop_exit
          _
      $region182: #{fasttext_forward.1} parent=23 // pred_fallthru
        _
      // Predicated region
      $region201: #{fasttext_forward.1} parent=23 // pred_check
        _
      $region202: #{fasttext_forward.1} parent=23 // pred_check_branch
        %389 = sbr.rel (0) target = $region204
      $region203: #{fasttext_forward.1} parent=23 // pred_region
        %390 = vsyncadd [#allocation3], 16
      $region204: #{fasttext_forward.1} parent=23 // pred_fallthru
        _
      %s391 = sadd.s32 %s104, 6
      %s392 = sld [smem:[#allocation5 + %s391]]
      %s393 = scalar_lea.vmem %s1, %s392
      %s394 = scalar_lea.vmem [#allocation2], 6
      %p396 = scmp.lt.u32.totalorder 1, 8
      %p397 = pneg %p396
      // Predicated region
      $region205: #{fasttext_forward.1} parent=23 // pred_check
        _
      $region206: #{fasttext_forward.1} parent=23 // pred_check_branch
        %399 = sbr.rel (%p396) target = $region208
      $region207: #{fasttext_forward.1} parent=23 // pred_region
        %s414 = sand.u32 1, 7
        %p415 = scmp.eq.s32.totalorder %s414, 0
        %p416 = pneg %p415
        // Predicated region
        $region220: #{fasttext_forward.1} parent=207 // pred_check
          _
        $region221: #{fasttext_forward.1} parent=207 // pred_check_branch
          %418 = sbr.rel (%p415) target = $region223
        $region222: #{fasttext_forward.1} parent=207 // pred_region
          %s419 = sand.u32 1, 7
          %s420 = ssub.s32 1, %s419
          %s421 = scalar_lea.vmem %s393, %s420
          %s422 = ssub.s32 1, %s419
          %s423 = scalar_lea.vmem %s394, %s422 [#allocation2]
          %s424 = sshllo.u32 0, %s419
          loop: start=0, step=1, limit=1
          $region224: #{fasttext_forward.1} parent=222 // loop_pre_header
            _
          $region225: #{fasttext_forward.1} parent=222 // loop_header
            %s426 = sphi 0, %s430
            %p427 = scmp.ge.s32.totalorder %s426, 1
            %s431 = sphi %s421, %s421
            %s432 = sphi %s423, %s423
          $region226: #{fasttext_forward.1} parent=222 // loop_header_branch
            %429 = sbr.rel (%p427) target = $region230
          $region227: #{fasttext_forward.1} parent=222 // loop_body
            %v433 = vld [vmem:[%s431] sm:%s424]
            %434 = vst [vmem:[%s432] sm:%s424] %v433
          $region228: #{fasttext_forward.1} parent=222 // loop_footer
            %s430 = sadd.s32 1, %s426
          $region229: #{fasttext_forward.1} parent=222 // loop_footer_branch
            %425 = sbr.rel target = $region225
          $region230: #{fasttext_forward.1} parent=222 // loop_exit
            _
        $region223: #{fasttext_forward.1} parent=207 // pred_fallthru
          _
      $region208: #{fasttext_forward.1} parent=23 // pred_fallthru
        _
      // Predicated region
      $region209: #{fasttext_forward.1} parent=23 // pred_check
        %p400 = pneg %p396
      $region210: #{fasttext_forward.1} parent=23 // pred_check_branch
        %402 = sbr.rel (%p400) target = $region212
      $region211: #{fasttext_forward.1} parent=23 // pred_region
        %s403 = sshllo.u32 0, 1
        loop: start=0, step=1, limit=1
        $region213: #{fasttext_forward.1} parent=211 // loop_pre_header
          _
        $region214: #{fasttext_forward.1} parent=211 // loop_header
          %s405 = sphi 0, %s409
          %p406 = scmp.ge.s32.totalorder %s405, 1
          %s410 = sphi %s393, %s393
          %s411 = sphi %s394, %s394
        $region215: #{fasttext_forward.1} parent=211 // loop_header_branch
          %408 = sbr.rel (%p406) target = $region219
        $region216: #{fasttext_forward.1} parent=211 // loop_body
          %v412 = vld [vmem:[%s410] sm:%s403]
          %413 = vst [vmem:[%s411] sm:%s403] %v412
        $region217: #{fasttext_forward.1} parent=211 // loop_footer
          %s409 = sadd.s32 1, %s405
        $region218: #{fasttext_forward.1} parent=211 // loop_footer_branch
          %404 = sbr.rel target = $region214
        $region219: #{fasttext_forward.1} parent=211 // loop_exit
          _
      $region212: #{fasttext_forward.1} parent=23 // pred_fallthru
        _
      // Predicated region
      $region231: #{fasttext_forward.1} parent=23 // pred_check
        _
      $region232: #{fasttext_forward.1} parent=23 // pred_check_branch
        %437 = sbr.rel (0) target = $region234
      $region233: #{fasttext_forward.1} parent=23 // pred_region
        %438 = vsyncadd [#allocation3], 16
      $region234: #{fasttext_forward.1} parent=23 // pred_fallthru
        _
      %s439 = sadd.s32 %s104, 7
      %s440 = sld [smem:[#allocation5 + %s439]]
      %s441 = scalar_lea.vmem %s1, %s440
      %s442 = scalar_lea.vmem [#allocation2], 7
      %p444 = scmp.lt.u32.totalorder 1, 8
      %p445 = pneg %p444
      // Predicated region
      $region235: #{fasttext_forward.1} parent=23 // pred_check
        _
      $region236: #{fasttext_forward.1} parent=23 // pred_check_branch
        %447 = sbr.rel (%p444) target = $region238
      $region237: #{fasttext_forward.1} parent=23 // pred_region
        %s462 = sand.u32 1, 7
        %p463 = scmp.eq.s32.totalorder %s462, 0
        %p464 = pneg %p463
        // Predicated region
        $region250: #{fasttext_forward.1} parent=237 // pred_check
          _
        $region251: #{fasttext_forward.1} parent=237 // pred_check_branch
          %466 = sbr.rel (%p463) target = $region253
        $region252: #{fasttext_forward.1} parent=237 // pred_region
          %s467 = sand.u32 1, 7
          %s468 = ssub.s32 1, %s467
          %s469 = scalar_lea.vmem %s441, %s468
          %s470 = ssub.s32 1, %s467
          %s471 = scalar_lea.vmem %s442, %s470 [#allocation2]
          %s472 = sshllo.u32 0, %s467
          loop: start=0, step=1, limit=1
          $region254: #{fasttext_forward.1} parent=252 // loop_pre_header
            _
          $region255: #{fasttext_forward.1} parent=252 // loop_header
            %s474 = sphi 0, %s478
            %p475 = scmp.ge.s32.totalorder %s474, 1
            %s479 = sphi %s469, %s469
            %s480 = sphi %s471, %s471
          $region256: #{fasttext_forward.1} parent=252 // loop_header_branch
            %477 = sbr.rel (%p475) target = $region260
          $region257: #{fasttext_forward.1} parent=252 // loop_body
            %v481 = vld [vmem:[%s479] sm:%s472]
            %482 = vst [vmem:[%s480] sm:%s472] %v481
          $region258: #{fasttext_forward.1} parent=252 // loop_footer
            %s478 = sadd.s32 1, %s474
          $region259: #{fasttext_forward.1} parent=252 // loop_footer_branch
            %473 = sbr.rel target = $region255
          $region260: #{fasttext_forward.1} parent=252 // loop_exit
            _
        $region253: #{fasttext_forward.1} parent=237 // pred_fallthru
          _
      $region238: #{fasttext_forward.1} parent=23 // pred_fallthru
        _
      // Predicated region
      $region239: #{fasttext_forward.1} parent=23 // pred_check
        %p448 = pneg %p444
      $region240: #{fasttext_forward.1} parent=23 // pred_check_branch
        %450 = sbr.rel (%p448) target = $region242
      $region241: #{fasttext_forward.1} parent=23 // pred_region
        %s451 = sshllo.u32 0, 1
        loop: start=0, step=1, limit=1
        $region243: #{fasttext_forward.1} parent=241 // loop_pre_header
          _
        $region244: #{fasttext_forward.1} parent=241 // loop_header
          %s453 = sphi 0, %s457
          %p454 = scmp.ge.s32.totalorder %s453, 1
          %s458 = sphi %s441, %s441
          %s459 = sphi %s442, %s442
        $region245: #{fasttext_forward.1} parent=241 // loop_header_branch
          %456 = sbr.rel (%p454) target = $region249
        $region246: #{fasttext_forward.1} parent=241 // loop_body
          %v460 = vld [vmem:[%s458] sm:%s451]
          %461 = vst [vmem:[%s459] sm:%s451] %v460
        $region247: #{fasttext_forward.1} parent=241 // loop_footer
          %s457 = sadd.s32 1, %s453
        $region248: #{fasttext_forward.1} parent=241 // loop_footer_branch
          %452 = sbr.rel target = $region244
        $region249: #{fasttext_forward.1} parent=241 // loop_exit
          _
      $region242: #{fasttext_forward.1} parent=23 // pred_fallthru
        _
      // Predicated region
      $region261: #{fasttext_forward.1} parent=23 // pred_check
        _
      $region262: #{fasttext_forward.1} parent=23 // pred_check_branch
        %485 = sbr.rel (0) target = $region264
      $region263: #{fasttext_forward.1} parent=23 // pred_region
        %486 = vsyncadd [#allocation3], 16
      $region264: #{fasttext_forward.1} parent=23 // pred_fallthru
        _
      %s487 = sadd.s32 %s104, 8
      %s488 = sld [smem:[#allocation5 + %s487]]
      %s489 = scalar_lea.vmem %s1, %s488
      %s490 = scalar_lea.vmem [#allocation2], 8
      %p492 = scmp.lt.u32.totalorder 1, 8
      %p493 = pneg %p492
      // Predicated region
      $region265: #{fasttext_forward.1} parent=23 // pred_check
        _
      $region266: #{fasttext_forward.1} parent=23 // pred_check_branch
        %495 = sbr.rel (%p492) target = $region268
      $region267: #{fasttext_forward.1} parent=23 // pred_region
        %s510 = sand.u32 1, 7
        %p511 = scmp.eq.s32.totalorder %s510, 0
        %p512 = pneg %p511
        // Predicated region
        $region280: #{fasttext_forward.1} parent=267 // pred_check
          _
        $region281: #{fasttext_forward.1} parent=267 // pred_check_branch
          %514 = sbr.rel (%p511) target = $region283
        $region282: #{fasttext_forward.1} parent=267 // pred_region
          %s515 = sand.u32 1, 7
          %s516 = ssub.s32 1, %s515
          %s517 = scalar_lea.vmem %s489, %s516
          %s518 = ssub.s32 1, %s515
          %s519 = scalar_lea.vmem %s490, %s518 [#allocation2]
          %s520 = sshllo.u32 0, %s515
          loop: start=0, step=1, limit=1
          $region284: #{fasttext_forward.1} parent=282 // loop_pre_header
            _
          $region285: #{fasttext_forward.1} parent=282 // loop_header
            %s522 = sphi 0, %s526
            %p523 = scmp.ge.s32.totalorder %s522, 1
            %s527 = sphi %s517, %s517
            %s528 = sphi %s519, %s519
          $region286: #{fasttext_forward.1} parent=282 // loop_header_branch
            %525 = sbr.rel (%p523) target = $region290
          $region287: #{fasttext_forward.1} parent=282 // loop_body
            %v529 = vld [vmem:[%s527] sm:%s520]
            %530 = vst [vmem:[%s528] sm:%s520] %v529
          $region288: #{fasttext_forward.1} parent=282 // loop_footer
            %s526 = sadd.s32 1, %s522
          $region289: #{fasttext_forward.1} parent=282 // loop_footer_branch
            %521 = sbr.rel target = $region285
          $region290: #{fasttext_forward.1} parent=282 // loop_exit
            _
        $region283: #{fasttext_forward.1} parent=267 // pred_fallthru
          _
      $region268: #{fasttext_forward.1} parent=23 // pred_fallthru
        _
      // Predicated region
      $region269: #{fasttext_forward.1} parent=23 // pred_check
        %p496 = pneg %p492
      $region270: #{fasttext_forward.1} parent=23 // pred_check_branch
        %498 = sbr.rel (%p496) target = $region272
      $region271: #{fasttext_forward.1} parent=23 // pred_region
        %s499 = sshllo.u32 0, 1
        loop: start=0, step=1, limit=1
        $region273: #{fasttext_forward.1} parent=271 // loop_pre_header
          _
        $region274: #{fasttext_forward.1} parent=271 // loop_header
          %s501 = sphi 0, %s505
          %p502 = scmp.ge.s32.totalorder %s501, 1
          %s506 = sphi %s489, %s489
          %s507 = sphi %s490, %s490
        $region275: #{fasttext_forward.1} parent=271 // loop_header_branch
          %504 = sbr.rel (%p502) target = $region279
        $region276: #{fasttext_forward.1} parent=271 // loop_body
          %v508 = vld [vmem:[%s506] sm:%s499]
          %509 = vst [vmem:[%s507] sm:%s499] %v508
        $region277: #{fasttext_forward.1} parent=271 // loop_footer
          %s505 = sadd.s32 1, %s501
        $region278: #{fasttext_forward.1} parent=271 // loop_footer_branch
          %500 = sbr.rel target = $region274
        $region279: #{fasttext_forward.1} parent=271 // loop_exit
          _
      $region272: #{fasttext_forward.1} parent=23 // pred_fallthru
        _
      // Predicated region
      $region291: #{fasttext_forward.1} parent=23 // pred_check
        _
      $region292: #{fasttext_forward.1} parent=23 // pred_check_branch
        %533 = sbr.rel (0) target = $region294
      $region293: #{fasttext_forward.1} parent=23 // pred_region
        %534 = vsyncadd [#allocation3], 16
      $region294: #{fasttext_forward.1} parent=23 // pred_fallthru
        _
      %s535 = sadd.s32 %s104, 9
      %s536 = sld [smem:[#allocation5 + %s535]]
      %s537 = scalar_lea.vmem %s1, %s536
      %s538 = scalar_lea.vmem [#allocation2], 9
      %p540 = scmp.lt.u32.totalorder 1, 8
      %p541 = pneg %p540
      // Predicated region
      $region295: #{fasttext_forward.1} parent=23 // pred_check
        _
      $region296: #{fasttext_forward.1} parent=23 // pred_check_branch
        %543 = sbr.rel (%p540) target = $region298
      $region297: #{fasttext_forward.1} parent=23 // pred_region
        %s558 = sand.u32 1, 7
        %p559 = scmp.eq.s32.totalorder %s558, 0
        %p560 = pneg %p559
        // Predicated region
        $region310: #{fasttext_forward.1} parent=297 // pred_check
          _
        $region311: #{fasttext_forward.1} parent=297 // pred_check_branch
          %562 = sbr.rel (%p559) target = $region313
        $region312: #{fasttext_forward.1} parent=297 // pred_region
          %s563 = sand.u32 1, 7
          %s564 = ssub.s32 1, %s563
          %s565 = scalar_lea.vmem %s537, %s564
          %s566 = ssub.s32 1, %s563
          %s567 = scalar_lea.vmem %s538, %s566 [#allocation2]
          %s568 = sshllo.u32 0, %s563
          loop: start=0, step=1, limit=1
          $region314: #{fasttext_forward.1} parent=312 // loop_pre_header
            _
          $region315: #{fasttext_forward.1} parent=312 // loop_header
            %s570 = sphi 0, %s574
            %p571 = scmp.ge.s32.totalorder %s570, 1
            %s575 = sphi %s565, %s565
            %s576 = sphi %s567, %s567
          $region316: #{fasttext_forward.1} parent=312 // loop_header_branch
            %573 = sbr.rel (%p571) target = $region320
          $region317: #{fasttext_forward.1} parent=312 // loop_body
            %v577 = vld [vmem:[%s575] sm:%s568]
            %578 = vst [vmem:[%s576] sm:%s568] %v577
          $region318: #{fasttext_forward.1} parent=312 // loop_footer
            %s574 = sadd.s32 1, %s570
          $region319: #{fasttext_forward.1} parent=312 // loop_footer_branch
            %569 = sbr.rel target = $region315
          $region320: #{fasttext_forward.1} parent=312 // loop_exit
            _
        $region313: #{fasttext_forward.1} parent=297 // pred_fallthru
          _
      $region298: #{fasttext_forward.1} parent=23 // pred_fallthru
        _
      // Predicated region
      $region299: #{fasttext_forward.1} parent=23 // pred_check
        %p544 = pneg %p540
      $region300: #{fasttext_forward.1} parent=23 // pred_check_branch
        %546 = sbr.rel (%p544) target = $region302
      $region301: #{fasttext_forward.1} parent=23 // pred_region
        %s547 = sshllo.u32 0, 1
        loop: start=0, step=1, limit=1
        $region303: #{fasttext_forward.1} parent=301 // loop_pre_header
          _
        $region304: #{fasttext_forward.1} parent=301 // loop_header
          %s549 = sphi 0, %s553
          %p550 = scmp.ge.s32.totalorder %s549, 1
          %s554 = sphi %s537, %s537
          %s555 = sphi %s538, %s538
        $region305: #{fasttext_forward.1} parent=301 // loop_header_branch
          %552 = sbr.rel (%p550) target = $region309
        $region306: #{fasttext_forward.1} parent=301 // loop_body
          %v556 = vld [vmem:[%s554] sm:%s547]
          %557 = vst [vmem:[%s555] sm:%s547] %v556
        $region307: #{fasttext_forward.1} parent=301 // loop_footer
          %s553 = sadd.s32 1, %s549
        $region308: #{fasttext_forward.1} parent=301 // loop_footer_branch
          %548 = sbr.rel target = $region304
        $region309: #{fasttext_forward.1} parent=301 // loop_exit
          _
      $region302: #{fasttext_forward.1} parent=23 // pred_fallthru
        _
      // Predicated region
      $region321: #{fasttext_forward.1} parent=23 // pred_check
        _
      $region322: #{fasttext_forward.1} parent=23 // pred_check_branch
        %581 = sbr.rel (0) target = $region324
      $region323: #{fasttext_forward.1} parent=23 // pred_region
        %582 = vsyncadd [#allocation3], 16
      $region324: #{fasttext_forward.1} parent=23 // pred_fallthru
        _
      %s583 = sadd.s32 %s104, 10
      %s584 = sld [smem:[#allocation5 + %s583]]
      %s585 = scalar_lea.vmem %s1, %s584
      %s586 = scalar_lea.vmem [#allocation2], 10
      %p588 = scmp.lt.u32.totalorder 1, 8
      %p589 = pneg %p588
      // Predicated region
      $region325: #{fasttext_forward.1} parent=23 // pred_check
        _
      $region326: #{fasttext_forward.1} parent=23 // pred_check_branch
        %591 = sbr.rel (%p588) target = $region328
      $region327: #{fasttext_forward.1} parent=23 // pred_region
        %s606 = sand.u32 1, 7
        %p607 = scmp.eq.s32.totalorder %s606, 0
        %p608 = pneg %p607
        // Predicated region
        $region340: #{fasttext_forward.1} parent=327 // pred_check
          _
        $region341: #{fasttext_forward.1} parent=327 // pred_check_branch
          %610 = sbr.rel (%p607) target = $region343
        $region342: #{fasttext_forward.1} parent=327 // pred_region
          %s611 = sand.u32 1, 7
          %s612 = ssub.s32 1, %s611
          %s613 = scalar_lea.vmem %s585, %s612
          %s614 = ssub.s32 1, %s611
          %s615 = scalar_lea.vmem %s586, %s614 [#allocation2]
          %s616 = sshllo.u32 0, %s611
          loop: start=0, step=1, limit=1
          $region344: #{fasttext_forward.1} parent=342 // loop_pre_header
            _
          $region345: #{fasttext_forward.1} parent=342 // loop_header
            %s618 = sphi 0, %s622
            %p619 = scmp.ge.s32.totalorder %s618, 1
            %s623 = sphi %s613, %s613
            %s624 = sphi %s615, %s615
          $region346: #{fasttext_forward.1} parent=342 // loop_header_branch
            %621 = sbr.rel (%p619) target = $region350
          $region347: #{fasttext_forward.1} parent=342 // loop_body
            %v625 = vld [vmem:[%s623] sm:%s616]
            %626 = vst [vmem:[%s624] sm:%s616] %v625
          $region348: #{fasttext_forward.1} parent=342 // loop_footer
            %s622 = sadd.s32 1, %s618
          $region349: #{fasttext_forward.1} parent=342 // loop_footer_branch
            %617 = sbr.rel target = $region345
          $region350: #{fasttext_forward.1} parent=342 // loop_exit
            _
        $region343: #{fasttext_forward.1} parent=327 // pred_fallthru
          _
      $region328: #{fasttext_forward.1} parent=23 // pred_fallthru
        _
      // Predicated region
      $region329: #{fasttext_forward.1} parent=23 // pred_check
        %p592 = pneg %p588
      $region330: #{fasttext_forward.1} parent=23 // pred_check_branch
        %594 = sbr.rel (%p592) target = $region332
      $region331: #{fasttext_forward.1} parent=23 // pred_region
        %s595 = sshllo.u32 0, 1
        loop: start=0, step=1, limit=1
        $region333: #{fasttext_forward.1} parent=331 // loop_pre_header
          _
        $region334: #{fasttext_forward.1} parent=331 // loop_header
          %s597 = sphi 0, %s601
          %p598 = scmp.ge.s32.totalorder %s597, 1
          %s602 = sphi %s585, %s585
          %s603 = sphi %s586, %s586
        $region335: #{fasttext_forward.1} parent=331 // loop_header_branch
          %600 = sbr.rel (%p598) target = $region339
        $region336: #{fasttext_forward.1} parent=331 // loop_body
          %v604 = vld [vmem:[%s602] sm:%s595]
          %605 = vst [vmem:[%s603] sm:%s595] %v604
        $region337: #{fasttext_forward.1} parent=331 // loop_footer
          %s601 = sadd.s32 1, %s597
        $region338: #{fasttext_forward.1} parent=331 // loop_footer_branch
          %596 = sbr.rel target = $region334
        $region339: #{fasttext_forward.1} parent=331 // loop_exit
          _
      $region332: #{fasttext_forward.1} parent=23 // pred_fallthru
        _
      // Predicated region
      $region351: #{fasttext_forward.1} parent=23 // pred_check
        _
      $region352: #{fasttext_forward.1} parent=23 // pred_check_branch
        %629 = sbr.rel (0) target = $region354
      $region353: #{fasttext_forward.1} parent=23 // pred_region
        %630 = vsyncadd [#allocation3], 16
      $region354: #{fasttext_forward.1} parent=23 // pred_fallthru
        _
      %s631 = sadd.s32 %s104, 11
      %s632 = sld [smem:[#allocation5 + %s631]]
      %s633 = scalar_lea.vmem %s1, %s632
      %s634 = scalar_lea.vmem [#allocation2], 11
      %p636 = scmp.lt.u32.totalorder 1, 8
      %p637 = pneg %p636
      // Predicated region
      $region355: #{fasttext_forward.1} parent=23 // pred_check
        _
      $region356: #{fasttext_forward.1} parent=23 // pred_check_branch
        %639 = sbr.rel (%p636) target = $region358
      $region357: #{fasttext_forward.1} parent=23 // pred_region
        %s654 = sand.u32 1, 7
        %p655 = scmp.eq.s32.totalorder %s654, 0
        %p656 = pneg %p655
        // Predicated region
        $region370: #{fasttext_forward.1} parent=357 // pred_check
          _
        $region371: #{fasttext_forward.1} parent=357 // pred_check_branch
          %658 = sbr.rel (%p655) target = $region373
        $region372: #{fasttext_forward.1} parent=357 // pred_region
          %s659 = sand.u32 1, 7
          %s660 = ssub.s32 1, %s659
          %s661 = scalar_lea.vmem %s633, %s660
          %s662 = ssub.s32 1, %s659
          %s663 = scalar_lea.vmem %s634, %s662 [#allocation2]
          %s664 = sshllo.u32 0, %s659
          loop: start=0, step=1, limit=1
          $region374: #{fasttext_forward.1} parent=372 // loop_pre_header
            _
          $region375: #{fasttext_forward.1} parent=372 // loop_header
            %s666 = sphi 0, %s670
            %p667 = scmp.ge.s32.totalorder %s666, 1
            %s671 = sphi %s661, %s661
            %s672 = sphi %s663, %s663
          $region376: #{fasttext_forward.1} parent=372 // loop_header_branch
            %669 = sbr.rel (%p667) target = $region380
          $region377: #{fasttext_forward.1} parent=372 // loop_body
            %v673 = vld [vmem:[%s671] sm:%s664]
            %674 = vst [vmem:[%s672] sm:%s664] %v673
          $region378: #{fasttext_forward.1} parent=372 // loop_footer
            %s670 = sadd.s32 1, %s666
          $region379: #{fasttext_forward.1} parent=372 // loop_footer_branch
            %665 = sbr.rel target = $region375
          $region380: #{fasttext_forward.1} parent=372 // loop_exit
            _
        $region373: #{fasttext_forward.1} parent=357 // pred_fallthru
          _
      $region358: #{fasttext_forward.1} parent=23 // pred_fallthru
        _
      // Predicated region
      $region359: #{fasttext_forward.1} parent=23 // pred_check
        %p640 = pneg %p636
      $region360: #{fasttext_forward.1} parent=23 // pred_check_branch
        %642 = sbr.rel (%p640) target = $region362
      $region361: #{fasttext_forward.1} parent=23 // pred_region
        %s643 = sshllo.u32 0, 1
        loop: start=0, step=1, limit=1
        $region363: #{fasttext_forward.1} parent=361 // loop_pre_header
          _
        $region364: #{fasttext_forward.1} parent=361 // loop_header
          %s645 = sphi 0, %s649
          %p646 = scmp.ge.s32.totalorder %s645, 1
          %s650 = sphi %s633, %s633
          %s651 = sphi %s634, %s634
        $region365: #{fasttext_forward.1} parent=361 // loop_header_branch
          %648 = sbr.rel (%p646) target = $region369
        $region366: #{fasttext_forward.1} parent=361 // loop_body
          %v652 = vld [vmem:[%s650] sm:%s643]
          %653 = vst [vmem:[%s651] sm:%s643] %v652
        $region367: #{fasttext_forward.1} parent=361 // loop_footer
          %s649 = sadd.s32 1, %s645
        $region368: #{fasttext_forward.1} parent=361 // loop_footer_branch
          %644 = sbr.rel target = $region364
        $region369: #{fasttext_forward.1} parent=361 // loop_exit
          _
      $region362: #{fasttext_forward.1} parent=23 // pred_fallthru
        _
      // Predicated region
      $region381: #{fasttext_forward.1} parent=23 // pred_check
        _
      $region382: #{fasttext_forward.1} parent=23 // pred_check_branch
        %677 = sbr.rel (0) target = $region384
      $region383: #{fasttext_forward.1} parent=23 // pred_region
        %678 = vsyncadd [#allocation3], 16
      $region384: #{fasttext_forward.1} parent=23 // pred_fallthru
        _
      %s679 = sadd.s32 %s104, 12
      %s680 = sld [smem:[#allocation5 + %s679]]
      %s681 = scalar_lea.vmem %s1, %s680
      %s682 = scalar_lea.vmem [#allocation2], 12
      %p684 = scmp.lt.u32.totalorder 1, 8
      %p685 = pneg %p684
      // Predicated region
      $region385: #{fasttext_forward.1} parent=23 // pred_check
        _
      $region386: #{fasttext_forward.1} parent=23 // pred_check_branch
        %687 = sbr.rel (%p684) target = $region388
      $region387: #{fasttext_forward.1} parent=23 // pred_region
        %s702 = sand.u32 1, 7
        %p703 = scmp.eq.s32.totalorder %s702, 0
        %p704 = pneg %p703
        // Predicated region
        $region400: #{fasttext_forward.1} parent=387 // pred_check
          _
        $region401: #{fasttext_forward.1} parent=387 // pred_check_branch
          %706 = sbr.rel (%p703) target = $region403
        $region402: #{fasttext_forward.1} parent=387 // pred_region
          %s707 = sand.u32 1, 7
          %s708 = ssub.s32 1, %s707
          %s709 = scalar_lea.vmem %s681, %s708
          %s710 = ssub.s32 1, %s707
          %s711 = scalar_lea.vmem %s682, %s710 [#allocation2]
          %s712 = sshllo.u32 0, %s707
          loop: start=0, step=1, limit=1
          $region404: #{fasttext_forward.1} parent=402 // loop_pre_header
            _
          $region405: #{fasttext_forward.1} parent=402 // loop_header
            %s714 = sphi 0, %s718
            %p715 = scmp.ge.s32.totalorder %s714, 1
            %s719 = sphi %s709, %s709
            %s720 = sphi %s711, %s711
          $region406: #{fasttext_forward.1} parent=402 // loop_header_branch
            %717 = sbr.rel (%p715) target = $region410
          $region407: #{fasttext_forward.1} parent=402 // loop_body
            %v721 = vld [vmem:[%s719] sm:%s712]
            %722 = vst [vmem:[%s720] sm:%s712] %v721
          $region408: #{fasttext_forward.1} parent=402 // loop_footer
            %s718 = sadd.s32 1, %s714
          $region409: #{fasttext_forward.1} parent=402 // loop_footer_branch
            %713 = sbr.rel target = $region405
          $region410: #{fasttext_forward.1} parent=402 // loop_exit
            _
        $region403: #{fasttext_forward.1} parent=387 // pred_fallthru
          _
      $region388: #{fasttext_forward.1} parent=23 // pred_fallthru
        _
      // Predicated region
      $region389: #{fasttext_forward.1} parent=23 // pred_check
        %p688 = pneg %p684
      $region390: #{fasttext_forward.1} parent=23 // pred_check_branch
        %690 = sbr.rel (%p688) target = $region392
      $region391: #{fasttext_forward.1} parent=23 // pred_region
        %s691 = sshllo.u32 0, 1
        loop: start=0, step=1, limit=1
        $region393: #{fasttext_forward.1} parent=391 // loop_pre_header
          _
        $region394: #{fasttext_forward.1} parent=391 // loop_header
          %s693 = sphi 0, %s697
          %p694 = scmp.ge.s32.totalorder %s693, 1
          %s698 = sphi %s681, %s681
          %s699 = sphi %s682, %s682
        $region395: #{fasttext_forward.1} parent=391 // loop_header_branch
          %696 = sbr.rel (%p694) target = $region399
        $region396: #{fasttext_forward.1} parent=391 // loop_body
          %v700 = vld [vmem:[%s698] sm:%s691]
          %701 = vst [vmem:[%s699] sm:%s691] %v700
        $region397: #{fasttext_forward.1} parent=391 // loop_footer
          %s697 = sadd.s32 1, %s693
        $region398: #{fasttext_forward.1} parent=391 // loop_footer_branch
          %692 = sbr.rel target = $region394
        $region399: #{fasttext_forward.1} parent=391 // loop_exit
          _
      $region392: #{fasttext_forward.1} parent=23 // pred_fallthru
        _
      // Predicated region
      $region411: #{fasttext_forward.1} parent=23 // pred_check
        _
      $region412: #{fasttext_forward.1} parent=23 // pred_check_branch
        %725 = sbr.rel (0) target = $region414
      $region413: #{fasttext_forward.1} parent=23 // pred_region
        %726 = vsyncadd [#allocation3], 16
      $region414: #{fasttext_forward.1} parent=23 // pred_fallthru
        _
      %s727 = sadd.s32 %s104, 13
      %s728 = sld [smem:[#allocation5 + %s727]]
      %s729 = scalar_lea.vmem %s1, %s728
      %s730 = scalar_lea.vmem [#allocation2], 13
      %p732 = scmp.lt.u32.totalorder 1, 8
      %p733 = pneg %p732
      // Predicated region
      $region415: #{fasttext_forward.1} parent=23 // pred_check
        _
      $region416: #{fasttext_forward.1} parent=23 // pred_check_branch
        %735 = sbr.rel (%p732) target = $region418
      $region417: #{fasttext_forward.1} parent=23 // pred_region
        %s750 = sand.u32 1, 7
        %p751 = scmp.eq.s32.totalorder %s750, 0
        %p752 = pneg %p751
        // Predicated region
        $region430: #{fasttext_forward.1} parent=417 // pred_check
          _
        $region431: #{fasttext_forward.1} parent=417 // pred_check_branch
          %754 = sbr.rel (%p751) target = $region433
        $region432: #{fasttext_forward.1} parent=417 // pred_region
          %s755 = sand.u32 1, 7
          %s756 = ssub.s32 1, %s755
          %s757 = scalar_lea.vmem %s729, %s756
          %s758 = ssub.s32 1, %s755
          %s759 = scalar_lea.vmem %s730, %s758 [#allocation2]
          %s760 = sshllo.u32 0, %s755
          loop: start=0, step=1, limit=1
          $region434: #{fasttext_forward.1} parent=432 // loop_pre_header
            _
          $region435: #{fasttext_forward.1} parent=432 // loop_header
            %s762 = sphi 0, %s766
            %p763 = scmp.ge.s32.totalorder %s762, 1
            %s767 = sphi %s757, %s757
            %s768 = sphi %s759, %s759
          $region436: #{fasttext_forward.1} parent=432 // loop_header_branch
            %765 = sbr.rel (%p763) target = $region440
          $region437: #{fasttext_forward.1} parent=432 // loop_body
            %v769 = vld [vmem:[%s767] sm:%s760]
            %770 = vst [vmem:[%s768] sm:%s760] %v769
          $region438: #{fasttext_forward.1} parent=432 // loop_footer
            %s766 = sadd.s32 1, %s762
          $region439: #{fasttext_forward.1} parent=432 // loop_footer_branch
            %761 = sbr.rel target = $region435
          $region440: #{fasttext_forward.1} parent=432 // loop_exit
            _
        $region433: #{fasttext_forward.1} parent=417 // pred_fallthru
          _
      $region418: #{fasttext_forward.1} parent=23 // pred_fallthru
        _
      // Predicated region
      $region419: #{fasttext_forward.1} parent=23 // pred_check
        %p736 = pneg %p732
      $region420: #{fasttext_forward.1} parent=23 // pred_check_branch
        %738 = sbr.rel (%p736) target = $region422
      $region421: #{fasttext_forward.1} parent=23 // pred_region
        %s739 = sshllo.u32 0, 1
        loop: start=0, step=1, limit=1
        $region423: #{fasttext_forward.1} parent=421 // loop_pre_header
          _
        $region424: #{fasttext_forward.1} parent=421 // loop_header
          %s741 = sphi 0, %s745
          %p742 = scmp.ge.s32.totalorder %s741, 1
          %s746 = sphi %s729, %s729
          %s747 = sphi %s730, %s730
        $region425: #{fasttext_forward.1} parent=421 // loop_header_branch
          %744 = sbr.rel (%p742) target = $region429
        $region426: #{fasttext_forward.1} parent=421 // loop_body
          %v748 = vld [vmem:[%s746] sm:%s739]
          %749 = vst [vmem:[%s747] sm:%s739] %v748
        $region427: #{fasttext_forward.1} parent=421 // loop_footer
          %s745 = sadd.s32 1, %s741
        $region428: #{fasttext_forward.1} parent=421 // loop_footer_branch
          %740 = sbr.rel target = $region424
        $region429: #{fasttext_forward.1} parent=421 // loop_exit
          _
      $region422: #{fasttext_forward.1} parent=23 // pred_fallthru
        _
      // Predicated region
      $region441: #{fasttext_forward.1} parent=23 // pred_check
        _
      $region442: #{fasttext_forward.1} parent=23 // pred_check_branch
        %773 = sbr.rel (0) target = $region444
      $region443: #{fasttext_forward.1} parent=23 // pred_region
        %774 = vsyncadd [#allocation3], 16
      $region444: #{fasttext_forward.1} parent=23 // pred_fallthru
        _
      %s775 = sadd.s32 %s104, 14
      %s776 = sld [smem:[#allocation5 + %s775]]
      %s777 = scalar_lea.vmem %s1, %s776
      %s778 = scalar_lea.vmem [#allocation2], 14
      %p780 = scmp.lt.u32.totalorder 1, 8
      %p781 = pneg %p780
      // Predicated region
      $region445: #{fasttext_forward.1} parent=23 // pred_check
        _
      $region446: #{fasttext_forward.1} parent=23 // pred_check_branch
        %783 = sbr.rel (%p780) target = $region448
      $region447: #{fasttext_forward.1} parent=23 // pred_region
        %s798 = sand.u32 1, 7
        %p799 = scmp.eq.s32.totalorder %s798, 0
        %p800 = pneg %p799
        // Predicated region
        $region460: #{fasttext_forward.1} parent=447 // pred_check
          _
        $region461: #{fasttext_forward.1} parent=447 // pred_check_branch
          %802 = sbr.rel (%p799) target = $region463
        $region462: #{fasttext_forward.1} parent=447 // pred_region
          %s803 = sand.u32 1, 7
          %s804 = ssub.s32 1, %s803
          %s805 = scalar_lea.vmem %s777, %s804
          %s806 = ssub.s32 1, %s803
          %s807 = scalar_lea.vmem %s778, %s806 [#allocation2]
          %s808 = sshllo.u32 0, %s803
          loop: start=0, step=1, limit=1
          $region464: #{fasttext_forward.1} parent=462 // loop_pre_header
            _
          $region465: #{fasttext_forward.1} parent=462 // loop_header
            %s810 = sphi 0, %s814
            %p811 = scmp.ge.s32.totalorder %s810, 1
            %s815 = sphi %s805, %s805
            %s816 = sphi %s807, %s807
          $region466: #{fasttext_forward.1} parent=462 // loop_header_branch
            %813 = sbr.rel (%p811) target = $region470
          $region467: #{fasttext_forward.1} parent=462 // loop_body
            %v817 = vld [vmem:[%s815] sm:%s808]
            %818 = vst [vmem:[%s816] sm:%s808] %v817
          $region468: #{fasttext_forward.1} parent=462 // loop_footer
            %s814 = sadd.s32 1, %s810
          $region469: #{fasttext_forward.1} parent=462 // loop_footer_branch
            %809 = sbr.rel target = $region465
          $region470: #{fasttext_forward.1} parent=462 // loop_exit
            _
        $region463: #{fasttext_forward.1} parent=447 // pred_fallthru
          _
      $region448: #{fasttext_forward.1} parent=23 // pred_fallthru
        _
      // Predicated region
      $region449: #{fasttext_forward.1} parent=23 // pred_check
        %p784 = pneg %p780
      $region450: #{fasttext_forward.1} parent=23 // pred_check_branch
        %786 = sbr.rel (%p784) target = $region452
      $region451: #{fasttext_forward.1} parent=23 // pred_region
        %s787 = sshllo.u32 0, 1
        loop: start=0, step=1, limit=1
        $region453: #{fasttext_forward.1} parent=451 // loop_pre_header
          _
        $region454: #{fasttext_forward.1} parent=451 // loop_header
          %s789 = sphi 0, %s793
          %p790 = scmp.ge.s32.totalorder %s789, 1
          %s794 = sphi %s777, %s777
          %s795 = sphi %s778, %s778
        $region455: #{fasttext_forward.1} parent=451 // loop_header_branch
          %792 = sbr.rel (%p790) target = $region459
        $region456: #{fasttext_forward.1} parent=451 // loop_body
          %v796 = vld [vmem:[%s794] sm:%s787]
          %797 = vst [vmem:[%s795] sm:%s787] %v796
        $region457: #{fasttext_forward.1} parent=451 // loop_footer
          %s793 = sadd.s32 1, %s789
        $region458: #{fasttext_forward.1} parent=451 // loop_footer_branch
          %788 = sbr.rel target = $region454
        $region459: #{fasttext_forward.1} parent=451 // loop_exit
          _
      $region452: #{fasttext_forward.1} parent=23 // pred_fallthru
        _
      // Predicated region
      $region471: #{fasttext_forward.1} parent=23 // pred_check
        _
      $region472: #{fasttext_forward.1} parent=23 // pred_check_branch
        %821 = sbr.rel (0) target = $region474
      $region473: #{fasttext_forward.1} parent=23 // pred_region
        %822 = vsyncadd [#allocation3], 16
      $region474: #{fasttext_forward.1} parent=23 // pred_fallthru
        _
      %s823 = sadd.s32 %s104, 15
      %s824 = sld [smem:[#allocation5 + %s823]]
      %s825 = scalar_lea.vmem %s1, %s824
      %s826 = scalar_lea.vmem [#allocation2], 15
      %p828 = scmp.lt.u32.totalorder 1, 8
      %p829 = pneg %p828
      // Predicated region
      $region475: #{fasttext_forward.1} parent=23 // pred_check
        _
      $region476: #{fasttext_forward.1} parent=23 // pred_check_branch
        %831 = sbr.rel (%p828) target = $region478
      $region477: #{fasttext_forward.1} parent=23 // pred_region
        %s846 = sand.u32 1, 7
        %p847 = scmp.eq.s32.totalorder %s846, 0
        %p848 = pneg %p847
        // Predicated region
        $region490: #{fasttext_forward.1} parent=477 // pred_check
          _
        $region491: #{fasttext_forward.1} parent=477 // pred_check_branch
          %850 = sbr.rel (%p847) target = $region493
        $region492: #{fasttext_forward.1} parent=477 // pred_region
          %s851 = sand.u32 1, 7
          %s852 = ssub.s32 1, %s851
          %s853 = scalar_lea.vmem %s825, %s852
          %s854 = ssub.s32 1, %s851
          %s855 = scalar_lea.vmem %s826, %s854 [#allocation2]
          %s856 = sshllo.u32 0, %s851
          loop: start=0, step=1, limit=1
          $region494: #{fasttext_forward.1} parent=492 // loop_pre_header
            _
          $region495: #{fasttext_forward.1} parent=492 // loop_header
            %s858 = sphi 0, %s862
            %p859 = scmp.ge.s32.totalorder %s858, 1
            %s863 = sphi %s853, %s853
            %s864 = sphi %s855, %s855
          $region496: #{fasttext_forward.1} parent=492 // loop_header_branch
            %861 = sbr.rel (%p859) target = $region500
          $region497: #{fasttext_forward.1} parent=492 // loop_body
            %v865 = vld [vmem:[%s863] sm:%s856]
            %866 = vst [vmem:[%s864] sm:%s856] %v865
          $region498: #{fasttext_forward.1} parent=492 // loop_footer
            %s862 = sadd.s32 1, %s858
          $region499: #{fasttext_forward.1} parent=492 // loop_footer_branch
            %857 = sbr.rel target = $region495
          $region500: #{fasttext_forward.1} parent=492 // loop_exit
            _
        $region493: #{fasttext_forward.1} parent=477 // pred_fallthru
          _
      $region478: #{fasttext_forward.1} parent=23 // pred_fallthru
        _
      // Predicated region
      $region479: #{fasttext_forward.1} parent=23 // pred_check
        %p832 = pneg %p828
      $region480: #{fasttext_forward.1} parent=23 // pred_check_branch
        %834 = sbr.rel (%p832) target = $region482
      $region481: #{fasttext_forward.1} parent=23 // pred_region
        %s835 = sshllo.u32 0, 1
        loop: start=0, step=1, limit=1
        $region483: #{fasttext_forward.1} parent=481 // loop_pre_header
          _
        $region484: #{fasttext_forward.1} parent=481 // loop_header
          %s837 = sphi 0, %s841
          %p838 = scmp.ge.s32.totalorder %s837, 1
          %s842 = sphi %s825, %s825
          %s843 = sphi %s826, %s826
        $region485: #{fasttext_forward.1} parent=481 // loop_header_branch
          %840 = sbr.rel (%p838) target = $region489
        $region486: #{fasttext_forward.1} parent=481 // loop_body
          %v844 = vld [vmem:[%s842] sm:%s835]
          %845 = vst [vmem:[%s843] sm:%s835] %v844
        $region487: #{fasttext_forward.1} parent=481 // loop_footer
          %s841 = sadd.s32 1, %s837
        $region488: #{fasttext_forward.1} parent=481 // loop_footer_branch
          %836 = sbr.rel target = $region484
        $region489: #{fasttext_forward.1} parent=481 // loop_exit
          _
      $region482: #{fasttext_forward.1} parent=23 // pred_fallthru
        _
      // Predicated region
      $region501: #{fasttext_forward.1} parent=23 // pred_check
        _
      $region502: #{fasttext_forward.1} parent=23 // pred_check_branch
        %869 = sbr.rel (0) target = $region504
      $region503: #{fasttext_forward.1} parent=23 // pred_region
        %870 = vsyncadd [#allocation3], 16
      $region504: #{fasttext_forward.1} parent=23 // pred_fallthru
        _
      %v871 = vld [vmem:[%s2] sm:$0x1]
      loop: start=0, step=1, limit=8
      $region505: #{fasttext_forward.1} parent=23 // loop_pre_header
        _
      $region506: #{fasttext_forward.1} parent=23 // loop_header
        %s873 = sphi 0, %s877
        %p874 = scmp.ge.s32.totalorder %s873, 8
      $region507: #{fasttext_forward.1} parent=23 // loop_header_branch
        %876 = sbr.rel (%p874) target = $region511
      $region508: #{fasttext_forward.1} parent=23 // loop_body
        %s878 = sand.u32 %s873, 1
        %s879 = scalar_lea.sflag [#allocation3], %s878
        %s880 = smul.u32 1, 1
        %s881 = sshll.u32 %s880, 4
        %882 = dma.done %s879, %s881
        %s883 = sshll.u32 %s880, 4
        %884 = dma.done %s879, %s883
        %s885 = sshll.u32 %s880, 4
        %886 = dma.done %s879, %s885
        %s887 = sshll.u32 %s880, 4
        %888 = dma.done %s879, %s887
        %s889 = sshll.u32 %s880, 4
        %890 = dma.done %s879, %s889
        %s891 = sshll.u32 %s880, 4
        %892 = dma.done %s879, %s891
        %s893 = sshll.u32 %s880, 4
        %894 = dma.done %s879, %s893
        %s895 = sshll.u32 %s880, 4
        %896 = dma.done %s879, %s895
        %s897 = sshll.u32 %s880, 4
        %898 = dma.done %s879, %s897
        %s899 = sshll.u32 %s880, 4
        %900 = dma.done %s879, %s899
        %s901 = sshll.u32 %s880, 4
        %902 = dma.done %s879, %s901
        %s903 = sshll.u32 %s880, 4
        %904 = dma.done %s879, %s903
        %s905 = sshll.u32 %s880, 4
        %906 = dma.done %s879, %s905
        %s907 = sshll.u32 %s880, 4
        %908 = dma.done %s879, %s907
        %s909 = sshll.u32 %s880, 4
        %910 = dma.done %s879, %s909
        %s911 = sshll.u32 %s880, 4
        %912 = dma.done %s879, %s911
        %s913 = sadd.s32 %s873, 1
        %p914 = scmp.lt.s32.totalorder %s913, 8
        // Predicated region
        $region512: #{fasttext_forward.1} parent=508 // pred_check
          %p915 = pneg %p914
        $region513: #{fasttext_forward.1} parent=508 // pred_check_branch
          %917 = sbr.rel (%p915) target = $region515
        $region514: #{fasttext_forward.1} parent=508 // pred_region
          %s918 = ssub.s32 1, %s878
          %s919 = sadd.s32 %s103, %s913
          %s920 = smul.u32 %s919, 128
          %s921 = sld [smem:[#allocation5 + %s920]]
          %s922 = scalar_lea.vmem %s1, %s921
          %s923 = smul.u32 %s918, 16
          %s924 = scalar_lea.vmem [#allocation2], %s923
          %s925 = scalar_lea.sflag [#allocation3], %s918
          %p927 = scmp.lt.u32.totalorder 1, 8
          %p928 = pneg %p927
          // Predicated region
          $region516: #{fasttext_forward.1} parent=514 // pred_check
            _
          $region517: #{fasttext_forward.1} parent=514 // pred_check_branch
            %930 = sbr.rel (%p927) target = $region519
          $region518: #{fasttext_forward.1} parent=514 // pred_region
            %s945 = sand.u32 1, 7
            %p946 = scmp.eq.s32.totalorder %s945, 0
            %p947 = pneg %p946
            // Predicated region
            $region531: #{fasttext_forward.1} parent=518 // pred_check
              _
            $region532: #{fasttext_forward.1} parent=518 // pred_check_branch
              %949 = sbr.rel (%p946) target = $region534
            $region533: #{fasttext_forward.1} parent=518 // pred_region
              %s950 = sand.u32 1, 7
              %s951 = ssub.s32 1, %s950
              %s952 = scalar_lea.vmem %s922, %s951
              %s953 = ssub.s32 1, %s950
              %s954 = scalar_lea.vmem %s924, %s953 [#allocation2]
              %s955 = sshllo.u32 0, %s950
              loop: start=0, step=1, limit=1
              $region535: #{fasttext_forward.1} parent=533 // loop_pre_header
                _
              $region536: #{fasttext_forward.1} parent=533 // loop_header
                %s957 = sphi 0, %s961
                %p958 = scmp.ge.s32.totalorder %s957, 1
                %s962 = sphi %s952, %s952
                %s963 = sphi %s954, %s954
              $region537: #{fasttext_forward.1} parent=533 // loop_header_branch
                %960 = sbr.rel (%p958) target = $region541
              $region538: #{fasttext_forward.1} parent=533 // loop_body
                %v964 = vld [vmem:[%s962] sm:%s955]
                %965 = vst [vmem:[%s963] sm:%s955] %v964
              $region539: #{fasttext_forward.1} parent=533 // loop_footer
                %s961 = sadd.s32 1, %s957
              $region540: #{fasttext_forward.1} parent=533 // loop_footer_branch
                %956 = sbr.rel target = $region536
              $region541: #{fasttext_forward.1} parent=533 // loop_exit
                _
            $region534: #{fasttext_forward.1} parent=518 // pred_fallthru
              _
          $region519: #{fasttext_forward.1} parent=514 // pred_fallthru
            _
          // Predicated region
          $region520: #{fasttext_forward.1} parent=514 // pred_check
            %p931 = pneg %p927
          $region521: #{fasttext_forward.1} parent=514 // pred_check_branch
            %933 = sbr.rel (%p931) target = $region523
          $region522: #{fasttext_forward.1} parent=514 // pred_region
            %s934 = sshllo.u32 0, 1
            loop: start=0, step=1, limit=1
            $region524: #{fasttext_forward.1} parent=522 // loop_pre_header
              _
            $region525: #{fasttext_forward.1} parent=522 // loop_header
              %s936 = sphi 0, %s940
              %p937 = scmp.ge.s32.totalorder %s936, 1
              %s941 = sphi %s922, %s922
              %s942 = sphi %s924, %s924
            $region526: #{fasttext_forward.1} parent=522 // loop_header_branch
              %939 = sbr.rel (%p937) target = $region530
            $region527: #{fasttext_forward.1} parent=522 // loop_body
              %v943 = vld [vmem:[%s941] sm:%s934]
              %944 = vst [vmem:[%s942] sm:%s934] %v943
            $region528: #{fasttext_forward.1} parent=522 // loop_footer
              %s940 = sadd.s32 1, %s936
            $region529: #{fasttext_forward.1} parent=522 // loop_footer_branch
              %935 = sbr.rel target = $region525
            $region530: #{fasttext_forward.1} parent=522 // loop_exit
              _
          $region523: #{fasttext_forward.1} parent=514 // pred_fallthru
            _
          // Predicated region
          $region542: #{fasttext_forward.1} parent=514 // pred_check
            _
          $region543: #{fasttext_forward.1} parent=514 // pred_check_branch
            %968 = sbr.rel (0) target = $region545
          $region544: #{fasttext_forward.1} parent=514 // pred_region
            %969 = vsyncadd %s925, 16
          $region545: #{fasttext_forward.1} parent=514 // pred_fallthru
            _
          %s970 = sadd.s32 %s920, 1
          %s971 = sld [smem:[#allocation5 + %s970]]
          %s972 = scalar_lea.vmem %s1, %s971
          %s973 = sadd.s32 1, %s923
          %s974 = scalar_lea.vmem [#allocation2], %s973
          %p976 = scmp.lt.u32.totalorder 1, 8
          %p977 = pneg %p976
          // Predicated region
          $region546: #{fasttext_forward.1} parent=514 // pred_check
            _
          $region547: #{fasttext_forward.1} parent=514 // pred_check_branch
            %979 = sbr.rel (%p976) target = $region549
          $region548: #{fasttext_forward.1} parent=514 // pred_region
            %s994 = sand.u32 1, 7
            %p995 = scmp.eq.s32.totalorder %s994, 0
            %p996 = pneg %p995
            // Predicated region
            $region561: #{fasttext_forward.1} parent=548 // pred_check
              _
            $region562: #{fasttext_forward.1} parent=548 // pred_check_branch
              %998 = sbr.rel (%p995) target = $region564
            $region563: #{fasttext_forward.1} parent=548 // pred_region
              %s999 = sand.u32 1, 7
              %s1000 = ssub.s32 1, %s999
              %s1001 = scalar_lea.vmem %s972, %s1000
              %s1002 = ssub.s32 1, %s999
              %s1003 = scalar_lea.vmem %s974, %s1002 [#allocation2]
              %s1004 = sshllo.u32 0, %s999
              loop: start=0, step=1, limit=1
              $region565: #{fasttext_forward.1} parent=563 // loop_pre_header
                _
              $region566: #{fasttext_forward.1} parent=563 // loop_header
                %s1006 = sphi 0, %s1010
                %p1007 = scmp.ge.s32.totalorder %s1006, 1
                %s1011 = sphi %s1001, %s1001
                %s1012 = sphi %s1003, %s1003
              $region567: #{fasttext_forward.1} parent=563 // loop_header_branch
                %1009 = sbr.rel (%p1007) target = $region571
              $region568: #{fasttext_forward.1} parent=563 // loop_body
                %v1013 = vld [vmem:[%s1011] sm:%s1004]
                %1014 = vst [vmem:[%s1012] sm:%s1004] %v1013
              $region569: #{fasttext_forward.1} parent=563 // loop_footer
                %s1010 = sadd.s32 1, %s1006
              $region570: #{fasttext_forward.1} parent=563 // loop_footer_branch
                %1005 = sbr.rel target = $region566
              $region571: #{fasttext_forward.1} parent=563 // loop_exit
                _
            $region564: #{fasttext_forward.1} parent=548 // pred_fallthru
              _
          $region549: #{fasttext_forward.1} parent=514 // pred_fallthru
            _
          // Predicated region
          $region550: #{fasttext_forward.1} parent=514 // pred_check
            %p980 = pneg %p976
          $region551: #{fasttext_forward.1} parent=514 // pred_check_branch
            %982 = sbr.rel (%p980) target = $region553
          $region552: #{fasttext_forward.1} parent=514 // pred_region
            %s983 = sshllo.u32 0, 1
            loop: start=0, step=1, limit=1
            $region554: #{fasttext_forward.1} parent=552 // loop_pre_header
              _
            $region555: #{fasttext_forward.1} parent=552 // loop_header
              %s985 = sphi 0, %s989
              %p986 = scmp.ge.s32.totalorder %s985, 1
              %s990 = sphi %s972, %s972
              %s991 = sphi %s974, %s974
            $region556: #{fasttext_forward.1} parent=552 // loop_header_branch
              %988 = sbr.rel (%p986) target = $region560
            $region557: #{fasttext_forward.1} parent=552 // loop_body
              %v992 = vld [vmem:[%s990] sm:%s983]
              %993 = vst [vmem:[%s991] sm:%s983] %v992
            $region558: #{fasttext_forward.1} parent=552 // loop_footer
              %s989 = sadd.s32 1, %s985
            $region559: #{fasttext_forward.1} parent=552 // loop_footer_branch
              %984 = sbr.rel target = $region555
            $region560: #{fasttext_forward.1} parent=552 // loop_exit
              _
          $region553: #{fasttext_forward.1} parent=514 // pred_fallthru
            _
          // Predicated region
          $region572: #{fasttext_forward.1} parent=514 // pred_check
            _
          $region573: #{fasttext_forward.1} parent=514 // pred_check_branch
            %1017 = sbr.rel (0) target = $region575
          $region574: #{fasttext_forward.1} parent=514 // pred_region
            %1018 = vsyncadd %s925, 16
          $region575: #{fasttext_forward.1} parent=514 // pred_fallthru
            _
          %s1019 = sadd.s32 %s920, 2
          %s1020 = sld [smem:[#allocation5 + %s1019]]
          %s1021 = scalar_lea.vmem %s1, %s1020
          %s1022 = sadd.s32 2, %s923
          %s1023 = scalar_lea.vmem [#allocation2], %s1022
          %p1025 = scmp.lt.u32.totalorder 1, 8
          %p1026 = pneg %p1025
          // Predicated region
          $region576: #{fasttext_forward.1} parent=514 // pred_check
            _
          $region577: #{fasttext_forward.1} parent=514 // pred_check_branch
            %1028 = sbr.rel (%p1025) target = $region579
          $region578: #{fasttext_forward.1} parent=514 // pred_region
            %s1043 = sand.u32 1, 7
            %p1044 = scmp.eq.s32.totalorder %s1043, 0
            %p1045 = pneg %p1044
            // Predicated region
            $region591: #{fasttext_forward.1} parent=578 // pred_check
              _
            $region592: #{fasttext_forward.1} parent=578 // pred_check_branch
              %1047 = sbr.rel (%p1044) target = $region594
            $region593: #{fasttext_forward.1} parent=578 // pred_region
              %s1048 = sand.u32 1, 7
              %s1049 = ssub.s32 1, %s1048
              %s1050 = scalar_lea.vmem %s1021, %s1049
              %s1051 = ssub.s32 1, %s1048
              %s1052 = scalar_lea.vmem %s1023, %s1051 [#allocation2]
              %s1053 = sshllo.u32 0, %s1048
              loop: start=0, step=1, limit=1
              $region595: #{fasttext_forward.1} parent=593 // loop_pre_header
                _
              $region596: #{fasttext_forward.1} parent=593 // loop_header
                %s1055 = sphi 0, %s1059
                %p1056 = scmp.ge.s32.totalorder %s1055, 1
                %s1060 = sphi %s1050, %s1050
                %s1061 = sphi %s1052, %s1052
              $region597: #{fasttext_forward.1} parent=593 // loop_header_branch
                %1058 = sbr.rel (%p1056) target = $region601
              $region598: #{fasttext_forward.1} parent=593 // loop_body
                %v1062 = vld [vmem:[%s1060] sm:%s1053]
                %1063 = vst [vmem:[%s1061] sm:%s1053] %v1062
              $region599: #{fasttext_forward.1} parent=593 // loop_footer
                %s1059 = sadd.s32 1, %s1055
              $region600: #{fasttext_forward.1} parent=593 // loop_footer_branch
                %1054 = sbr.rel target = $region596
              $region601: #{fasttext_forward.1} parent=593 // loop_exit
                _
            $region594: #{fasttext_forward.1} parent=578 // pred_fallthru
              _
          $region579: #{fasttext_forward.1} parent=514 // pred_fallthru
            _
          // Predicated region
          $region580: #{fasttext_forward.1} parent=514 // pred_check
            %p1029 = pneg %p1025
          $region581: #{fasttext_forward.1} parent=514 // pred_check_branch
            %1031 = sbr.rel (%p1029) target = $region583
          $region582: #{fasttext_forward.1} parent=514 // pred_region
            %s1032 = sshllo.u32 0, 1
            loop: start=0, step=1, limit=1
            $region584: #{fasttext_forward.1} parent=582 // loop_pre_header
              _
            $region585: #{fasttext_forward.1} parent=582 // loop_header
              %s1034 = sphi 0, %s1038
              %p1035 = scmp.ge.s32.totalorder %s1034, 1
              %s1039 = sphi %s1021, %s1021
              %s1040 = sphi %s1023, %s1023
            $region586: #{fasttext_forward.1} parent=582 // loop_header_branch
              %1037 = sbr.rel (%p1035) target = $region590
            $region587: #{fasttext_forward.1} parent=582 // loop_body
              %v1041 = vld [vmem:[%s1039] sm:%s1032]
              %1042 = vst [vmem:[%s1040] sm:%s1032] %v1041
            $region588: #{fasttext_forward.1} parent=582 // loop_footer
              %s1038 = sadd.s32 1, %s1034
            $region589: #{fasttext_forward.1} parent=582 // loop_footer_branch
              %1033 = sbr.rel target = $region585
            $region590: #{fasttext_forward.1} parent=582 // loop_exit
              _
          $region583: #{fasttext_forward.1} parent=514 // pred_fallthru
            _
          // Predicated region
          $region602: #{fasttext_forward.1} parent=514 // pred_check
            _
          $region603: #{fasttext_forward.1} parent=514 // pred_check_branch
            %1066 = sbr.rel (0) target = $region605
          $region604: #{fasttext_forward.1} parent=514 // pred_region
            %1067 = vsyncadd %s925, 16
          $region605: #{fasttext_forward.1} parent=514 // pred_fallthru
            _
          %s1068 = sadd.s32 %s920, 3
          %s1069 = sld [smem:[#allocation5 + %s1068]]
          %s1070 = scalar_lea.vmem %s1, %s1069
          %s1071 = sadd.s32 3, %s923
          %s1072 = scalar_lea.vmem [#allocation2], %s1071
          %p1074 = scmp.lt.u32.totalorder 1, 8
          %p1075 = pneg %p1074
          // Predicated region
          $region606: #{fasttext_forward.1} parent=514 // pred_check
            _
          $region607: #{fasttext_forward.1} parent=514 // pred_check_branch
            %1077 = sbr.rel (%p1074) target = $region609
          $region608: #{fasttext_forward.1} parent=514 // pred_region
            %s1092 = sand.u32 1, 7
            %p1093 = scmp.eq.s32.totalorder %s1092, 0
            %p1094 = pneg %p1093
            // Predicated region
            $region621: #{fasttext_forward.1} parent=608 // pred_check
              _
            $region622: #{fasttext_forward.1} parent=608 // pred_check_branch
              %1096 = sbr.rel (%p1093) target = $region624
            $region623: #{fasttext_forward.1} parent=608 // pred_region
              %s1097 = sand.u32 1, 7
              %s1098 = ssub.s32 1, %s1097
              %s1099 = scalar_lea.vmem %s1070, %s1098
              %s1100 = ssub.s32 1, %s1097
              %s1101 = scalar_lea.vmem %s1072, %s1100 [#allocation2]
              %s1102 = sshllo.u32 0, %s1097
              loop: start=0, step=1, limit=1
              $region625: #{fasttext_forward.1} parent=623 // loop_pre_header
                _
              $region626: #{fasttext_forward.1} parent=623 // loop_header
                %s1104 = sphi 0, %s1108
                %p1105 = scmp.ge.s32.totalorder %s1104, 1
                %s1109 = sphi %s1099, %s1099
                %s1110 = sphi %s1101, %s1101
              $region627: #{fasttext_forward.1} parent=623 // loop_header_branch
                %1107 = sbr.rel (%p1105) target = $region631
              $region628: #{fasttext_forward.1} parent=623 // loop_body
                %v1111 = vld [vmem:[%s1109] sm:%s1102]
                %1112 = vst [vmem:[%s1110] sm:%s1102] %v1111
              $region629: #{fasttext_forward.1} parent=623 // loop_footer
                %s1108 = sadd.s32 1, %s1104
              $region630: #{fasttext_forward.1} parent=623 // loop_footer_branch
                %1103 = sbr.rel target = $region626
              $region631: #{fasttext_forward.1} parent=623 // loop_exit
                _
            $region624: #{fasttext_forward.1} parent=608 // pred_fallthru
              _
          $region609: #{fasttext_forward.1} parent=514 // pred_fallthru
            _
          // Predicated region
          $region610: #{fasttext_forward.1} parent=514 // pred_check
            %p1078 = pneg %p1074
          $region611: #{fasttext_forward.1} parent=514 // pred_check_branch
            %1080 = sbr.rel (%p1078) target = $region613
          $region612: #{fasttext_forward.1} parent=514 // pred_region
            %s1081 = sshllo.u32 0, 1
            loop: start=0, step=1, limit=1
            $region614: #{fasttext_forward.1} parent=612 // loop_pre_header
              _
            $region615: #{fasttext_forward.1} parent=612 // loop_header
              %s1083 = sphi 0, %s1087
              %p1084 = scmp.ge.s32.totalorder %s1083, 1
              %s1088 = sphi %s1070, %s1070
              %s1089 = sphi %s1072, %s1072
            $region616: #{fasttext_forward.1} parent=612 // loop_header_branch
              %1086 = sbr.rel (%p1084) target = $region620
            $region617: #{fasttext_forward.1} parent=612 // loop_body
              %v1090 = vld [vmem:[%s1088] sm:%s1081]
              %1091 = vst [vmem:[%s1089] sm:%s1081] %v1090
            $region618: #{fasttext_forward.1} parent=612 // loop_footer
              %s1087 = sadd.s32 1, %s1083
            $region619: #{fasttext_forward.1} parent=612 // loop_footer_branch
              %1082 = sbr.rel target = $region615
            $region620: #{fasttext_forward.1} parent=612 // loop_exit
              _
          $region613: #{fasttext_forward.1} parent=514 // pred_fallthru
            _
          // Predicated region
          $region632: #{fasttext_forward.1} parent=514 // pred_check
            _
          $region633: #{fasttext_forward.1} parent=514 // pred_check_branch
            %1115 = sbr.rel (0) target = $region635
          $region634: #{fasttext_forward.1} parent=514 // pred_region
            %1116 = vsyncadd %s925, 16
          $region635: #{fasttext_forward.1} parent=514 // pred_fallthru
            _
          %s1117 = sadd.s32 %s920, 4
          %s1118 = sld [smem:[#allocation5 + %s1117]]
          %s1119 = scalar_lea.vmem %s1, %s1118
          %s1120 = sadd.s32 4, %s923
          %s1121 = scalar_lea.vmem [#allocation2], %s1120
          %p1123 = scmp.lt.u32.totalorder 1, 8
          %p1124 = pneg %p1123
          // Predicated region
          $region636: #{fasttext_forward.1} parent=514 // pred_check
            _
          $region637: #{fasttext_forward.1} parent=514 // pred_check_branch
            %1126 = sbr.rel (%p1123) target = $region639
          $region638: #{fasttext_forward.1} parent=514 // pred_region
            %s1141 = sand.u32 1, 7
            %p1142 = scmp.eq.s32.totalorder %s1141, 0
            %p1143 = pneg %p1142
            // Predicated region
            $region651: #{fasttext_forward.1} parent=638 // pred_check
              _
            $region652: #{fasttext_forward.1} parent=638 // pred_check_branch
              %1145 = sbr.rel (%p1142) target = $region654
            $region653: #{fasttext_forward.1} parent=638 // pred_region
              %s1146 = sand.u32 1, 7
              %s1147 = ssub.s32 1, %s1146
              %s1148 = scalar_lea.vmem %s1119, %s1147
              %s1149 = ssub.s32 1, %s1146
              %s1150 = scalar_lea.vmem %s1121, %s1149 [#allocation2]
              %s1151 = sshllo.u32 0, %s1146
              loop: start=0, step=1, limit=1
              $region655: #{fasttext_forward.1} parent=653 // loop_pre_header
                _
              $region656: #{fasttext_forward.1} parent=653 // loop_header
                %s1153 = sphi 0, %s1157
                %p1154 = scmp.ge.s32.totalorder %s1153, 1
                %s1158 = sphi %s1148, %s1148
                %s1159 = sphi %s1150, %s1150
              $region657: #{fasttext_forward.1} parent=653 // loop_header_branch
                %1156 = sbr.rel (%p1154) target = $region661
              $region658: #{fasttext_forward.1} parent=653 // loop_body
                %v1160 = vld [vmem:[%s1158] sm:%s1151]
                %1161 = vst [vmem:[%s1159] sm:%s1151] %v1160
              $region659: #{fasttext_forward.1} parent=653 // loop_footer
                %s1157 = sadd.s32 1, %s1153
              $region660: #{fasttext_forward.1} parent=653 // loop_footer_branch
                %1152 = sbr.rel target = $region656
              $region661: #{fasttext_forward.1} parent=653 // loop_exit
                _
            $region654: #{fasttext_forward.1} parent=638 // pred_fallthru
              _
          $region639: #{fasttext_forward.1} parent=514 // pred_fallthru
            _
          // Predicated region
          $region640: #{fasttext_forward.1} parent=514 // pred_check
            %p1127 = pneg %p1123
          $region641: #{fasttext_forward.1} parent=514 // pred_check_branch
            %1129 = sbr.rel (%p1127) target = $region643
          $region642: #{fasttext_forward.1} parent=514 // pred_region
            %s1130 = sshllo.u32 0, 1
            loop: start=0, step=1, limit=1
            $region644: #{fasttext_forward.1} parent=642 // loop_pre_header
              _
            $region645: #{fasttext_forward.1} parent=642 // loop_header
              %s1132 = sphi 0, %s1136
              %p1133 = scmp.ge.s32.totalorder %s1132, 1
              %s1137 = sphi %s1119, %s1119
              %s1138 = sphi %s1121, %s1121
            $region646: #{fasttext_forward.1} parent=642 // loop_header_branch
              %1135 = sbr.rel (%p1133) target = $region650
            $region647: #{fasttext_forward.1} parent=642 // loop_body
              %v1139 = vld [vmem:[%s1137] sm:%s1130]
              %1140 = vst [vmem:[%s1138] sm:%s1130] %v1139
            $region648: #{fasttext_forward.1} parent=642 // loop_footer
              %s1136 = sadd.s32 1, %s1132
            $region649: #{fasttext_forward.1} parent=642 // loop_footer_branch
              %1131 = sbr.rel target = $region645
            $region650: #{fasttext_forward.1} parent=642 // loop_exit
              _
          $region643: #{fasttext_forward.1} parent=514 // pred_fallthru
            _
          // Predicated region
          $region662: #{fasttext_forward.1} parent=514 // pred_check
            _
          $region663: #{fasttext_forward.1} parent=514 // pred_check_branch
            %1164 = sbr.rel (0) target = $region665
          $region664: #{fasttext_forward.1} parent=514 // pred_region
            %1165 = vsyncadd %s925, 16
          $region665: #{fasttext_forward.1} parent=514 // pred_fallthru
            _
          %s1166 = sadd.s32 %s920, 5
          %s1167 = sld [smem:[#allocation5 + %s1166]]
          %s1168 = scalar_lea.vmem %s1, %s1167
          %s1169 = sadd.s32 5, %s923
          %s1170 = scalar_lea.vmem [#allocation2], %s1169
          %p1172 = scmp.lt.u32.totalorder 1, 8
          %p1173 = pneg %p1172
          // Predicated region
          $region666: #{fasttext_forward.1} parent=514 // pred_check
            _
          $region667: #{fasttext_forward.1} parent=514 // pred_check_branch
            %1175 = sbr.rel (%p1172) target = $region669
          $region668: #{fasttext_forward.1} parent=514 // pred_region
            %s1190 = sand.u32 1, 7
            %p1191 = scmp.eq.s32.totalorder %s1190, 0
            %p1192 = pneg %p1191
            // Predicated region
            $region681: #{fasttext_forward.1} parent=668 // pred_check
              _
            $region682: #{fasttext_forward.1} parent=668 // pred_check_branch
              %1194 = sbr.rel (%p1191) target = $region684
            $region683: #{fasttext_forward.1} parent=668 // pred_region
              %s1195 = sand.u32 1, 7
              %s1196 = ssub.s32 1, %s1195
              %s1197 = scalar_lea.vmem %s1168, %s1196
              %s1198 = ssub.s32 1, %s1195
              %s1199 = scalar_lea.vmem %s1170, %s1198 [#allocation2]
              %s1200 = sshllo.u32 0, %s1195
              loop: start=0, step=1, limit=1
              $region685: #{fasttext_forward.1} parent=683 // loop_pre_header
                _
              $region686: #{fasttext_forward.1} parent=683 // loop_header
                %s1202 = sphi 0, %s1206
                %p1203 = scmp.ge.s32.totalorder %s1202, 1
                %s1207 = sphi %s1197, %s1197
                %s1208 = sphi %s1199, %s1199
              $region687: #{fasttext_forward.1} parent=683 // loop_header_branch
                %1205 = sbr.rel (%p1203) target = $region691
              $region688: #{fasttext_forward.1} parent=683 // loop_body
                %v1209 = vld [vmem:[%s1207] sm:%s1200]
                %1210 = vst [vmem:[%s1208] sm:%s1200] %v1209
              $region689: #{fasttext_forward.1} parent=683 // loop_footer
                %s1206 = sadd.s32 1, %s1202
              $region690: #{fasttext_forward.1} parent=683 // loop_footer_branch
                %1201 = sbr.rel target = $region686
              $region691: #{fasttext_forward.1} parent=683 // loop_exit
                _
            $region684: #{fasttext_forward.1} parent=668 // pred_fallthru
              _
          $region669: #{fasttext_forward.1} parent=514 // pred_fallthru
            _
          // Predicated region
          $region670: #{fasttext_forward.1} parent=514 // pred_check
            %p1176 = pneg %p1172
          $region671: #{fasttext_forward.1} parent=514 // pred_check_branch
            %1178 = sbr.rel (%p1176) target = $region673
          $region672: #{fasttext_forward.1} parent=514 // pred_region
            %s1179 = sshllo.u32 0, 1
            loop: start=0, step=1, limit=1
            $region674: #{fasttext_forward.1} parent=672 // loop_pre_header
              _
            $region675: #{fasttext_forward.1} parent=672 // loop_header
              %s1181 = sphi 0, %s1185
              %p1182 = scmp.ge.s32.totalorder %s1181, 1
              %s1186 = sphi %s1168, %s1168
              %s1187 = sphi %s1170, %s1170
            $region676: #{fasttext_forward.1} parent=672 // loop_header_branch
              %1184 = sbr.rel (%p1182) target = $region680
            $region677: #{fasttext_forward.1} parent=672 // loop_body
              %v1188 = vld [vmem:[%s1186] sm:%s1179]
              %1189 = vst [vmem:[%s1187] sm:%s1179] %v1188
            $region678: #{fasttext_forward.1} parent=672 // loop_footer
              %s1185 = sadd.s32 1, %s1181
            $region679: #{fasttext_forward.1} parent=672 // loop_footer_branch
              %1180 = sbr.rel target = $region675
            $region680: #{fasttext_forward.1} parent=672 // loop_exit
              _
          $region673: #{fasttext_forward.1} parent=514 // pred_fallthru
            _
          // Predicated region
          $region692: #{fasttext_forward.1} parent=514 // pred_check
            _
          $region693: #{fasttext_forward.1} parent=514 // pred_check_branch
            %1213 = sbr.rel (0) target = $region695
          $region694: #{fasttext_forward.1} parent=514 // pred_region
            %1214 = vsyncadd %s925, 16
          $region695: #{fasttext_forward.1} parent=514 // pred_fallthru
            _
          %s1215 = sadd.s32 %s920, 6
          %s1216 = sld [smem:[#allocation5 + %s1215]]
          %s1217 = scalar_lea.vmem %s1, %s1216
          %s1218 = sadd.s32 6, %s923
          %s1219 = scalar_lea.vmem [#allocation2], %s1218
          %p1221 = scmp.lt.u32.totalorder 1, 8
          %p1222 = pneg %p1221
          // Predicated region
          $region696: #{fasttext_forward.1} parent=514 // pred_check
            _
          $region697: #{fasttext_forward.1} parent=514 // pred_check_branch
            %1224 = sbr.rel (%p1221) target = $region699
          $region698: #{fasttext_forward.1} parent=514 // pred_region
            %s1239 = sand.u32 1, 7
            %p1240 = scmp.eq.s32.totalorder %s1239, 0
            %p1241 = pneg %p1240
            // Predicated region
            $region711: #{fasttext_forward.1} parent=698 // pred_check
              _
            $region712: #{fasttext_forward.1} parent=698 // pred_check_branch
              %1243 = sbr.rel (%p1240) target = $region714
            $region713: #{fasttext_forward.1} parent=698 // pred_region
              %s1244 = sand.u32 1, 7
              %s1245 = ssub.s32 1, %s1244
              %s1246 = scalar_lea.vmem %s1217, %s1245
              %s1247 = ssub.s32 1, %s1244
              %s1248 = scalar_lea.vmem %s1219, %s1247 [#allocation2]
              %s1249 = sshllo.u32 0, %s1244
              loop: start=0, step=1, limit=1
              $region715: #{fasttext_forward.1} parent=713 // loop_pre_header
                _
              $region716: #{fasttext_forward.1} parent=713 // loop_header
                %s1251 = sphi 0, %s1255
                %p1252 = scmp.ge.s32.totalorder %s1251, 1
                %s1256 = sphi %s1246, %s1246
                %s1257 = sphi %s1248, %s1248
              $region717: #{fasttext_forward.1} parent=713 // loop_header_branch
                %1254 = sbr.rel (%p1252) target = $region721
              $region718: #{fasttext_forward.1} parent=713 // loop_body
                %v1258 = vld [vmem:[%s1256] sm:%s1249]
                %1259 = vst [vmem:[%s1257] sm:%s1249] %v1258
              $region719: #{fasttext_forward.1} parent=713 // loop_footer
                %s1255 = sadd.s32 1, %s1251
              $region720: #{fasttext_forward.1} parent=713 // loop_footer_branch
                %1250 = sbr.rel target = $region716
              $region721: #{fasttext_forward.1} parent=713 // loop_exit
                _
            $region714: #{fasttext_forward.1} parent=698 // pred_fallthru
              _
          $region699: #{fasttext_forward.1} parent=514 // pred_fallthru
            _
          // Predicated region
          $region700: #{fasttext_forward.1} parent=514 // pred_check
            %p1225 = pneg %p1221
          $region701: #{fasttext_forward.1} parent=514 // pred_check_branch
            %1227 = sbr.rel (%p1225) target = $region703
          $region702: #{fasttext_forward.1} parent=514 // pred_region
            %s1228 = sshllo.u32 0, 1
            loop: start=0, step=1, limit=1
            $region704: #{fasttext_forward.1} parent=702 // loop_pre_header
              _
            $region705: #{fasttext_forward.1} parent=702 // loop_header
              %s1230 = sphi 0, %s1234
              %p1231 = scmp.ge.s32.totalorder %s1230, 1
              %s1235 = sphi %s1217, %s1217
              %s1236 = sphi %s1219, %s1219
            $region706: #{fasttext_forward.1} parent=702 // loop_header_branch
              %1233 = sbr.rel (%p1231) target = $region710
            $region707: #{fasttext_forward.1} parent=702 // loop_body
              %v1237 = vld [vmem:[%s1235] sm:%s1228]
              %1238 = vst [vmem:[%s1236] sm:%s1228] %v1237
            $region708: #{fasttext_forward.1} parent=702 // loop_footer
              %s1234 = sadd.s32 1, %s1230
            $region709: #{fasttext_forward.1} parent=702 // loop_footer_branch
              %1229 = sbr.rel target = $region705
            $region710: #{fasttext_forward.1} parent=702 // loop_exit
              _
          $region703: #{fasttext_forward.1} parent=514 // pred_fallthru
            _
          // Predicated region
          $region722: #{fasttext_forward.1} parent=514 // pred_check
            _
          $region723: #{fasttext_forward.1} parent=514 // pred_check_branch
            %1262 = sbr.rel (0) target = $region725
          $region724: #{fasttext_forward.1} parent=514 // pred_region
            %1263 = vsyncadd %s925, 16
          $region725: #{fasttext_forward.1} parent=514 // pred_fallthru
            _
          %s1264 = sadd.s32 %s920, 7
          %s1265 = sld [smem:[#allocation5 + %s1264]]
          %s1266 = scalar_lea.vmem %s1, %s1265
          %s1267 = sadd.s32 7, %s923
          %s1268 = scalar_lea.vmem [#allocation2], %s1267
          %p1270 = scmp.lt.u32.totalorder 1, 8
          %p1271 = pneg %p1270
          // Predicated region
          $region726: #{fasttext_forward.1} parent=514 // pred_check
            _
          $region727: #{fasttext_forward.1} parent=514 // pred_check_branch
            %1273 = sbr.rel (%p1270) target = $region729
          $region728: #{fasttext_forward.1} parent=514 // pred_region
            %s1288 = sand.u32 1, 7
            %p1289 = scmp.eq.s32.totalorder %s1288, 0
            %p1290 = pneg %p1289
            // Predicated region
            $region741: #{fasttext_forward.1} parent=728 // pred_check
              _
            $region742: #{fasttext_forward.1} parent=728 // pred_check_branch
              %1292 = sbr.rel (%p1289) target = $region744
            $region743: #{fasttext_forward.1} parent=728 // pred_region
              %s1293 = sand.u32 1, 7
              %s1294 = ssub.s32 1, %s1293
              %s1295 = scalar_lea.vmem %s1266, %s1294
              %s1296 = ssub.s32 1, %s1293
              %s1297 = scalar_lea.vmem %s1268, %s1296 [#allocation2]
              %s1298 = sshllo.u32 0, %s1293
              loop: start=0, step=1, limit=1
              $region745: #{fasttext_forward.1} parent=743 // loop_pre_header
                _
              $region746: #{fasttext_forward.1} parent=743 // loop_header
                %s1300 = sphi 0, %s1304
                %p1301 = scmp.ge.s32.totalorder %s1300, 1
                %s1305 = sphi %s1295, %s1295
                %s1306 = sphi %s1297, %s1297
              $region747: #{fasttext_forward.1} parent=743 // loop_header_branch
                %1303 = sbr.rel (%p1301) target = $region751
              $region748: #{fasttext_forward.1} parent=743 // loop_body
                %v1307 = vld [vmem:[%s1305] sm:%s1298]
                %1308 = vst [vmem:[%s1306] sm:%s1298] %v1307
              $region749: #{fasttext_forward.1} parent=743 // loop_footer
                %s1304 = sadd.s32 1, %s1300
              $region750: #{fasttext_forward.1} parent=743 // loop_footer_branch
                %1299 = sbr.rel target = $region746
              $region751: #{fasttext_forward.1} parent=743 // loop_exit
                _
            $region744: #{fasttext_forward.1} parent=728 // pred_fallthru
              _
          $region729: #{fasttext_forward.1} parent=514 // pred_fallthru
            _
          // Predicated region
          $region730: #{fasttext_forward.1} parent=514 // pred_check
            %p1274 = pneg %p1270
          $region731: #{fasttext_forward.1} parent=514 // pred_check_branch
            %1276 = sbr.rel (%p1274) target = $region733
          $region732: #{fasttext_forward.1} parent=514 // pred_region
            %s1277 = sshllo.u32 0, 1
            loop: start=0, step=1, limit=1
            $region734: #{fasttext_forward.1} parent=732 // loop_pre_header
              _
            $region735: #{fasttext_forward.1} parent=732 // loop_header
              %s1279 = sphi 0, %s1283
              %p1280 = scmp.ge.s32.totalorder %s1279, 1
              %s1284 = sphi %s1266, %s1266
              %s1285 = sphi %s1268, %s1268
            $region736: #{fasttext_forward.1} parent=732 // loop_header_branch
              %1282 = sbr.rel (%p1280) target = $region740
            $region737: #{fasttext_forward.1} parent=732 // loop_body
              %v1286 = vld [vmem:[%s1284] sm:%s1277]
              %1287 = vst [vmem:[%s1285] sm:%s1277] %v1286
            $region738: #{fasttext_forward.1} parent=732 // loop_footer
              %s1283 = sadd.s32 1, %s1279
            $region739: #{fasttext_forward.1} parent=732 // loop_footer_branch
              %1278 = sbr.rel target = $region735
            $region740: #{fasttext_forward.1} parent=732 // loop_exit
              _
          $region733: #{fasttext_forward.1} parent=514 // pred_fallthru
            _
          // Predicated region
          $region752: #{fasttext_forward.1} parent=514 // pred_check
            _
          $region753: #{fasttext_forward.1} parent=514 // pred_check_branch
            %1311 = sbr.rel (0) target = $region755
          $region754: #{fasttext_forward.1} parent=514 // pred_region
            %1312 = vsyncadd %s925, 16
          $region755: #{fasttext_forward.1} parent=514 // pred_fallthru
            _
          %s1313 = sadd.s32 %s920, 8
          %s1314 = sld [smem:[#allocation5 + %s1313]]
          %s1315 = scalar_lea.vmem %s1, %s1314
          %s1316 = sadd.s32 8, %s923
          %s1317 = scalar_lea.vmem [#allocation2], %s1316
          %p1319 = scmp.lt.u32.totalorder 1, 8
          %p1320 = pneg %p1319
          // Predicated region
          $region756: #{fasttext_forward.1} parent=514 // pred_check
            _
          $region757: #{fasttext_forward.1} parent=514 // pred_check_branch
            %1322 = sbr.rel (%p1319) target = $region759
          $region758: #{fasttext_forward.1} parent=514 // pred_region
            %s1337 = sand.u32 1, 7
            %p1338 = scmp.eq.s32.totalorder %s1337, 0
            %p1339 = pneg %p1338
            // Predicated region
            $region771: #{fasttext_forward.1} parent=758 // pred_check
              _
            $region772: #{fasttext_forward.1} parent=758 // pred_check_branch
              %1341 = sbr.rel (%p1338) target = $region774
            $region773: #{fasttext_forward.1} parent=758 // pred_region
              %s1342 = sand.u32 1, 7
              %s1343 = ssub.s32 1, %s1342
              %s1344 = scalar_lea.vmem %s1315, %s1343
              %s1345 = ssub.s32 1, %s1342
              %s1346 = scalar_lea.vmem %s1317, %s1345 [#allocation2]
              %s1347 = sshllo.u32 0, %s1342
              loop: start=0, step=1, limit=1
              $region775: #{fasttext_forward.1} parent=773 // loop_pre_header
                _
              $region776: #{fasttext_forward.1} parent=773 // loop_header
                %s1349 = sphi 0, %s1353
                %p1350 = scmp.ge.s32.totalorder %s1349, 1
                %s1354 = sphi %s1344, %s1344
                %s1355 = sphi %s1346, %s1346
              $region777: #{fasttext_forward.1} parent=773 // loop_header_branch
                %1352 = sbr.rel (%p1350) target = $region781
              $region778: #{fasttext_forward.1} parent=773 // loop_body
                %v1356 = vld [vmem:[%s1354] sm:%s1347]
                %1357 = vst [vmem:[%s1355] sm:%s1347] %v1356
              $region779: #{fasttext_forward.1} parent=773 // loop_footer
                %s1353 = sadd.s32 1, %s1349
              $region780: #{fasttext_forward.1} parent=773 // loop_footer_branch
                %1348 = sbr.rel target = $region776
              $region781: #{fasttext_forward.1} parent=773 // loop_exit
                _
            $region774: #{fasttext_forward.1} parent=758 // pred_fallthru
              _
          $region759: #{fasttext_forward.1} parent=514 // pred_fallthru
            _
          // Predicated region
          $region760: #{fasttext_forward.1} parent=514 // pred_check
            %p1323 = pneg %p1319
          $region761: #{fasttext_forward.1} parent=514 // pred_check_branch
            %1325 = sbr.rel (%p1323) target = $region763
          $region762: #{fasttext_forward.1} parent=514 // pred_region
            %s1326 = sshllo.u32 0, 1
            loop: start=0, step=1, limit=1
            $region764: #{fasttext_forward.1} parent=762 // loop_pre_header
              _
            $region765: #{fasttext_forward.1} parent=762 // loop_header
              %s1328 = sphi 0, %s1332
              %p1329 = scmp.ge.s32.totalorder %s1328, 1
              %s1333 = sphi %s1315, %s1315
              %s1334 = sphi %s1317, %s1317
            $region766: #{fasttext_forward.1} parent=762 // loop_header_branch
              %1331 = sbr.rel (%p1329) target = $region770
            $region767: #{fasttext_forward.1} parent=762 // loop_body
              %v1335 = vld [vmem:[%s1333] sm:%s1326]
              %1336 = vst [vmem:[%s1334] sm:%s1326] %v1335
            $region768: #{fasttext_forward.1} parent=762 // loop_footer
              %s1332 = sadd.s32 1, %s1328
            $region769: #{fasttext_forward.1} parent=762 // loop_footer_branch
              %1327 = sbr.rel target = $region765
            $region770: #{fasttext_forward.1} parent=762 // loop_exit
              _
          $region763: #{fasttext_forward.1} parent=514 // pred_fallthru
            _
          // Predicated region
          $region782: #{fasttext_forward.1} parent=514 // pred_check
            _
          $region783: #{fasttext_forward.1} parent=514 // pred_check_branch
            %1360 = sbr.rel (0) target = $region785
          $region784: #{fasttext_forward.1} parent=514 // pred_region
            %1361 = vsyncadd %s925, 16
          $region785: #{fasttext_forward.1} parent=514 // pred_fallthru
            _
          %s1362 = sadd.s32 %s920, 9
          %s1363 = sld [smem:[#allocation5 + %s1362]]
          %s1364 = scalar_lea.vmem %s1, %s1363
          %s1365 = sadd.s32 9, %s923
          %s1366 = scalar_lea.vmem [#allocation2], %s1365
          %p1368 = scmp.lt.u32.totalorder 1, 8
          %p1369 = pneg %p1368
          // Predicated region
          $region786: #{fasttext_forward.1} parent=514 // pred_check
            _
          $region787: #{fasttext_forward.1} parent=514 // pred_check_branch
            %1371 = sbr.rel (%p1368) target = $region789
          $region788: #{fasttext_forward.1} parent=514 // pred_region
            %s1386 = sand.u32 1, 7
            %p1387 = scmp.eq.s32.totalorder %s1386, 0
            %p1388 = pneg %p1387
            // Predicated region
            $region801: #{fasttext_forward.1} parent=788 // pred_check
              _
            $region802: #{fasttext_forward.1} parent=788 // pred_check_branch
              %1390 = sbr.rel (%p1387) target = $region804
            $region803: #{fasttext_forward.1} parent=788 // pred_region
              %s1391 = sand.u32 1, 7
              %s1392 = ssub.s32 1, %s1391
              %s1393 = scalar_lea.vmem %s1364, %s1392
              %s1394 = ssub.s32 1, %s1391
              %s1395 = scalar_lea.vmem %s1366, %s1394 [#allocation2]
              %s1396 = sshllo.u32 0, %s1391
              loop: start=0, step=1, limit=1
              $region805: #{fasttext_forward.1} parent=803 // loop_pre_header
                _
              $region806: #{fasttext_forward.1} parent=803 // loop_header
                %s1398 = sphi 0, %s1402
                %p1399 = scmp.ge.s32.totalorder %s1398, 1
                %s1403 = sphi %s1393, %s1393
                %s1404 = sphi %s1395, %s1395
              $region807: #{fasttext_forward.1} parent=803 // loop_header_branch
                %1401 = sbr.rel (%p1399) target = $region811
              $region808: #{fasttext_forward.1} parent=803 // loop_body
                %v1405 = vld [vmem:[%s1403] sm:%s1396]
                %1406 = vst [vmem:[%s1404] sm:%s1396] %v1405
              $region809: #{fasttext_forward.1} parent=803 // loop_footer
                %s1402 = sadd.s32 1, %s1398
              $region810: #{fasttext_forward.1} parent=803 // loop_footer_branch
                %1397 = sbr.rel target = $region806
              $region811: #{fasttext_forward.1} parent=803 // loop_exit
                _
            $region804: #{fasttext_forward.1} parent=788 // pred_fallthru
              _
          $region789: #{fasttext_forward.1} parent=514 // pred_fallthru
            _
          // Predicated region
          $region790: #{fasttext_forward.1} parent=514 // pred_check
            %p1372 = pneg %p1368
          $region791: #{fasttext_forward.1} parent=514 // pred_check_branch
            %1374 = sbr.rel (%p1372) target = $region793
          $region792: #{fasttext_forward.1} parent=514 // pred_region
            %s1375 = sshllo.u32 0, 1
            loop: start=0, step=1, limit=1
            $region794: #{fasttext_forward.1} parent=792 // loop_pre_header
              _
            $region795: #{fasttext_forward.1} parent=792 // loop_header
              %s1377 = sphi 0, %s1381
              %p1378 = scmp.ge.s32.totalorder %s1377, 1
              %s1382 = sphi %s1364, %s1364
              %s1383 = sphi %s1366, %s1366
            $region796: #{fasttext_forward.1} parent=792 // loop_header_branch
              %1380 = sbr.rel (%p1378) target = $region800
            $region797: #{fasttext_forward.1} parent=792 // loop_body
              %v1384 = vld [vmem:[%s1382] sm:%s1375]
              %1385 = vst [vmem:[%s1383] sm:%s1375] %v1384
            $region798: #{fasttext_forward.1} parent=792 // loop_footer
              %s1381 = sadd.s32 1, %s1377
            $region799: #{fasttext_forward.1} parent=792 // loop_footer_branch
              %1376 = sbr.rel target = $region795
            $region800: #{fasttext_forward.1} parent=792 // loop_exit
              _
          $region793: #{fasttext_forward.1} parent=514 // pred_fallthru
            _
          // Predicated region
          $region812: #{fasttext_forward.1} parent=514 // pred_check
            _
          $region813: #{fasttext_forward.1} parent=514 // pred_check_branch
            %1409 = sbr.rel (0) target = $region815
          $region814: #{fasttext_forward.1} parent=514 // pred_region
            %1410 = vsyncadd %s925, 16
          $region815: #{fasttext_forward.1} parent=514 // pred_fallthru
            _
          %s1411 = sadd.s32 %s920, 10
          %s1412 = sld [smem:[#allocation5 + %s1411]]
          %s1413 = scalar_lea.vmem %s1, %s1412
          %s1414 = sadd.s32 10, %s923
          %s1415 = scalar_lea.vmem [#allocation2], %s1414
          %p1417 = scmp.lt.u32.totalorder 1, 8
          %p1418 = pneg %p1417
          // Predicated region
          $region816: #{fasttext_forward.1} parent=514 // pred_check
            _
          $region817: #{fasttext_forward.1} parent=514 // pred_check_branch
            %1420 = sbr.rel (%p1417) target = $region819
          $region818: #{fasttext_forward.1} parent=514 // pred_region
            %s1435 = sand.u32 1, 7
            %p1436 = scmp.eq.s32.totalorder %s1435, 0
            %p1437 = pneg %p1436
            // Predicated region
            $region831: #{fasttext_forward.1} parent=818 // pred_check
              _
            $region832: #{fasttext_forward.1} parent=818 // pred_check_branch
              %1439 = sbr.rel (%p1436) target = $region834
            $region833: #{fasttext_forward.1} parent=818 // pred_region
              %s1440 = sand.u32 1, 7
              %s1441 = ssub.s32 1, %s1440
              %s1442 = scalar_lea.vmem %s1413, %s1441
              %s1443 = ssub.s32 1, %s1440
              %s1444 = scalar_lea.vmem %s1415, %s1443 [#allocation2]
              %s1445 = sshllo.u32 0, %s1440
              loop: start=0, step=1, limit=1
              $region835: #{fasttext_forward.1} parent=833 // loop_pre_header
                _
              $region836: #{fasttext_forward.1} parent=833 // loop_header
                %s1447 = sphi 0, %s1451
                %p1448 = scmp.ge.s32.totalorder %s1447, 1
                %s1452 = sphi %s1442, %s1442
                %s1453 = sphi %s1444, %s1444
              $region837: #{fasttext_forward.1} parent=833 // loop_header_branch
                %1450 = sbr.rel (%p1448) target = $region841
              $region838: #{fasttext_forward.1} parent=833 // loop_body
                %v1454 = vld [vmem:[%s1452] sm:%s1445]
                %1455 = vst [vmem:[%s1453] sm:%s1445] %v1454
              $region839: #{fasttext_forward.1} parent=833 // loop_footer
                %s1451 = sadd.s32 1, %s1447
              $region840: #{fasttext_forward.1} parent=833 // loop_footer_branch
                %1446 = sbr.rel target = $region836
              $region841: #{fasttext_forward.1} parent=833 // loop_exit
                _
            $region834: #{fasttext_forward.1} parent=818 // pred_fallthru
              _
          $region819: #{fasttext_forward.1} parent=514 // pred_fallthru
            _
          // Predicated region
          $region820: #{fasttext_forward.1} parent=514 // pred_check
            %p1421 = pneg %p1417
          $region821: #{fasttext_forward.1} parent=514 // pred_check_branch
            %1423 = sbr.rel (%p1421) target = $region823
          $region822: #{fasttext_forward.1} parent=514 // pred_region
            %s1424 = sshllo.u32 0, 1
            loop: start=0, step=1, limit=1
            $region824: #{fasttext_forward.1} parent=822 // loop_pre_header
              _
            $region825: #{fasttext_forward.1} parent=822 // loop_header
              %s1426 = sphi 0, %s1430
              %p1427 = scmp.ge.s32.totalorder %s1426, 1
              %s1431 = sphi %s1413, %s1413
              %s1432 = sphi %s1415, %s1415
            $region826: #{fasttext_forward.1} parent=822 // loop_header_branch
              %1429 = sbr.rel (%p1427) target = $region830
            $region827: #{fasttext_forward.1} parent=822 // loop_body
              %v1433 = vld [vmem:[%s1431] sm:%s1424]
              %1434 = vst [vmem:[%s1432] sm:%s1424] %v1433
            $region828: #{fasttext_forward.1} parent=822 // loop_footer
              %s1430 = sadd.s32 1, %s1426
            $region829: #{fasttext_forward.1} parent=822 // loop_footer_branch
              %1425 = sbr.rel target = $region825
            $region830: #{fasttext_forward.1} parent=822 // loop_exit
              _
          $region823: #{fasttext_forward.1} parent=514 // pred_fallthru
            _
          // Predicated region
          $region842: #{fasttext_forward.1} parent=514 // pred_check
            _
          $region843: #{fasttext_forward.1} parent=514 // pred_check_branch
            %1458 = sbr.rel (0) target = $region845
          $region844: #{fasttext_forward.1} parent=514 // pred_region
            %1459 = vsyncadd %s925, 16
          $region845: #{fasttext_forward.1} parent=514 // pred_fallthru
            _
          %s1460 = sadd.s32 %s920, 11
          %s1461 = sld [smem:[#allocation5 + %s1460]]
          %s1462 = scalar_lea.vmem %s1, %s1461
          %s1463 = sadd.s32 11, %s923
          %s1464 = scalar_lea.vmem [#allocation2], %s1463
          %p1466 = scmp.lt.u32.totalorder 1, 8
          %p1467 = pneg %p1466
          // Predicated region
          $region846: #{fasttext_forward.1} parent=514 // pred_check
            _
          $region847: #{fasttext_forward.1} parent=514 // pred_check_branch
            %1469 = sbr.rel (%p1466) target = $region849
          $region848: #{fasttext_forward.1} parent=514 // pred_region
            %s1484 = sand.u32 1, 7
            %p1485 = scmp.eq.s32.totalorder %s1484, 0
            %p1486 = pneg %p1485
            // Predicated region
            $region861: #{fasttext_forward.1} parent=848 // pred_check
              _
            $region862: #{fasttext_forward.1} parent=848 // pred_check_branch
              %1488 = sbr.rel (%p1485) target = $region864
            $region863: #{fasttext_forward.1} parent=848 // pred_region
              %s1489 = sand.u32 1, 7
              %s1490 = ssub.s32 1, %s1489
              %s1491 = scalar_lea.vmem %s1462, %s1490
              %s1492 = ssub.s32 1, %s1489
              %s1493 = scalar_lea.vmem %s1464, %s1492 [#allocation2]
              %s1494 = sshllo.u32 0, %s1489
              loop: start=0, step=1, limit=1
              $region865: #{fasttext_forward.1} parent=863 // loop_pre_header
                _
              $region866: #{fasttext_forward.1} parent=863 // loop_header
                %s1496 = sphi 0, %s1500
                %p1497 = scmp.ge.s32.totalorder %s1496, 1
                %s1501 = sphi %s1491, %s1491
                %s1502 = sphi %s1493, %s1493
              $region867: #{fasttext_forward.1} parent=863 // loop_header_branch
                %1499 = sbr.rel (%p1497) target = $region871
              $region868: #{fasttext_forward.1} parent=863 // loop_body
                %v1503 = vld [vmem:[%s1501] sm:%s1494]
                %1504 = vst [vmem:[%s1502] sm:%s1494] %v1503
              $region869: #{fasttext_forward.1} parent=863 // loop_footer
                %s1500 = sadd.s32 1, %s1496
              $region870: #{fasttext_forward.1} parent=863 // loop_footer_branch
                %1495 = sbr.rel target = $region866
              $region871: #{fasttext_forward.1} parent=863 // loop_exit
                _
            $region864: #{fasttext_forward.1} parent=848 // pred_fallthru
              _
          $region849: #{fasttext_forward.1} parent=514 // pred_fallthru
            _
          // Predicated region
          $region850: #{fasttext_forward.1} parent=514 // pred_check
            %p1470 = pneg %p1466
          $region851: #{fasttext_forward.1} parent=514 // pred_check_branch
            %1472 = sbr.rel (%p1470) target = $region853
          $region852: #{fasttext_forward.1} parent=514 // pred_region
            %s1473 = sshllo.u32 0, 1
            loop: start=0, step=1, limit=1
            $region854: #{fasttext_forward.1} parent=852 // loop_pre_header
              _
            $region855: #{fasttext_forward.1} parent=852 // loop_header
              %s1475 = sphi 0, %s1479
              %p1476 = scmp.ge.s32.totalorder %s1475, 1
              %s1480 = sphi %s1462, %s1462
              %s1481 = sphi %s1464, %s1464
            $region856: #{fasttext_forward.1} parent=852 // loop_header_branch
              %1478 = sbr.rel (%p1476) target = $region860
            $region857: #{fasttext_forward.1} parent=852 // loop_body
              %v1482 = vld [vmem:[%s1480] sm:%s1473]
              %1483 = vst [vmem:[%s1481] sm:%s1473] %v1482
            $region858: #{fasttext_forward.1} parent=852 // loop_footer
              %s1479 = sadd.s32 1, %s1475
            $region859: #{fasttext_forward.1} parent=852 // loop_footer_branch
              %1474 = sbr.rel target = $region855
            $region860: #{fasttext_forward.1} parent=852 // loop_exit
              _
          $region853: #{fasttext_forward.1} parent=514 // pred_fallthru
            _
          // Predicated region
          $region872: #{fasttext_forward.1} parent=514 // pred_check
            _
          $region873: #{fasttext_forward.1} parent=514 // pred_check_branch
            %1507 = sbr.rel (0) target = $region875
          $region874: #{fasttext_forward.1} parent=514 // pred_region
            %1508 = vsyncadd %s925, 16
          $region875: #{fasttext_forward.1} parent=514 // pred_fallthru
            _
          %s1509 = sadd.s32 %s920, 12
          %s1510 = sld [smem:[#allocation5 + %s1509]]
          %s1511 = scalar_lea.vmem %s1, %s1510
          %s1512 = sadd.s32 12, %s923
          %s1513 = scalar_lea.vmem [#allocation2], %s1512
          %p1515 = scmp.lt.u32.totalorder 1, 8
          %p1516 = pneg %p1515
          // Predicated region
          $region876: #{fasttext_forward.1} parent=514 // pred_check
            _
          $region877: #{fasttext_forward.1} parent=514 // pred_check_branch
            %1518 = sbr.rel (%p1515) target = $region879
          $region878: #{fasttext_forward.1} parent=514 // pred_region
            %s1533 = sand.u32 1, 7
            %p1534 = scmp.eq.s32.totalorder %s1533, 0
            %p1535 = pneg %p1534
            // Predicated region
            $region891: #{fasttext_forward.1} parent=878 // pred_check
              _
            $region892: #{fasttext_forward.1} parent=878 // pred_check_branch
              %1537 = sbr.rel (%p1534) target = $region894
            $region893: #{fasttext_forward.1} parent=878 // pred_region
              %s1538 = sand.u32 1, 7
              %s1539 = ssub.s32 1, %s1538
              %s1540 = scalar_lea.vmem %s1511, %s1539
              %s1541 = ssub.s32 1, %s1538
              %s1542 = scalar_lea.vmem %s1513, %s1541 [#allocation2]
              %s1543 = sshllo.u32 0, %s1538
              loop: start=0, step=1, limit=1
              $region895: #{fasttext_forward.1} parent=893 // loop_pre_header
                _
              $region896: #{fasttext_forward.1} parent=893 // loop_header
                %s1545 = sphi 0, %s1549
                %p1546 = scmp.ge.s32.totalorder %s1545, 1
                %s1550 = sphi %s1540, %s1540
                %s1551 = sphi %s1542, %s1542
              $region897: #{fasttext_forward.1} parent=893 // loop_header_branch
                %1548 = sbr.rel (%p1546) target = $region901
              $region898: #{fasttext_forward.1} parent=893 // loop_body
                %v1552 = vld [vmem:[%s1550] sm:%s1543]
                %1553 = vst [vmem:[%s1551] sm:%s1543] %v1552
              $region899: #{fasttext_forward.1} parent=893 // loop_footer
                %s1549 = sadd.s32 1, %s1545
              $region900: #{fasttext_forward.1} parent=893 // loop_footer_branch
                %1544 = sbr.rel target = $region896
              $region901: #{fasttext_forward.1} parent=893 // loop_exit
                _
            $region894: #{fasttext_forward.1} parent=878 // pred_fallthru
              _
          $region879: #{fasttext_forward.1} parent=514 // pred_fallthru
            _
          // Predicated region
          $region880: #{fasttext_forward.1} parent=514 // pred_check
            %p1519 = pneg %p1515
          $region881: #{fasttext_forward.1} parent=514 // pred_check_branch
            %1521 = sbr.rel (%p1519) target = $region883
          $region882: #{fasttext_forward.1} parent=514 // pred_region
            %s1522 = sshllo.u32 0, 1
            loop: start=0, step=1, limit=1
            $region884: #{fasttext_forward.1} parent=882 // loop_pre_header
              _
            $region885: #{fasttext_forward.1} parent=882 // loop_header
              %s1524 = sphi 0, %s1528
              %p1525 = scmp.ge.s32.totalorder %s1524, 1
              %s1529 = sphi %s1511, %s1511
              %s1530 = sphi %s1513, %s1513
            $region886: #{fasttext_forward.1} parent=882 // loop_header_branch
              %1527 = sbr.rel (%p1525) target = $region890
            $region887: #{fasttext_forward.1} parent=882 // loop_body
              %v1531 = vld [vmem:[%s1529] sm:%s1522]
              %1532 = vst [vmem:[%s1530] sm:%s1522] %v1531
            $region888: #{fasttext_forward.1} parent=882 // loop_footer
              %s1528 = sadd.s32 1, %s1524
            $region889: #{fasttext_forward.1} parent=882 // loop_footer_branch
              %1523 = sbr.rel target = $region885
            $region890: #{fasttext_forward.1} parent=882 // loop_exit
              _
          $region883: #{fasttext_forward.1} parent=514 // pred_fallthru
            _
          // Predicated region
          $region902: #{fasttext_forward.1} parent=514 // pred_check
            _
          $region903: #{fasttext_forward.1} parent=514 // pred_check_branch
            %1556 = sbr.rel (0) target = $region905
          $region904: #{fasttext_forward.1} parent=514 // pred_region
            %1557 = vsyncadd %s925, 16
          $region905: #{fasttext_forward.1} parent=514 // pred_fallthru
            _
          %s1558 = sadd.s32 %s920, 13
          %s1559 = sld [smem:[#allocation5 + %s1558]]
          %s1560 = scalar_lea.vmem %s1, %s1559
          %s1561 = sadd.s32 13, %s923
          %s1562 = scalar_lea.vmem [#allocation2], %s1561
          %p1564 = scmp.lt.u32.totalorder 1, 8
          %p1565 = pneg %p1564
          // Predicated region
          $region906: #{fasttext_forward.1} parent=514 // pred_check
            _
          $region907: #{fasttext_forward.1} parent=514 // pred_check_branch
            %1567 = sbr.rel (%p1564) target = $region909
          $region908: #{fasttext_forward.1} parent=514 // pred_region
            %s1582 = sand.u32 1, 7
            %p1583 = scmp.eq.s32.totalorder %s1582, 0
            %p1584 = pneg %p1583
            // Predicated region
            $region921: #{fasttext_forward.1} parent=908 // pred_check
              _
            $region922: #{fasttext_forward.1} parent=908 // pred_check_branch
              %1586 = sbr.rel (%p1583) target = $region924
            $region923: #{fasttext_forward.1} parent=908 // pred_region
              %s1587 = sand.u32 1, 7
              %s1588 = ssub.s32 1, %s1587
              %s1589 = scalar_lea.vmem %s1560, %s1588
              %s1590 = ssub.s32 1, %s1587
              %s1591 = scalar_lea.vmem %s1562, %s1590 [#allocation2]
              %s1592 = sshllo.u32 0, %s1587
              loop: start=0, step=1, limit=1
              $region925: #{fasttext_forward.1} parent=923 // loop_pre_header
                _
              $region926: #{fasttext_forward.1} parent=923 // loop_header
                %s1594 = sphi 0, %s1598
                %p1595 = scmp.ge.s32.totalorder %s1594, 1
                %s1599 = sphi %s1589, %s1589
                %s1600 = sphi %s1591, %s1591
              $region927: #{fasttext_forward.1} parent=923 // loop_header_branch
                %1597 = sbr.rel (%p1595) target = $region931
              $region928: #{fasttext_forward.1} parent=923 // loop_body
                %v1601 = vld [vmem:[%s1599] sm:%s1592]
                %1602 = vst [vmem:[%s1600] sm:%s1592] %v1601
              $region929: #{fasttext_forward.1} parent=923 // loop_footer
                %s1598 = sadd.s32 1, %s1594
              $region930: #{fasttext_forward.1} parent=923 // loop_footer_branch
                %1593 = sbr.rel target = $region926
              $region931: #{fasttext_forward.1} parent=923 // loop_exit
                _
            $region924: #{fasttext_forward.1} parent=908 // pred_fallthru
              _
          $region909: #{fasttext_forward.1} parent=514 // pred_fallthru
            _
          // Predicated region
          $region910: #{fasttext_forward.1} parent=514 // pred_check
            %p1568 = pneg %p1564
          $region911: #{fasttext_forward.1} parent=514 // pred_check_branch
            %1570 = sbr.rel (%p1568) target = $region913
          $region912: #{fasttext_forward.1} parent=514 // pred_region
            %s1571 = sshllo.u32 0, 1
            loop: start=0, step=1, limit=1
            $region914: #{fasttext_forward.1} parent=912 // loop_pre_header
              _
            $region915: #{fasttext_forward.1} parent=912 // loop_header
              %s1573 = sphi 0, %s1577
              %p1574 = scmp.ge.s32.totalorder %s1573, 1
              %s1578 = sphi %s1560, %s1560
              %s1579 = sphi %s1562, %s1562
            $region916: #{fasttext_forward.1} parent=912 // loop_header_branch
              %1576 = sbr.rel (%p1574) target = $region920
            $region917: #{fasttext_forward.1} parent=912 // loop_body
              %v1580 = vld [vmem:[%s1578] sm:%s1571]
              %1581 = vst [vmem:[%s1579] sm:%s1571] %v1580
            $region918: #{fasttext_forward.1} parent=912 // loop_footer
              %s1577 = sadd.s32 1, %s1573
            $region919: #{fasttext_forward.1} parent=912 // loop_footer_branch
              %1572 = sbr.rel target = $region915
            $region920: #{fasttext_forward.1} parent=912 // loop_exit
              _
          $region913: #{fasttext_forward.1} parent=514 // pred_fallthru
            _
          // Predicated region
          $region932: #{fasttext_forward.1} parent=514 // pred_check
            _
          $region933: #{fasttext_forward.1} parent=514 // pred_check_branch
            %1605 = sbr.rel (0) target = $region935
          $region934: #{fasttext_forward.1} parent=514 // pred_region
            %1606 = vsyncadd %s925, 16
          $region935: #{fasttext_forward.1} parent=514 // pred_fallthru
            _
          %s1607 = sadd.s32 %s920, 14
          %s1608 = sld [smem:[#allocation5 + %s1607]]
          %s1609 = scalar_lea.vmem %s1, %s1608
          %s1610 = sadd.s32 14, %s923
          %s1611 = scalar_lea.vmem [#allocation2], %s1610
          %p1613 = scmp.lt.u32.totalorder 1, 8
          %p1614 = pneg %p1613
          // Predicated region
          $region936: #{fasttext_forward.1} parent=514 // pred_check
            _
          $region937: #{fasttext_forward.1} parent=514 // pred_check_branch
            %1616 = sbr.rel (%p1613) target = $region939
          $region938: #{fasttext_forward.1} parent=514 // pred_region
            %s1631 = sand.u32 1, 7
            %p1632 = scmp.eq.s32.totalorder %s1631, 0
            %p1633 = pneg %p1632
            // Predicated region
            $region951: #{fasttext_forward.1} parent=938 // pred_check
              _
            $region952: #{fasttext_forward.1} parent=938 // pred_check_branch
              %1635 = sbr.rel (%p1632) target = $region954
            $region953: #{fasttext_forward.1} parent=938 // pred_region
              %s1636 = sand.u32 1, 7
              %s1637 = ssub.s32 1, %s1636
              %s1638 = scalar_lea.vmem %s1609, %s1637
              %s1639 = ssub.s32 1, %s1636
              %s1640 = scalar_lea.vmem %s1611, %s1639 [#allocation2]
              %s1641 = sshllo.u32 0, %s1636
              loop: start=0, step=1, limit=1
              $region955: #{fasttext_forward.1} parent=953 // loop_pre_header
                _
              $region956: #{fasttext_forward.1} parent=953 // loop_header
                %s1643 = sphi 0, %s1647
                %p1644 = scmp.ge.s32.totalorder %s1643, 1
                %s1648 = sphi %s1638, %s1638
                %s1649 = sphi %s1640, %s1640
              $region957: #{fasttext_forward.1} parent=953 // loop_header_branch
                %1646 = sbr.rel (%p1644) target = $region961
              $region958: #{fasttext_forward.1} parent=953 // loop_body
                %v1650 = vld [vmem:[%s1648] sm:%s1641]
                %1651 = vst [vmem:[%s1649] sm:%s1641] %v1650
              $region959: #{fasttext_forward.1} parent=953 // loop_footer
                %s1647 = sadd.s32 1, %s1643
              $region960: #{fasttext_forward.1} parent=953 // loop_footer_branch
                %1642 = sbr.rel target = $region956
              $region961: #{fasttext_forward.1} parent=953 // loop_exit
                _
            $region954: #{fasttext_forward.1} parent=938 // pred_fallthru
              _
          $region939: #{fasttext_forward.1} parent=514 // pred_fallthru
            _
          // Predicated region
          $region940: #{fasttext_forward.1} parent=514 // pred_check
            %p1617 = pneg %p1613
          $region941: #{fasttext_forward.1} parent=514 // pred_check_branch
            %1619 = sbr.rel (%p1617) target = $region943
          $region942: #{fasttext_forward.1} parent=514 // pred_region
            %s1620 = sshllo.u32 0, 1
            loop: start=0, step=1, limit=1
            $region944: #{fasttext_forward.1} parent=942 // loop_pre_header
              _
            $region945: #{fasttext_forward.1} parent=942 // loop_header
              %s1622 = sphi 0, %s1626
              %p1623 = scmp.ge.s32.totalorder %s1622, 1
              %s1627 = sphi %s1609, %s1609
              %s1628 = sphi %s1611, %s1611
            $region946: #{fasttext_forward.1} parent=942 // loop_header_branch
              %1625 = sbr.rel (%p1623) target = $region950
            $region947: #{fasttext_forward.1} parent=942 // loop_body
              %v1629 = vld [vmem:[%s1627] sm:%s1620]
              %1630 = vst [vmem:[%s1628] sm:%s1620] %v1629
            $region948: #{fasttext_forward.1} parent=942 // loop_footer
              %s1626 = sadd.s32 1, %s1622
            $region949: #{fasttext_forward.1} parent=942 // loop_footer_branch
              %1621 = sbr.rel target = $region945
            $region950: #{fasttext_forward.1} parent=942 // loop_exit
              _
          $region943: #{fasttext_forward.1} parent=514 // pred_fallthru
            _
          // Predicated region
          $region962: #{fasttext_forward.1} parent=514 // pred_check
            _
          $region963: #{fasttext_forward.1} parent=514 // pred_check_branch
            %1654 = sbr.rel (0) target = $region965
          $region964: #{fasttext_forward.1} parent=514 // pred_region
            %1655 = vsyncadd %s925, 16
          $region965: #{fasttext_forward.1} parent=514 // pred_fallthru
            _
          %s1656 = sadd.s32 %s920, 15
          %s1657 = sld [smem:[#allocation5 + %s1656]]
          %s1658 = scalar_lea.vmem %s1, %s1657
          %s1659 = sadd.s32 15, %s923
          %s1660 = scalar_lea.vmem [#allocation2], %s1659
          %p1662 = scmp.lt.u32.totalorder 1, 8
          %p1663 = pneg %p1662
          // Predicated region
          $region966: #{fasttext_forward.1} parent=514 // pred_check
            _
          $region967: #{fasttext_forward.1} parent=514 // pred_check_branch
            %1665 = sbr.rel (%p1662) target = $region969
          $region968: #{fasttext_forward.1} parent=514 // pred_region
            %s1680 = sand.u32 1, 7
            %p1681 = scmp.eq.s32.totalorder %s1680, 0
            %p1682 = pneg %p1681
            // Predicated region
            $region981: #{fasttext_forward.1} parent=968 // pred_check
              _
            $region982: #{fasttext_forward.1} parent=968 // pred_check_branch
              %1684 = sbr.rel (%p1681) target = $region984
            $region983: #{fasttext_forward.1} parent=968 // pred_region
              %s1685 = sand.u32 1, 7
              %s1686 = ssub.s32 1, %s1685
              %s1687 = scalar_lea.vmem %s1658, %s1686
              %s1688 = ssub.s32 1, %s1685
              %s1689 = scalar_lea.vmem %s1660, %s1688 [#allocation2]
              %s1690 = sshllo.u32 0, %s1685
              loop: start=0, step=1, limit=1
              $region985: #{fasttext_forward.1} parent=983 // loop_pre_header
                _
              $region986: #{fasttext_forward.1} parent=983 // loop_header
                %s1692 = sphi 0, %s1696
                %p1693 = scmp.ge.s32.totalorder %s1692, 1
                %s1697 = sphi %s1687, %s1687
                %s1698 = sphi %s1689, %s1689
              $region987: #{fasttext_forward.1} parent=983 // loop_header_branch
                %1695 = sbr.rel (%p1693) target = $region991
              $region988: #{fasttext_forward.1} parent=983 // loop_body
                %v1699 = vld [vmem:[%s1697] sm:%s1690]
                %1700 = vst [vmem:[%s1698] sm:%s1690] %v1699
              $region989: #{fasttext_forward.1} parent=983 // loop_footer
                %s1696 = sadd.s32 1, %s1692
              $region990: #{fasttext_forward.1} parent=983 // loop_footer_branch
                %1691 = sbr.rel target = $region986
              $region991: #{fasttext_forward.1} parent=983 // loop_exit
                _
            $region984: #{fasttext_forward.1} parent=968 // pred_fallthru
              _
          $region969: #{fasttext_forward.1} parent=514 // pred_fallthru
            _
          // Predicated region
          $region970: #{fasttext_forward.1} parent=514 // pred_check
            %p1666 = pneg %p1662
          $region971: #{fasttext_forward.1} parent=514 // pred_check_branch
            %1668 = sbr.rel (%p1666) target = $region973
          $region972: #{fasttext_forward.1} parent=514 // pred_region
            %s1669 = sshllo.u32 0, 1
            loop: start=0, step=1, limit=1
            $region974: #{fasttext_forward.1} parent=972 // loop_pre_header
              _
            $region975: #{fasttext_forward.1} parent=972 // loop_header
              %s1671 = sphi 0, %s1675
              %p1672 = scmp.ge.s32.totalorder %s1671, 1
              %s1676 = sphi %s1658, %s1658
              %s1677 = sphi %s1660, %s1660
            $region976: #{fasttext_forward.1} parent=972 // loop_header_branch
              %1674 = sbr.rel (%p1672) target = $region980
            $region977: #{fasttext_forward.1} parent=972 // loop_body
              %v1678 = vld [vmem:[%s1676] sm:%s1669]
              %1679 = vst [vmem:[%s1677] sm:%s1669] %v1678
            $region978: #{fasttext_forward.1} parent=972 // loop_footer
              %s1675 = sadd.s32 1, %s1671
            $region979: #{fasttext_forward.1} parent=972 // loop_footer_branch
              %1670 = sbr.rel target = $region975
            $region980: #{fasttext_forward.1} parent=972 // loop_exit
              _
          $region973: #{fasttext_forward.1} parent=514 // pred_fallthru
            _
          // Predicated region
          $region992: #{fasttext_forward.1} parent=514 // pred_check
            _
          $region993: #{fasttext_forward.1} parent=514 // pred_check_branch
            %1703 = sbr.rel (0) target = $region995
          $region994: #{fasttext_forward.1} parent=514 // pred_region
            %1704 = vsyncadd %s925, 16
          $region995: #{fasttext_forward.1} parent=514 // pred_fallthru
            _
        $region515: #{fasttext_forward.1} parent=508 // pred_fallthru
          _
        %s1705 = smul.u32 %s878, 16
        %s1706 = scalar_lea.vmem [#allocation2], %s1705
        %v1707 = vld [vmem:[%s1706] sm:$0xff]
        %v1708 = vld [vmem:[%s1706 + $0x8] sm:$0xff]
        %v1709 = vadd.f32 %v1707, %v1708
        %v1710 = vrot.slane %v1709, 4
        %v1711 = vadd.f32 %v1709, %v1710
        %v1712 = vrot.slane %v1711, 2
        %v1713 = vadd.f32 %v1711, %v1712
        %v1714 = vrot.slane %v1713, 1
        %v1715 = vadd.f32 %v1713, %v1714
        %v1716 = vadd.f32 %v1715, %v871
        %s1717 = scalar_lea.vmem %s102, %s873
        %1718 = vst [vmem:[%s1717] sm:$0x1] %v1716
      $region509: #{fasttext_forward.1} parent=23 // loop_footer
        %s877 = sadd.s32 1, %s873
      $region510: #{fasttext_forward.1} parent=23 // loop_footer_branch
        %872 = sbr.rel target = $region506
      $region511: #{fasttext_forward.1} parent=23 // loop_exit
        _
      %p1719 = scmp.lt.s32.totalorder %s20, 1
      %s1720 = scalar_select %p1719, %s20, 1
      %s1721 = smul.addr %s1720, 8
      %s1722 = scalar_lea.vmem %s3, %s1721
      // Predicated region
      $region996: #{fasttext_forward.1} parent=23 // pred_check
        %p1723 = pneg %p59
      $region997: #{fasttext_forward.1} parent=23 // pred_check_branch
        %1725 = sbr.rel (%p1723) target = $region999
      $region998: #{fasttext_forward.1} parent=23 // pred_region
        _
      $region999: #{fasttext_forward.1} parent=23 // pred_fallthru
        _
    $region24: #{fasttext_forward.1} parent=5 // pred_fallthru
      _
    %p1726 = scmp.le.s32.totalorder 2, %s15
    // Predicated region
    $region1000: #{fasttext_forward.1} parent=5 // pred_check
      %p1727 = pneg %p1726
    $region1001: #{fasttext_forward.1} parent=5 // pred_check_branch
      %1729 = sbr.rel (%p1727) target = $region1003
    $region1002: #{fasttext_forward.1} parent=5 // pred_region
      %s1730 = ssub.s32 %s15, 2
      // Predicated region
      $region1004: #{fasttext_forward.1} parent=1002 // pred_check
        %p1731 = pneg %p65
      $region1005: #{fasttext_forward.1} parent=1002 // pred_check_branch
        %1733 = sbr.rel (%p1731) target = $region1007
      $region1006: #{fasttext_forward.1} parent=1002 // pred_region
        %p1734 = scmp.lt.s32.totalorder %s21, 1
        %s1735 = scalar_select %p1734, %s21, 1
        %s1736 = smul.addr %s1735, 8
        %s1737 = scalar_lea.vmem %s3, %s1736
      $region1007: #{fasttext_forward.1} parent=1002 // pred_fallthru
        _
    $region1003: #{fasttext_forward.1} parent=5 // pred_fallthru
      _
  $region6: #{fasttext_forward.1} parent=0 // loop_footer
    %s19 = sadd.s32 1, %s15
  $region7: #{fasttext_forward.1} parent=0 // loop_footer_branch
    %14 = sbr.rel target = $region3
  $region8: #{fasttext_forward.1} parent=0 // loop_exit
    _
  %1738 = vsyncmov [#allocation3]
  %s1739 = vpop.sfrf %1738
  %p1740 = scmp.eq.s32.totalorder %s1739, 0
  %p1741 = pneg %p1740
  %1743 = shalt.err (%p1741)
  %s1744 = scalar_lea.sflag [#allocation3], 1
  %1745 = vsyncmov %s1744
  %s1746 = vpop.sfrf %1745
  %p1747 = scmp.eq.s32.totalorder %s1746, 0
  %p1748 = pneg %p1747
  %1750 = shalt.err (%p1748)

</llo_original>
